<compile_context>
chip_gen: v5e
topology: v5e:2x2
jax: 0.10.0
libtpu: 0.0.40
codegen_flags: <defaults>
</compile_context>

<pallas_src>
import jax
import jax.numpy as jnp
import numpy as np
from jax.experimental import pallas as pl
from jax.experimental.pallas import tpu as pltpu


def _round_up(v, m):
    return ((v + m - 1) // m) * m


def _make_kernel(tile_t, K, D, pad_l, pad_r, t_true):
    """Builds the fused kernel for one (batch, T-tile) grid point."""
    W = tile_t + K - 1          # haloed window length
    eps = 1e-5

    def kernel(xp_ref, xc_ref, xn_ref,
               ln_g_ref, ln_b_ref,
               w1a_ref, w1g_ref, b1a_ref, b1g_ref,
               wdw_ref, bdw_ref,
               bn_g_ref, bn_b_ref, bn_m_ref, bn_v_ref,
               w2_ref, b2_ref,
               o_ref,
               xw_ref, slab_ref):
        t = pl.program_id(1)

        # ---- assemble the haloed x window (W, D) into scratch (no concat) ----
        if pad_l > 0:
            xw_ref[0:pad_l, :] = xp_ref[0, tile_t - pad_l:, :]
        xw_ref[pad_l:pad_l + tile_t, :] = xc_ref[0]
        if pad_r > 0:
            xw_ref[pad_l + tile_t:W, :] = xn_ref[0, 0:pad_r, :]
        xw = xw_ref[...]                                          # (W, D) f32

        # ---- LayerNorm(D), f32 on the VPU ----
        mu = jnp.mean(xw, axis=-1, keepdims=True)
        var = jnp.mean(jnp.square(xw - mu), axis=-1, keepdims=True)
        h = (xw - mu) * jax.lax.rsqrt(var + eps) * ln_g_ref[0] + ln_b_ref[0]
        h16 = h.astype(jnp.bfloat16)                              # MXU operand

        # ---- pointwise conv split into the two GLU halves + GLU ----
        a = jnp.dot(h16, w1a_ref[...], preferred_element_type=jnp.float32) + b1a_ref[0]
        g = jnp.dot(h16, w1g_ref[...], preferred_element_type=jnp.float32) + b1g_ref[0]
        hg = a * jax.nn.sigmoid(g)                                # (W, D) f32

        # Rows outside [0, T) emulate the conv's zero padding (covers halo rows
        # fetched from clamped neighbour tiles and wrapper T padding).
        gidx = t * tile_t - pad_l + jax.lax.broadcasted_iota(jnp.int32, (W, 1), 0)
        valid = (gidx >= 0) & (gidx < t_true)
        hg16 = jnp.where(valid, hg, 0.0).astype(jnp.bfloat16)

        # ---- K-tap conv as one im2col matmul (tile_t, K*D) @ (K*D, D) ----
        for k in range(K):                                        # static unroll
            slab_ref[:, k * D:(k + 1) * D] = hg16[k:k + tile_t, :]
        acc = jnp.dot(slab_ref[...], wdw_ref[...],
                      preferred_element_type=jnp.float32) + bdw_ref[0]

        # ---- BatchNorm1d (eval, running stats) + Swish, f32 ----
        acc = (acc - bn_m_ref[0]) * jax.lax.rsqrt(bn_v_ref[0] + eps)
        acc = acc * bn_g_ref[0] + bn_b_ref[0]
        acc = acc * jax.nn.sigmoid(acc)

        # ---- second pointwise conv + residual (dropout = identity) ----
        y = jnp.dot(acc.astype(jnp.bfloat16), w2_ref[...],
                    preferred_element_type=jnp.float32) + b2_ref[0]
        o_ref[0] = (xc_ref[0] + y).astype(o_ref.dtype)

    return kernel


def convolution_module(x, params, *, tile_t=256, single_buffer_weights=True):
    """x: (B, T, D) float32. Returns (B, T, D)."""
    B, T, D = x.shape
    K = params["wdw"].shape[0]
    pad_l = (K - 1) // 2
    pad_r = K - 1 - pad_l

    # ---- pick a T tile: multiple of 8 sublanes, >= halo, <= padded T ----
    tile_t = max(8, min(int(tile_t), _round_up(T, 8)))
    tile_t = _round_up(tile_t, 8)
    tile_t = max(tile_t, _round_up(max(pad_l, pad_r, 1), 8))
    T_pad = _round_up(T, tile_t)
    nT = T_pad // tile_t

    x_in = x if T_pad == T else jnp.pad(x, ((0, 0), (0, T_pad - T), (0, 0)))

    # ---- weights: bf16 at the matmul boundary, GLU halves split, im2col layout ----
    w1 = params["w1"]
    w1a = w1[:, :D].astype(jnp.bfloat16)
    w1g = w1[:, D:].astype(jnp.bfloat16)
    b1a = params["b1"][:, :D]
    b1g = params["b1"][:, D:]
    wdw2d = params["wdw"].reshape(K * D, D).astype(jnp.bfloat16)
    w2 = params["w2"].astype(jnp.bfloat16)

    kernel = _make_kernel(tile_t, K, D, pad_l, pad_r, T)

    args = (x_in, x_in, x_in,
            params["ln_gamma"], params["ln_beta"],
            w1a, w1g, b1a, b1g,
            wdw2d, params["bdw"],
            params["bn_gamma"], params["bn_beta"],
            params["bn_mean"], params["bn_var"],
            w2, params["b2"])

    def build(single_buffer):
        def const_spec(shape):
            # Weights / vectors are identical for every grid step: constant
            # index_map => DMA'd once; single-buffered (when supported) so the
            # big (K*D, D) conv weight is not held twice in VMEM.
            if single_buffer:
                return pl.BlockSpec(shape, lambda b, t: (0,) * len(shape),
                                    pipeline_mode=pl.Buffered(1))
            return pl.BlockSpec(shape, lambda b, t: (0,) * len(shape))

        in_specs = [
            # Current x tile plus its two neighbours (clamped at the ends)
            # supply the (K-1)-row halo; LN/pointwise/GLU are recomputed for it.
            pl.BlockSpec((1, tile_t, D), lambda b, t: (b, jnp.maximum(t - 1, 0), 0)),
            pl.BlockSpec((1, tile_t, D), lambda b, t: (b, t, 0)),
            pl.BlockSpec((1, tile_t, D), lambda b, t: (b, jnp.minimum(t + 1, nT - 1), 0)),
            const_spec((1, D)), const_spec((1, D)),          # ln gamma / beta
            const_spec((D, D)), const_spec((D, D)),          # w1a, w1g (bf16)
            const_spec((1, D)), const_spec((1, D)),          # b1a, b1g
            const_spec((K * D, D)),                          # wdw, im2col layout (bf16)
            const_spec((1, D)),                              # bdw
            const_spec((1, D)), const_spec((1, D)),          # bn gamma / beta
            const_spec((1, D)), const_spec((1, D)),          # bn mean / var
            const_spec((D, D)),                              # w2 (bf16)
            const_spec((1, D)),                              # b2
        ]

        return pl.pallas_call(
            kernel,
            out_shape=jax.ShapeDtypeStruct((B, T_pad, D), x.dtype),
            grid_spec=pltpu.PrefetchScalarGridSpec(
                num_scalar_prefetch=0,
                grid=(B, nT),
                in_specs=in_specs,
                out_specs=pl.BlockSpec((1, tile_t, D), lambda b, t: (b, t, 0)),
                scratch_shapes=[
                    pltpu.VMEM((tile_t + K - 1, D), jnp.float32),   # haloed x window
                    pltpu.VMEM((tile_t, K * D), jnp.bfloat16),      # im2col slab
                ]),
            compiler_params=pltpu.CompilerParams(
                dimension_semantics=("parallel", "parallel"),
                vmem_limit_bytes=64 * 1024 * 1024),
        )

    out = None
    if single_buffer_weights:
        try:
            out = build(True)(*args)
        except Exception:   # pl.Buffered(1) unsupported on this jax build -> fall back
            out = None
    if out is None:
        out = build(False)(*args)
    if T_pad != T:
        out = out[:, :T, :]
    return out


def convolution_module_ref(x, params):
    """Pure-JAX f32 reference mirroring the module math."""
    B, T, D = x.shape
    eps = 1e-5
    mu = jnp.mean(x, axis=-1, keepdims=True)
    var = jnp.mean(jnp.square(x - mu), axis=-1, keepdims=True)
    h = (x - mu) * jax.lax.rsqrt(var + eps) * params["ln_gamma"][0] + params["ln_beta"][0]
    h = jnp.einsum("btd,de->bte", h, params["w1"]) + params["b1"][0]
    a, g = h[..., :D], h[..., D:]
    h = a * jax.nn.sigmoid(g)
    K = params["wdw"].shape[0]
    pad_l = (K - 1) // 2
    pad_r = K - 1 - pad_l
    hp = jnp.pad(h, ((0, 0), (pad_l, pad_r), (0, 0)))
    acc = jnp.zeros((B, T, D), jnp.float32)
    for k in range(K):
        acc = acc + jnp.einsum("btd,de->bte", hp[:, k:k + T, :], params["wdw"][k])
    acc = acc + params["bdw"][0]
    acc = (acc - params["bn_mean"][0]) * jax.lax.rsqrt(params["bn_var"][0] + eps)
    acc = acc * params["bn_gamma"][0] + params["bn_beta"][0]
    acc = acc * jax.nn.sigmoid(acc)
    y = jnp.einsum("btd,df->btf", acc, params["w2"]) + params["b2"][0]
    return x + y


def init_params(key, in_dim, kernel_size, expansion_factor=2):
    D = in_dim
    E = D * expansion_factor
    K = kernel_size
    ks = jax.random.split(key, 8)
    s1 = 1.0 / np.sqrt(D)
    s2 = 1.0 / np.sqrt(D * K)
    return {
        "ln_gamma": jnp.ones((1, D), jnp.float32),
        "ln_beta": jnp.zeros((1, D), jnp.float32),
        "w1": jax.random.uniform(ks[0], (D, E), jnp.float32, -s1, s1),
        "b1": jax.random.uniform(ks[1], (1, E), jnp.float32, -s1, s1),
        "wdw": jax.random.uniform(ks[2], (K, D, D), jnp.float32, -s2, s2),
        "bdw": jax.random.uniform(ks[3], (1, D), jnp.float32, -s2, s2),
        "bn_gamma": jnp.ones((1, D), jnp.float32),
        "bn_beta": jnp.zeros((1, D), jnp.float32),
        "bn_mean": 0.1 * jax.random.normal(ks[4], (1, D), jnp.float32),
        "bn_var": jax.random.uniform(ks[5], (1, D), jnp.float32, 0.5, 1.5),
        "w2": jax.random.uniform(ks[6], (D, D), jnp.float32, -s1, s1),
        "b2": jax.random.uniform(ks[7], (1, D), jnp.float32, -s1, s1),
    }


if __name__ == "__main__":
    B, T, D = 2, 32, 32
    kernel_size = 8                 # small even kernel (module default is 32)
    key = jax.random.PRNGKey(0)
    kx, kp = jax.random.split(key)
    x = jax.random.normal(kx, (B, T, D), jnp.float32)
    params = init_params(kp, D, kernel_size)

    ref = jax.block_until_ready(convolution_module_ref(x, params))

    # Multi-tile path (exercises the halo + boundary masking logic).
    out_tiled = jax.block_until_ready(convolution_module(x, params, tile_t=8))
    np.testing.assert_allclose(np.asarray(out_tiled), np.asarray(ref),
                               rtol=3e-2, atol=3e-2)

    # Single-tile path (whole sequence fits one block).
    out_single = jax.block_until_ready(convolution_module(x, params, tile_t=256))
    np.testing.assert_allclose(np.asarray(out_single), np.asarray(ref),
                               rtol=3e-2, atol=3e-2)

    print("KERNEL_OK")
</pallas_src>

<mosaic_0001>
module attributes {stable_mosaic.version = 11 : i64} {
  func.func @kernel(%arg0: i32, %arg1: i32, %arg2: memref<1x8x32xf32, #tpu.memory_space<vmem>>, %arg3: memref<1x8x32xf32, #tpu.memory_space<vmem>>, %arg4: memref<1x8x32xf32, #tpu.memory_space<vmem>>, %arg5: memref<1x32xf32, #tpu.memory_space<vmem>>, %arg6: memref<1x32xf32, #tpu.memory_space<vmem>>, %arg7: memref<32x32xbf16, #tpu.memory_space<vmem>>, %arg8: memref<32x32xbf16, #tpu.memory_space<vmem>>, %arg9: memref<1x32xf32, #tpu.memory_space<vmem>>, %arg10: memref<1x32xf32, #tpu.memory_space<vmem>>, %arg11: memref<256x32xbf16, #tpu.memory_space<vmem>>, %arg12: memref<1x32xf32, #tpu.memory_space<vmem>>, %arg13: memref<1x32xf32, #tpu.memory_space<vmem>>, %arg14: memref<1x32xf32, #tpu.memory_space<vmem>>, %arg15: memref<1x32xf32, #tpu.memory_space<vmem>>, %arg16: memref<1x32xf32, #tpu.memory_space<vmem>>, %arg17: memref<32x32xbf16, #tpu.memory_space<vmem>>, %arg18: memref<1x32xf32, #tpu.memory_space<vmem>>, %arg19: memref<1x8x32xf32, #tpu.memory_space<vmem>>, %arg20: memref<15x32xf32, #tpu.memory_space<vmem>>, %arg21: memref<8x256xbf16, #tpu.memory_space<vmem>>) attributes {dimension_semantics = [#tpu.dimension_semantics<parallel>, #tpu.dimension_semantics<parallel>], iteration_bounds = array<i64: 2, 4>, scalar_prefetch = 0 : i64, scratch_operands = 2 : i64, tpu.core_type = #tpu.core_type<tc>, window_params = [{transform_indices = @transform_0, window_bounds = array<i64: 1, 8, 32>}, {transform_indices = @transform_1, window_bounds = array<i64: 1, 8, 32>}, {transform_indices = @transform_2, window_bounds = array<i64: 1, 8, 32>}, {pipeline_mode = #tpu.pipeline_mode<synchronous>, transform_indices = @transform_3, window_bounds = array<i64: 1, 32>}, {pipeline_mode = #tpu.pipeline_mode<synchronous>, transform_indices = @transform_4, window_bounds = array<i64: 1, 32>}, {pipeline_mode = #tpu.pipeline_mode<synchronous>, transform_indices = @transform_5, window_bounds = array<i64: 32, 32>}, {pipeline_mode = #tpu.pipeline_mode<synchronous>, transform_indices = @transform_6, window_bounds = array<i64: 32, 32>}, {pipeline_mode = #tpu.pipeline_mode<synchronous>, transform_indices = @transform_7, window_bounds = array<i64: 1, 32>}, {pipeline_mode = #tpu.pipeline_mode<synchronous>, transform_indices = @transform_8, window_bounds = array<i64: 1, 32>}, {pipeline_mode = #tpu.pipeline_mode<synchronous>, transform_indices = @transform_9, window_bounds = array<i64: 256, 32>}, {pipeline_mode = #tpu.pipeline_mode<synchronous>, transform_indices = @transform_10, window_bounds = array<i64: 1, 32>}, {pipeline_mode = #tpu.pipeline_mode<synchronous>, transform_indices = @transform_11, window_bounds = array<i64: 1, 32>}, {pipeline_mode = #tpu.pipeline_mode<synchronous>, transform_indices = @transform_12, window_bounds = array<i64: 1, 32>}, {pipeline_mode = #tpu.pipeline_mode<synchronous>, transform_indices = @transform_13, window_bounds = array<i64: 1, 32>}, {pipeline_mode = #tpu.pipeline_mode<synchronous>, transform_indices = @transform_14, window_bounds = array<i64: 1, 32>}, {pipeline_mode = #tpu.pipeline_mode<synchronous>, transform_indices = @transform_15, window_bounds = array<i64: 32, 32>}, {pipeline_mode = #tpu.pipeline_mode<synchronous>, transform_indices = @transform_16, window_bounds = array<i64: 1, 32>}, {transform_indices = @transform_17, window_bounds = array<i64: 1, 8, 32>}]} {
    %c0 = arith.constant 0 : index
    %c5 = arith.constant 5 : index
    %c0_0 = arith.constant 0 : index
    %0 = vector.load %arg2[%c0, %c5, %c0_0] : memref<1x8x32xf32, #tpu.memory_space<vmem>>, vector<1x3x32xf32>
    %1 = vector.shape_cast %0 : vector<1x3x32xf32> to vector<3x32xf32>
    %c0_1 = arith.constant 0 : index
    %c0_2 = arith.constant 0 : index
    %2 = vector.load %arg20[%c0_1, %c0_2] : memref<15x32xf32, #tpu.memory_space<vmem>>, vector<3x32xf32>
    tpu.vector_store %arg20[%c0_1, %c0_2], %1 {strides = array<i32>} : memref<15x32xf32, #tpu.memory_space<vmem>>, vector<3x32xf32>,
    %c0_3 = arith.constant 0 : index
    %c0_4 = arith.constant 0 : index
    %c0_5 = arith.constant 0 : index
    %3 = vector.load %arg3[%c0_3, %c0_4, %c0_5] : memref<1x8x32xf32, #tpu.memory_space<vmem>>, vector<1x8x32xf32>
    %4 = vector.shape_cast %3 : vector<1x8x32xf32> to vector<8x32xf32>
    %c3 = arith.constant 3 : index
    %c0_6 = arith.constant 0 : index
    %5 = vector.load %arg20[%c3, %c0_6] : memref<15x32xf32, #tpu.memory_space<vmem>>, vector<8x32xf32>
    tpu.vector_store %arg20[%c3, %c0_6], %4 {strides = array<i32>} : memref<15x32xf32, #tpu.memory_space<vmem>>, vector<8x32xf32>,
    %c0_7 = arith.constant 0 : index
    %c0_8 = arith.constant 0 : index
    %c0_9 = arith.constant 0 : index
    %6 = vector.load %arg4[%c0_7, %c0_8, %c0_9] : memref<1x8x32xf32, #tpu.memory_space<vmem>>, vector<1x4x32xf32>
    %7 = vector.shape_cast %6 : vector<1x4x32xf32> to vector<4x32xf32>
    %c11 = arith.constant 11 : index
    %c0_10 = arith.constant 0 : index
    %8 = vector.load %arg20[%c11, %c0_10] : memref<15x32xf32, #tpu.memory_space<vmem>>, vector<4x32xf32>
    tpu.vector_store %arg20[%c11, %c0_10], %7 {strides = array<i32>} : memref<15x32xf32, #tpu.memory_space<vmem>>, vector<4x32xf32>,
    %c0_11 = arith.constant 0 : index
    %c0_12 = arith.constant 0 : index
    %9 = vector.load %arg20[%c0_11, %c0_12] : memref<15x32xf32, #tpu.memory_space<vmem>>, vector<15x32xf32>
    %cst = arith.constant dense<0.000000e+00> : vector<15xf32>
    %10 = vector.multi_reduction <add>, %9, %cst [1] : vector<15x32xf32> to vector<15xf32>
    %11 = vector.shape_cast %10 : vector<15xf32> to vector<15x1xf32>
    %cst_13 = arith.constant 3.200000e+01 : f32
    %12 = vector.broadcast %cst_13 : f32 to vector<15x1xf32>
    %13 = arith.divf %11, %12 : vector<15x1xf32>
    %14 = vector.broadcast %13 : vector<15x1xf32> to vector<15x32xf32>
    %15 = arith.subf %9, %14 : vector<15x32xf32>
    %16 = arith.mulf %15, %15 : vector<15x32xf32>
    %cst_14 = arith.constant dense<0.000000e+00> : vector<15xf32>
    %17 = vector.multi_reduction <add>, %16, %cst_14 [1] : vector<15x32xf32> to vector<15xf32>
    %18 = vector.shape_cast %17 : vector<15xf32> to vector<15x1xf32>
    %cst_15 = arith.constant 3.200000e+01 : f32
    %19 = vector.broadcast %cst_15 : f32 to vector<15x1xf32>
    %20 = arith.divf %18, %19 : vector<15x1xf32>
    %21 = vector.broadcast %13 : vector<15x1xf32> to vector<15x32xf32>
    %22 = arith.subf %9, %21 : vector<15x32xf32>
    %cst_16 = arith.constant 9.99999974E-6 : f32
    %23 = vector.broadcast %cst_16 : f32 to vector<15x1xf32>
    %24 = arith.addf %20, %23 : vector<15x1xf32>
    %25 = math.rsqrt %24 : vector<15x1xf32>
    %26 = vector.broadcast %25 : vector<15x1xf32> to vector<15x32xf32>
    %27 = arith.mulf %22, %26 : vector<15x32xf32>
    %c0_17 = arith.constant 0 : index
    %c0_18 = arith.constant 0 : index
    %28 = vector.load %arg5[%c0_17, %c0_18] : memref<1x32xf32, #tpu.memory_space<vmem>>, vector<1x32xf32>
    %29 = vector.shape_cast %28 : vector<1x32xf32> to vector<32xf32>
    %30 = vector.shape_cast %29 : vector<32xf32> to vector<1x32xf32>
    %31 = vector.broadcast %30 : vector<1x32xf32> to vector<15x32xf32>
    %32 = arith.mulf %27, %31 : vector<15x32xf32>
    %c0_19 = arith.constant 0 : index
    %c0_20 = arith.constant 0 : index
    %33 = vector.load %arg6[%c0_19, %c0_20] : memref<1x32xf32, #tpu.memory_space<vmem>>, vector<1x32xf32>
    %34 = vector.shape_cast %33 : vector<1x32xf32> to vector<32xf32>
    %35 = vector.shape_cast %34 : vector<32xf32> to vector<1x32xf32>
    %36 = vector.broadcast %35 : vector<1x32xf32> to vector<15x32xf32>
    %37 = arith.addf %32, %36 : vector<15x32xf32>
    %38 = arith.truncf %37 : vector<15x32xf32> to vector<15x32xbf16>
    %c0_21 = arith.constant 0 : index
    %c0_22 = arith.constant 0 : index
    %39 = vector.load %arg7[%c0_21, %c0_22] : memref<32x32xbf16, #tpu.memory_space<vmem>>, vector<32x32xbf16>
    %cst_23 = arith.constant dense<0.000000e+00> : vector<15x32xf32>
    %40 = tpu.matmul %38, %39, %cst_23 {dimension_numbers = #tpu.dot_dimension_numbers<[1], [0], [0], [1], [0, 0, 1, 1], [], []>} : vector<15x32xbf16>, vector<32x32xbf16>, vector<15x32xf32> -> vector<15x32xf32>
    %c0_24 = arith.constant 0 : index
    %c0_25 = arith.constant 0 : index
    %41 = vector.load %arg9[%c0_24, %c0_25] : memref<1x32xf32, #tpu.memory_space<vmem>>, vector<1x32xf32>
    %42 = vector.shape_cast %41 : vector<1x32xf32> to vector<32xf32>
    %43 = vector.shape_cast %42 : vector<32xf32> to vector<1x32xf32>
    %44 = vector.broadcast %43 : vector<1x32xf32> to vector<15x32xf32>
    %45 = arith.addf %40, %44 : vector<15x32xf32>
    %c0_26 = arith.constant 0 : index
    %c0_27 = arith.constant 0 : index
    %46 = vector.load %arg8[%c0_26, %c0_27] : memref<32x32xbf16, #tpu.memory_space<vmem>>, vector<32x32xbf16>
    %cst_28 = arith.constant dense<0.000000e+00> : vector<15x32xf32>
    %47 = tpu.matmul %38, %46, %cst_28 {dimension_numbers = #tpu.dot_dimension_numbers<[1], [0], [0], [1], [0, 0, 1, 1], [], []>} : vector<15x32xbf16>, vector<32x32xbf16>, vector<15x32xf32> -> vector<15x32xf32>
    %c0_29 = arith.constant 0 : index
    %c0_30 = arith.constant 0 : index
    %48 = vector.load %arg10[%c0_29, %c0_30] : memref<1x32xf32, #tpu.memory_space<vmem>>, vector<1x32xf32>
    %49 = vector.shape_cast %48 : vector<1x32xf32> to vector<32xf32>
    %50 = vector.shape_cast %49 : vector<32xf32> to vector<1x32xf32>
    %51 = vector.broadcast %50 : vector<1x32xf32> to vector<15x32xf32>
    %52 = arith.addf %47, %51 : vector<15x32xf32>
    %53 = arith.negf %52 : vector<15x32xf32>
    %54 = math.exp %53 : vector<15x32xf32>
    %cst_31 = arith.constant 1.000000e+00 : f32
    %55 = vector.broadcast %cst_31 : f32 to vector<15x32xf32>
    %56 = arith.addf %55, %54 : vector<15x32xf32>
    %57 = arith.divf %55, %56 : vector<15x32xf32>
    %58 = arith.mulf %45, %57 : vector<15x32xf32>
    %c8_i32 = arith.constant 8 : i32
    %59 = arith.muli %arg1, %c8_i32 : i32
    %c3_i32 = arith.constant 3 : i32
    %60 = arith.subi %59, %c3_i32 : i32
    %61 = tpu.iota {dimensions = array<i32: 0>} : vector<15x1xi32>
    %62 = vector.broadcast %60 : i32 to vector<15x1xi32>
    %63 = arith.addi %62, %61 : vector<15x1xi32>
    %c0_i32 = arith.constant 0 : i32
    %64 = vector.broadcast %c0_i32 : i32 to vector<15x1xi32>
    %65 = arith.cmpi sge, %63, %64 : vector<15x1xi32>
    %c32_i32 = arith.constant 32 : i32
    %66 = vector.broadcast %c32_i32 : i32 to vector<15x1xi32>
    %67 = arith.cmpi slt, %63, %66 : vector<15x1xi32>
    %68 = arith.andi %65, %67 : vector<15x1xi1>
    %cst_32 = arith.constant 0.000000e+00 : f32
    %69 = vector.shape_cast %68 : vector<15x1xi1> to vector<15x1xi1>
    %70 = vector.broadcast %69 : vector<15x1xi1> to vector<15x32xi1>
    %71 = vector.broadcast %cst_32 : f32 to vector<15x32xf32>
    %72 = arith.select %70, %58, %71 : vector<15x32xi1>, vector<15x32xf32>
    %73 = arith.truncf %72 : vector<15x32xf32> to vector<15x32xbf16>
    %74 = vector.extract_strided_slice %73 {offsets = [0, 0], sizes = [8, 32], strides = [1, 1]} : vector<15x32xbf16> to vector<8x32xbf16>
    %c0_33 = arith.constant 0 : index
    %c0_34 = arith.constant 0 : index
    %75 = vector.load %arg21[%c0_33, %c0_34] : memref<8x256xbf16, #tpu.memory_space<vmem>>, vector<8x32xbf16>
    tpu.vector_store %arg21[%c0_33, %c0_34], %74 {strides = array<i32>} : memref<8x256xbf16, #tpu.memory_space<vmem>>, vector<8x32xbf16>,
    %76 = vector.extract_strided_slice %73 {offsets = [1, 0], sizes = [8, 32], strides = [1, 1]} : vector<15x32xbf16> to vector<8x32xbf16>
    %c0_35 = arith.constant 0 : index
    %c32 = arith.constant 32 : index
    %77 = vector.load %arg21[%c0_35, %c32] : memref<8x256xbf16, #tpu.memory_space<vmem>>, vector<8x32xbf16>
    tpu.vector_store %arg21[%c0_35, %c32], %76 {strides = array<i32>} : memref<8x256xbf16, #tpu.memory_space<vmem>>, vector<8x32xbf16>,
    %78 = vector.extract_strided_slice %73 {offsets = [2, 0], sizes = [8, 32], strides = [1, 1]} : vector<15x32xbf16> to vector<8x32xbf16>
    %c0_36 = arith.constant 0 : index
    %c64 = arith.constant 64 : index
    %79 = vector.load %arg21[%c0_36, %c64] : memref<8x256xbf16, #tpu.memory_space<vmem>>, vector<8x32xbf16>
    tpu.vector_store %arg21[%c0_36, %c64], %78 {strides = array<i32>} : memref<8x256xbf16, #tpu.memory_space<vmem>>, vector<8x32xbf16>,
    %80 = vector.extract_strided_slice %73 {offsets = [3, 0], sizes = [8, 32], strides = [1, 1]} : vector<15x32xbf16> to vector<8x32xbf16>
    %c0_37 = arith.constant 0 : index
    %c96 = arith.constant 96 : index
    %81 = vector.load %arg21[%c0_37, %c96] : memref<8x256xbf16, #tpu.memory_space<vmem>>, vector<8x32xbf16>
    tpu.vector_store %arg21[%c0_37, %c96], %80 {strides = array<i32>} : memref<8x256xbf16, #tpu.memory_space<vmem>>, vector<8x32xbf16>,
    %82 = vector.extract_strided_slice %73 {offsets = [4, 0], sizes = [8, 32], strides = [1, 1]} : vector<15x32xbf16> to vector<8x32xbf16>
    %c0_38 = arith.constant 0 : index
    %c128 = arith.constant 128 : index
    %83 = vector.load %arg21[%c0_38, %c128] : memref<8x256xbf16, #tpu.memory_space<vmem>>, vector<8x32xbf16>
    tpu.vector_store %arg21[%c0_38, %c128], %82 {strides = array<i32>} : memref<8x256xbf16, #tpu.memory_space<vmem>>, vector<8x32xbf16>,
    %84 = vector.extract_strided_slice %73 {offsets = [5, 0], sizes = [8, 32], strides = [1, 1]} : vector<15x32xbf16> to vector<8x32xbf16>
    %c0_39 = arith.constant 0 : index
    %c160 = arith.constant 160 : index
    %85 = vector.load %arg21[%c0_39, %c160] : memref<8x256xbf16, #tpu.memory_space<vmem>>, vector<8x32xbf16>
    tpu.vector_store %arg21[%c0_39, %c160], %84 {strides = array<i32>} : memref<8x256xbf16, #tpu.memory_space<vmem>>, vector<8x32xbf16>,
    %86 = vector.extract_strided_slice %73 {offsets = [6, 0], sizes = [8, 32], strides = [1, 1]} : vector<15x32xbf16> to vector<8x32xbf16>
    %c0_40 = arith.constant 0 : index
    %c192 = arith.constant 192 : index
    %87 = vector.load %arg21[%c0_40, %c192] : memref<8x256xbf16, #tpu.memory_space<vmem>>, vector<8x32xbf16>
    tpu.vector_store %arg21[%c0_40, %c192], %86 {strides = array<i32>} : memref<8x256xbf16, #tpu.memory_space<vmem>>, vector<8x32xbf16>,
    %88 = vector.extract_strided_slice %73 {offsets = [7, 0], sizes = [8, 32], strides = [1, 1]} : vector<15x32xbf16> to vector<8x32xbf16>
    %c0_41 = arith.constant 0 : index
    %c224 = arith.constant 224 : index
    %89 = vector.load %arg21[%c0_41, %c224] : memref<8x256xbf16, #tpu.memory_space<vmem>>, vector<8x32xbf16>
    tpu.vector_store %arg21[%c0_41, %c224], %88 {strides = array<i32>} : memref<8x256xbf16, #tpu.memory_space<vmem>>, vector<8x32xbf16>,
    %c0_42 = arith.constant 0 : index
    %c0_43 = arith.constant 0 : index
    %90 = vector.load %arg21[%c0_42, %c0_43] : memref<8x256xbf16, #tpu.memory_space<vmem>>, vector<8x256xbf16>
    %c0_44 = arith.constant 0 : index
    %c0_45 = arith.constant 0 : index
    %91 = vector.load %arg11[%c0_44, %c0_45] : memref<256x32xbf16, #tpu.memory_space<vmem>>, vector<256x32xbf16>
    %cst_46 = arith.constant dense<0.000000e+00> : vector<8x32xf32>
    %92 = tpu.matmul %90, %91, %cst_46 {dimension_numbers = #tpu.dot_dimension_numbers<[1], [0], [0], [1], [0, 0, 1, 1], [], []>} : vector<8x256xbf16>, vector<256x32xbf16>, vector<8x32xf32> -> vector<8x32xf32>
    %c0_47 = arith.constant 0 : index
    %c0_48 = arith.constant 0 : index
    %93 = vector.load %arg12[%c0_47, %c0_48] : memref<1x32xf32, #tpu.memory_space<vmem>>, vector<1x32xf32>
    %94 = vector.shape_cast %93 : vector<1x32xf32> to vector<32xf32>
    %95 = vector.shape_cast %94 : vector<32xf32> to vector<1x32xf32>
    %96 = vector.broadcast %95 : vector<1x32xf32> to vector<8x32xf32>
    %97 = arith.addf %92, %96 : vector<8x32xf32>
    %c0_49 = arith.constant 0 : index
    %c0_50 = arith.constant 0 : index
    %98 = vector.load %arg15[%c0_49, %c0_50] : memref<1x32xf32, #tpu.memory_space<vmem>>, vector<1x32xf32>
    %99 = vector.shape_cast %98 : vector<1x32xf32> to vector<32xf32>
    %100 = vector.shape_cast %99 : vector<32xf32> to vector<1x32xf32>
    %101 = vector.broadcast %100 : vector<1x32xf32> to vector<8x32xf32>
    %102 = arith.subf %97, %101 : vector<8x32xf32>
    %c0_51 = arith.constant 0 : index
    %c0_52 = arith.constant 0 : index
    %103 = vector.load %arg16[%c0_51, %c0_52] : memref<1x32xf32, #tpu.memory_space<vmem>>, vector<1x32xf32>
    %104 = vector.shape_cast %103 : vector<1x32xf32> to vector<32xf32>
    %cst_53 = arith.constant 9.99999974E-6 : f32
    %105 = vector.broadcast %cst_53 : f32 to vector<32xf32>
    %106 = arith.addf %104, %105 : vector<32xf32>
    %107 = math.rsqrt %106 : vector<32xf32>
    %108 = vector.shape_cast %107 : vector<32xf32> to vector<1x32xf32>
    %109 = vector.broadcast %108 : vector<1x32xf32> to vector<8x32xf32>
    %110 = arith.mulf %102, %109 : vector<8x32xf32>
    %c0_54 = arith.constant 0 : index
    %c0_55 = arith.constant 0 : index
    %111 = vector.load %arg13[%c0_54, %c0_55] : memref<1x32xf32, #tpu.memory_space<vmem>>, vector<1x32xf32>
    %112 = vector.shape_cast %111 : vector<1x32xf32> to vector<32xf32>
    %113 = vector.shape_cast %112 : vector<32xf32> to vector<1x32xf32>
    %114 = vector.broadcast %113 : vector<1x32xf32> to vector<8x32xf32>
    %115 = arith.mulf %110, %114 : vector<8x32xf32>
    %c0_56 = arith.constant 0 : index
    %c0_57 = arith.constant 0 : index
    %116 = vector.load %arg14[%c0_56, %c0_57] : memref<1x32xf32, #tpu.memory_space<vmem>>, vector<1x32xf32>
    %117 = vector.shape_cast %116 : vector<1x32xf32> to vector<32xf32>
    %118 = vector.shape_cast %117 : vector<32xf32> to vector<1x32xf32>
    %119 = vector.broadcast %118 : vector<1x32xf32> to vector<8x32xf32>
    %120 = arith.addf %115, %119 : vector<8x32xf32>
    %121 = arith.negf %120 : vector<8x32xf32>
    %122 = math.exp %121 : vector<8x32xf32>
    %cst_58 = arith.constant 1.000000e+00 : f32
    %123 = vector.broadcast %cst_58 : f32 to vector<8x32xf32>
    %124 = arith.addf %123, %122 : vector<8x32xf32>
    %125 = arith.divf %123, %124 : vector<8x32xf32>
    %126 = arith.mulf %120, %125 : vector<8x32xf32>
    %127 = arith.truncf %126 : vector<8x32xf32> to vector<8x32xbf16>
    %c0_59 = arith.constant 0 : index
    %c0_60 = arith.constant 0 : index
    %128 = vector.load %arg17[%c0_59, %c0_60] : memref<32x32xbf16, #tpu.memory_space<vmem>>, vector<32x32xbf16>
    %cst_61 = arith.constant dense<0.000000e+00> : vector<8x32xf32>
    %129 = tpu.matmul %127, %128, %cst_61 {dimension_numbers = #tpu.dot_dimension_numbers<[1], [0], [0], [1], [0, 0, 1, 1], [], []>} : vector<8x32xbf16>, vector<32x32xbf16>, vector<8x32xf32> -> vector<8x32xf32>
    %c0_62 = arith.constant 0 : index
    %c0_63 = arith.constant 0 : index
    %130 = vector.load %arg18[%c0_62, %c0_63] : memref<1x32xf32, #tpu.memory_space<vmem>>, vector<1x32xf32>
    %131 = vector.shape_cast %130 : vector<1x32xf32> to vector<32xf32>
    %132 = vector.shape_cast %131 : vector<32xf32> to vector<1x32xf32>
    %133 = vector.broadcast %132 : vector<1x32xf32> to vector<8x32xf32>
    %134 = arith.addf %129, %133 : vector<8x32xf32>
    %c0_64 = arith.constant 0 : index
    %c0_65 = arith.constant 0 : index
    %c0_66 = arith.constant 0 : index
    %135 = vector.load %arg3[%c0_64, %c0_65, %c0_66] : memref<1x8x32xf32, #tpu.memory_space<vmem>>, vector<1x8x32xf32>
    %136 = vector.shape_cast %135 : vector<1x8x32xf32> to vector<8x32xf32>
    %137 = arith.addf %136, %134 : vector<8x32xf32>
    %c0_67 = arith.constant 0 : index
    %c0_68 = arith.constant 0 : index
    %c0_69 = arith.constant 0 : index
    %138 = vector.load %arg19[%c0_67, %c0_68, %c0_69] : memref<1x8x32xf32, #tpu.memory_space<vmem>>, vector<1x8x32xf32>
    %139 = vector.shape_cast %138 : vector<1x8x32xf32> to vector<8x32xf32>
    %140 = vector.shape_cast %137 : vector<8x32xf32> to vector<1x8x32xf32>
    tpu.vector_store %arg19[%c0_67, %c0_68, %c0_69], %140 {strides = array<i32>} : memref<1x8x32xf32, #tpu.memory_space<vmem>>, vector<1x8x32xf32>,
    return
  }
  func.func @transform_0(%arg0: i32, %arg1: i32) -> (i32, i32, i32) {
    %c1_i32 = arith.constant 1 : i32
    %0 = arith.subi %arg1, %c1_i32 : i32
    %c0_i32 = arith.constant 0 : i32
    %1 = arith.maxsi %0, %c0_i32 : i32
    %c0_i32_0 = arith.constant 0 : i32
    %c0_i32_1 = arith.constant 0 : i32
    return %arg0, %1, %c0_i32_0 : i32, i32, i32
  }
  func.func @transform_1(%arg0: i32, %arg1: i32) -> (i32, i32, i32) {
    %c0_i32 = arith.constant 0 : i32
    %c0_i32_0 = arith.constant 0 : i32
    return %arg0, %arg1, %c0_i32 : i32, i32, i32
  }
  func.func @transform_2(%arg0: i32, %arg1: i32) -> (i32, i32, i32) {
    %c1_i32 = arith.constant 1 : i32
    %0 = arith.addi %arg1, %c1_i32 : i32
    %c3_i32 = arith.constant 3 : i32
    %1 = arith.minsi %0, %c3_i32 : i32
    %c0_i32 = arith.constant 0 : i32
    %c0_i32_0 = arith.constant 0 : i32
    return %arg0, %1, %c0_i32 : i32, i32, i32
  }
  func.func @transform_3(%arg0: i32, %arg1: i32) -> (i32, i32) {
    %c0_i32 = arith.constant 0 : i32
    %c0_i32_0 = arith.constant 0 : i32
    %c0_i32_1 = arith.constant 0 : i32
    return %c0_i32, %c0_i32_0 : i32, i32
  }
  func.func @transform_4(%arg0: i32, %arg1: i32) -> (i32, i32) {
    %c0_i32 = arith.constant 0 : i32
    %c0_i32_0 = arith.constant 0 : i32
    %c0_i32_1 = arith.constant 0 : i32
    return %c0_i32, %c0_i32_0 : i32, i32
  }
  func.func @transform_5(%arg0: i32, %arg1: i32) -> (i32, i32) {
    %c0_i32 = arith.constant 0 : i32
    %c0_i32_0 = arith.constant 0 : i32
    %c0_i32_1 = arith.constant 0 : i32
    return %c0_i32, %c0_i32_0 : i32, i32
  }
  func.func @transform_6(%arg0: i32, %arg1: i32) -> (i32, i32) {
    %c0_i32 = arith.constant 0 : i32
    %c0_i32_0 = arith.constant 0 : i32
    %c0_i32_1 = arith.constant 0 : i32
    return %c0_i32, %c0_i32_0 : i32, i32
  }
  func.func @transform_7(%arg0: i32, %arg1: i32) -> (i32, i32) {
    %c0_i32 = arith.constant 0 : i32
    %c0_i32_0 = arith.constant 0 : i32
    %c0_i32_1 = arith.constant 0 : i32
    return %c0_i32, %c0_i32_0 : i32, i32
  }
  func.func @transform_8(%arg0: i32, %arg1: i32) -> (i32, i32) {
    %c0_i32 = arith.constant 0 : i32
    %c0_i32_0 = arith.constant 0 : i32
    %c0_i32_1 = arith.constant 0 : i32
    return %c0_i32, %c0_i32_0 : i32, i32
  }
  func.func @transform_9(%arg0: i32, %arg1: i32) -> (i32, i32) {
    %c0_i32 = arith.constant 0 : i32
    %c0_i32_0 = arith.constant 0 : i32
    %c0_i32_1 = arith.constant 0 : i32
    return %c0_i32, %c0_i32_0 : i32, i32
  }
  func.func @transform_10(%arg0: i32, %arg1: i32) -> (i32, i32) {
    %c0_i32 = arith.constant 0 : i32
    %c0_i32_0 = arith.constant 0 : i32
    %c0_i32_1 = arith.constant 0 : i32
    return %c0_i32, %c0_i32_0 : i32, i32
  }
  func.func @transform_11(%arg0: i32, %arg1: i32) -> (i32, i32) {
    %c0_i32 = arith.constant 0 : i32
    %c0_i32_0 = arith.constant 0 : i32
    %c0_i32_1 = arith.constant 0 : i32
    return %c0_i32, %c0_i32_0 : i32, i32
  }
  func.func @transform_12(%arg0: i32, %arg1: i32) -> (i32, i32) {
    %c0_i32 = arith.constant 0 : i32
    %c0_i32_0 = arith.constant 0 : i32
    %c0_i32_1 = arith.constant 0 : i32
    return %c0_i32, %c0_i32_0 : i32, i32
  }
  func.func @transform_13(%arg0: i32, %arg1: i32) -> (i32, i32) {
    %c0_i32 = arith.constant 0 : i32
    %c0_i32_0 = arith.constant 0 : i32
    %c0_i32_1 = arith.constant 0 : i32
    return %c0_i32, %c0_i32_0 : i32, i32
  }
  func.func @transform_14(%arg0: i32, %arg1: i32) -> (i32, i32) {
    %c0_i32 = arith.constant 0 : i32
    %c0_i32_0 = arith.constant 0 : i32
    %c0_i32_1 = arith.constant 0 : i32
    return %c0_i32, %c0_i32_0 : i32, i32
  }
  func.func @transform_15(%arg0: i32, %arg1: i32) -> (i32, i32) {
    %c0_i32 = arith.constant 0 : i32
    %c0_i32_0 = arith.constant 0 : i32
    %c0_i32_1 = arith.constant 0 : i32
    return %c0_i32, %c0_i32_0 : i32, i32
  }
  func.func @transform_16(%arg0: i32, %arg1: i32) -> (i32, i32) {
    %c0_i32 = arith.constant 0 : i32
    %c0_i32_0 = arith.constant 0 : i32
    %c0_i32_1 = arith.constant 0 : i32
    return %c0_i32, %c0_i32_0 : i32, i32
  }
  func.func @transform_17(%arg0: i32, %arg1: i32) -> (i32, i32, i32) {
    %c0_i32 = arith.constant 0 : i32
    %c0_i32_0 = arith.constant 0 : i32
    return %arg0, %arg1, %c0_i32 : i32, i32, i32
  }
}

module attributes {stable_mosaic.version = 11 : i64} {
  func.func @kernel(%arg0: i32, %arg1: i32, %arg2: memref<1x8x32xf32, #tpu.memory_space<vmem>>, %arg3: memref<1x8x32xf32, #tpu.memory_space<vmem>>, %arg4: memref<1x8x32xf32, #tpu.memory_space<vmem>>, %arg5: memref<1x32xf32, #tpu.memory_space<vmem>>, %arg6: memref<1x32xf32, #tpu.memory_space<vmem>>, %arg7: memref<32x32xbf16, #tpu.memory_space<vmem>>, %arg8: memref<32x32xbf16, #tpu.memory_space<vmem>>, %arg9: memref<1x32xf32, #tpu.memory_space<vmem>>, %arg10: memref<1x32xf32, #tpu.memory_space<vmem>>, %arg11: memref<256x32xbf16, #tpu.memory_space<vmem>>, %arg12: memref<1x32xf32, #tpu.memory_space<vmem>>, %arg13: memref<1x32xf32, #tpu.memory_space<vmem>>, %arg14: memref<1x32xf32, #tpu.memory_space<vmem>>, %arg15: memref<1x32xf32, #tpu.memory_space<vmem>>, %arg16: memref<1x32xf32, #tpu.memory_space<vmem>>, %arg17: memref<32x32xbf16, #tpu.memory_space<vmem>>, %arg18: memref<1x32xf32, #tpu.memory_space<vmem>>, %arg19: memref<1x8x32xf32, #tpu.memory_space<vmem>>, %arg20: memref<15x32xf32, #tpu.memory_space<vmem>>, %arg21: memref<8x256xbf16, #tpu.memory_space<vmem>>) attributes {dimension_semantics = [#tpu.dimension_semantics<parallel>, #tpu.dimension_semantics<parallel>], iteration_bounds = array<i64: 2, 4>, scalar_prefetch = 0 : i64, scratch_operands = 2 : i64, tpu.core_type = #tpu.core_type<tc>, window_params = [{transform_indices = @transform_0, window_bounds = array<i64: 1, 8, 32>}, {transform_indices = @transform_1, window_bounds = array<i64: 1, 8, 32>}, {transform_indices = @transform_2, window_bounds = array<i64: 1, 8, 32>}, {pipeline_mode = #tpu.pipeline_mode<synchronous>, transform_indices = @transform_3, window_bounds = array<i64: 1, 32>}, {pipeline_mode = #tpu.pipeline_mode<synchronous>, transform_indices = @transform_4, window_bounds = array<i64: 1, 32>}, {pipeline_mode = #tpu.pipeline_mode<synchronous>, transform_indices = @transform_5, window_bounds = array<i64: 32, 32>}, {pipeline_mode = #tpu.pipeline_mode<synchronous>, transform_indices = @transform_6, window_bounds = array<i64: 32, 32>}, {pipeline_mode = #tpu.pipeline_mode<synchronous>, transform_indices = @transform_7, window_bounds = array<i64: 1, 32>}, {pipeline_mode = #tpu.pipeline_mode<synchronous>, transform_indices = @transform_8, window_bounds = array<i64: 1, 32>}, {pipeline_mode = #tpu.pipeline_mode<synchronous>, transform_indices = @transform_9, window_bounds = array<i64: 256, 32>}, {pipeline_mode = #tpu.pipeline_mode<synchronous>, transform_indices = @transform_10, window_bounds = array<i64: 1, 32>}, {pipeline_mode = #tpu.pipeline_mode<synchronous>, transform_indices = @transform_11, window_bounds = array<i64: 1, 32>}, {pipeline_mode = #tpu.pipeline_mode<synchronous>, transform_indices = @transform_12, window_bounds = array<i64: 1, 32>}, {pipeline_mode = #tpu.pipeline_mode<synchronous>, transform_indices = @transform_13, window_bounds = array<i64: 1, 32>}, {pipeline_mode = #tpu.pipeline_mode<synchronous>, transform_indices = @transform_14, window_bounds = array<i64: 1, 32>}, {pipeline_mode = #tpu.pipeline_mode<synchronous>, transform_indices = @transform_15, window_bounds = array<i64: 32, 32>}, {pipeline_mode = #tpu.pipeline_mode<synchronous>, transform_indices = @transform_16, window_bounds = array<i64: 1, 32>}, {transform_indices = @transform_17, window_bounds = array<i64: 1, 8, 32>}]} {
    %c0 = arith.constant 0 : index
    %c5 = arith.constant 5 : index
    %c0_0 = arith.constant 0 : index
    %0 = vector.load %arg2[%c0, %c5, %c0_0] : memref<1x8x32xf32, #tpu.memory_space<vmem>>, vector<1x3x32xf32>
    %1 = vector.shape_cast %0 : vector<1x3x32xf32> to vector<3x32xf32>
    %c0_1 = arith.constant 0 : index
    %c0_2 = arith.constant 0 : index
    %2 = vector.load %arg20[%c0_1, %c0_2] : memref<15x32xf32, #tpu.memory_space<vmem>>, vector<3x32xf32>
    tpu.vector_store %arg20[%c0_1, %c0_2], %1 {strides = array<i32>} : memref<15x32xf32, #tpu.memory_space<vmem>>, vector<3x32xf32>,
    %c0_3 = arith.constant 0 : index
    %c0_4 = arith.constant 0 : index
    %c0_5 = arith.constant 0 : index
    %3 = vector.load %arg3[%c0_3, %c0_4, %c0_5] : memref<1x8x32xf32, #tpu.memory_space<vmem>>, vector<1x8x32xf32>
    %4 = vector.shape_cast %3 : vector<1x8x32xf32> to vector<8x32xf32>
    %c3 = arith.constant 3 : index
    %c0_6 = arith.constant 0 : index
    %5 = vector.load %arg20[%c3, %c0_6] : memref<15x32xf32, #tpu.memory_space<vmem>>, vector<8x32xf32>
    tpu.vector_store %arg20[%c3, %c0_6], %4 {strides = array<i32>} : memref<15x32xf32, #tpu.memory_space<vmem>>, vector<8x32xf32>,
    %c0_7 = arith.constant 0 : index
    %c0_8 = arith.constant 0 : index
    %c0_9 = arith.constant 0 : index
    %6 = vector.load %arg4[%c0_7, %c0_8, %c0_9] : memref<1x8x32xf32, #tpu.memory_space<vmem>>, vector<1x4x32xf32>
    %7 = vector.shape_cast %6 : vector<1x4x32xf32> to vector<4x32xf32>
    %c11 = arith.constant 11 : index
    %c0_10 = arith.constant 0 : index
    %8 = vector.load %arg20[%c11, %c0_10] : memref<15x32xf32, #tpu.memory_space<vmem>>, vector<4x32xf32>
    tpu.vector_store %arg20[%c11, %c0_10], %7 {strides = array<i32>} : memref<15x32xf32, #tpu.memory_space<vmem>>, vector<4x32xf32>,
    %c0_11 = arith.constant 0 : index
    %c0_12 = arith.constant 0 : index
    %9 = vector.load %arg20[%c0_11, %c0_12] : memref<15x32xf32, #tpu.memory_space<vmem>>, vector<15x32xf32>
    %cst = arith.constant dense<0.000000e+00> : vector<15xf32>
    %10 = vector.multi_reduction <add>, %9, %cst [1] : vector<15x32xf32> to vector<15xf32>
    %11 = vector.shape_cast %10 : vector<15xf32> to vector<15x1xf32>
    %cst_13 = arith.constant 3.200000e+01 : f32
    %12 = vector.broadcast %cst_13 : f32 to vector<15x1xf32>
    %13 = arith.divf %11, %12 : vector<15x1xf32>
    %14 = vector.broadcast %13 : vector<15x1xf32> to vector<15x32xf32>
    %15 = arith.subf %9, %14 : vector<15x32xf32>
    %16 = arith.mulf %15, %15 : vector<15x32xf32>
    %cst_14 = arith.constant dense<0.000000e+00> : vector<15xf32>
    %17 = vector.multi_reduction <add>, %16, %cst_14 [1] : vector<15x32xf32> to vector<15xf32>
    %18 = vector.shape_cast %17 : vector<15xf32> to vector<15x1xf32>
    %cst_15 = arith.constant 3.200000e+01 : f32
    %19 = vector.broadcast %cst_15 : f32 to vector<15x1xf32>
    %20 = arith.divf %18, %19 : vector<15x1xf32>
    %21 = vector.broadcast %13 : vector<15x1xf32> to vector<15x32xf32>
    %22 = arith.subf %9, %21 : vector<15x32xf32>
    %cst_16 = arith.constant 9.99999974E-6 : f32
    %23 = vector.broadcast %cst_16 : f32 to vector<15x1xf32>
    %24 = arith.addf %20, %23 : vector<15x1xf32>
    %25 = math.rsqrt %24 : vector<15x1xf32>
    %26 = vector.broadcast %25 : vector<15x1xf32> to vector<15x32xf32>
    %27 = arith.mulf %22, %26 : vector<15x32xf32>
    %c0_17 = arith.constant 0 : index
    %c0_18 = arith.constant 0 : index
    %28 = vector.load %arg5[%c0_17, %c0_18] : memref<1x32xf32, #tpu.memory_space<vmem>>, vector<1x32xf32>
    %29 = vector.shape_cast %28 : vector<1x32xf32> to vector<32xf32>
    %30 = vector.shape_cast %29 : vector<32xf32> to vector<1x32xf32>
    %31 = vector.broadcast %30 : vector<1x32xf32> to vector<15x32xf32>
    %32 = arith.mulf %27, %31 : vector<15x32xf32>
    %c0_19 = arith.constant 0 : index
    %c0_20 = arith.constant 0 : index
    %33 = vector.load %arg6[%c0_19, %c0_20] : memref<1x32xf32, #tpu.memory_space<vmem>>, vector<1x32xf32>
    %34 = vector.shape_cast %33 : vector<1x32xf32> to vector<32xf32>
    %35 = vector.shape_cast %34 : vector<32xf32> to vector<1x32xf32>
    %36 = vector.broadcast %35 : vector<1x32xf32> to vector<15x32xf32>
    %37 = arith.addf %32, %36 : vector<15x32xf32>
    %38 = arith.truncf %37 : vector<15x32xf32> to vector<15x32xbf16>
    %c0_21 = arith.constant 0 : index
    %c0_22 = arith.constant 0 : index
    %39 = vector.load %arg7[%c0_21, %c0_22] : memref<32x32xbf16, #tpu.memory_space<vmem>>, vector<32x32xbf16>
    %cst_23 = arith.constant dense<0.000000e+00> : vector<15x32xf32>
    %40 = tpu.matmul %38, %39, %cst_23 {dimension_numbers = #tpu.dot_dimension_numbers<[1], [0], [0], [1], [0, 0, 1, 1], [], []>} : vector<15x32xbf16>, vector<32x32xbf16>, vector<15x32xf32> -> vector<15x32xf32>
    %c0_24 = arith.constant 0 : index
    %c0_25 = arith.constant 0 : index
    %41 = vector.load %arg9[%c0_24, %c0_25] : memref<1x32xf32, #tpu.memory_space<vmem>>, vector<1x32xf32>
    %42 = vector.shape_cast %41 : vector<1x32xf32> to vector<32xf32>
    %43 = vector.shape_cast %42 : vector<32xf32> to vector<1x32xf32>
    %44 = vector.broadcast %43 : vector<1x32xf32> to vector<15x32xf32>
    %45 = arith.addf %40, %44 : vector<15x32xf32>
    %c0_26 = arith.constant 0 : index
    %c0_27 = arith.constant 0 : index
    %46 = vector.load %arg8[%c0_26, %c0_27] : memref<32x32xbf16, #tpu.memory_space<vmem>>, vector<32x32xbf16>
    %cst_28 = arith.constant dense<0.000000e+00> : vector<15x32xf32>
    %47 = tpu.matmul %38, %46, %cst_28 {dimension_numbers = #tpu.dot_dimension_numbers<[1], [0], [0], [1], [0, 0, 1, 1], [], []>} : vector<15x32xbf16>, vector<32x32xbf16>, vector<15x32xf32> -> vector<15x32xf32>
    %c0_29 = arith.constant 0 : index
    %c0_30 = arith.constant 0 : index
    %48 = vector.load %arg10[%c0_29, %c0_30] : memref<1x32xf32, #tpu.memory_space<vmem>>, vector<1x32xf32>
    %49 = vector.shape_cast %48 : vector<1x32xf32> to vector<32xf32>
    %50 = vector.shape_cast %49 : vector<32xf32> to vector<1x32xf32>
    %51 = vector.broadcast %50 : vector<1x32xf32> to vector<15x32xf32>
    %52 = arith.addf %47, %51 : vector<15x32xf32>
    %53 = arith.negf %52 : vector<15x32xf32>
    %54 = math.exp %53 : vector<15x32xf32>
    %cst_31 = arith.constant 1.000000e+00 : f32
    %55 = vector.broadcast %cst_31 : f32 to vector<15x32xf32>
    %56 = arith.addf %55, %54 : vector<15x32xf32>
    %57 = arith.divf %55, %56 : vector<15x32xf32>
    %58 = arith.mulf %45, %57 : vector<15x32xf32>
    %c8_i32 = arith.constant 8 : i32
    %59 = arith.muli %arg1, %c8_i32 : i32
    %c3_i32 = arith.constant 3 : i32
    %60 = arith.subi %59, %c3_i32 : i32
    %61 = tpu.iota {dimensions = array<i32: 0>} : vector<15x1xi32>
    %62 = vector.broadcast %60 : i32 to vector<15x1xi32>
    %63 = arith.addi %62, %61 : vector<15x1xi32>
    %c0_i32 = arith.constant 0 : i32
    %64 = vector.broadcast %c0_i32 : i32 to vector<15x1xi32>
    %65 = arith.cmpi sge, %63, %64 : vector<15x1xi32>
    %c32_i32 = arith.constant 32 : i32
    %66 = vector.broadcast %c32_i32 : i32 to vector<15x1xi32>
    %67 = arith.cmpi slt, %63, %66 : vector<15x1xi32>
    %68 = arith.andi %65, %67 : vector<15x1xi1>
    %cst_32 = arith.constant 0.000000e+00 : f32
    %69 = vector.shape_cast %68 : vector<15x1xi1> to vector<15x1xi1>
    %70 = vector.broadcast %69 : vector<15x1xi1> to vector<15x32xi1>
    %71 = vector.broadcast %cst_32 : f32 to vector<15x32xf32>
    %72 = arith.select %70, %58, %71 : vector<15x32xi1>, vector<15x32xf32>
    %73 = arith.truncf %72 : vector<15x32xf32> to vector<15x32xbf16>
    %74 = vector.extract_strided_slice %73 {offsets = [0, 0], sizes = [8, 32], strides = [1, 1]} : vector<15x32xbf16> to vector<8x32xbf16>
    %c0_33 = arith.constant 0 : index
    %c0_34 = arith.constant 0 : index
    %75 = vector.load %arg21[%c0_33, %c0_34] : memref<8x256xbf16, #tpu.memory_space<vmem>>, vector<8x32xbf16>
    tpu.vector_store %arg21[%c0_33, %c0_34], %74 {strides = array<i32>} : memref<8x256xbf16, #tpu.memory_space<vmem>>, vector<8x32xbf16>,
    %76 = vector.extract_strided_slice %73 {offsets = [1, 0], sizes = [8, 32], strides = [1, 1]} : vector<15x32xbf16> to vector<8x32xbf16>
    %c0_35 = arith.constant 0 : index
    %c32 = arith.constant 32 : index
    %77 = vector.load %arg21[%c0_35, %c32] : memref<8x256xbf16, #tpu.memory_space<vmem>>, vector<8x32xbf16>
    tpu.vector_store %arg21[%c0_35, %c32], %76 {strides = array<i32>} : memref<8x256xbf16, #tpu.memory_space<vmem>>, vector<8x32xbf16>,
    %78 = vector.extract_strided_slice %73 {offsets = [2, 0], sizes = [8, 32], strides = [1, 1]} : vector<15x32xbf16> to vector<8x32xbf16>
    %c0_36 = arith.constant 0 : index
    %c64 = arith.constant 64 : index
    %79 = vector.load %arg21[%c0_36, %c64] : memref<8x256xbf16, #tpu.memory_space<vmem>>, vector<8x32xbf16>
    tpu.vector_store %arg21[%c0_36, %c64], %78 {strides = array<i32>} : memref<8x256xbf16, #tpu.memory_space<vmem>>, vector<8x32xbf16>,
    %80 = vector.extract_strided_slice %73 {offsets = [3, 0], sizes = [8, 32], strides = [1, 1]} : vector<15x32xbf16> to vector<8x32xbf16>
    %c0_37 = arith.constant 0 : index
    %c96 = arith.constant 96 : index
    %81 = vector.load %arg21[%c0_37, %c96] : memref<8x256xbf16, #tpu.memory_space<vmem>>, vector<8x32xbf16>
    tpu.vector_store %arg21[%c0_37, %c96], %80 {strides = array<i32>} : memref<8x256xbf16, #tpu.memory_space<vmem>>, vector<8x32xbf16>,
    %82 = vector.extract_strided_slice %73 {offsets = [4, 0], sizes = [8, 32], strides = [1, 1]} : vector<15x32xbf16> to vector<8x32xbf16>
    %c0_38 = arith.constant 0 : index
    %c128 = arith.constant 128 : index
    %83 = vector.load %arg21[%c0_38, %c128] : memref<8x256xbf16, #tpu.memory_space<vmem>>, vector<8x32xbf16>
    tpu.vector_store %arg21[%c0_38, %c128], %82 {strides = array<i32>} : memref<8x256xbf16, #tpu.memory_space<vmem>>, vector<8x32xbf16>,
    %84 = vector.extract_strided_slice %73 {offsets = [5, 0], sizes = [8, 32], strides = [1, 1]} : vector<15x32xbf16> to vector<8x32xbf16>
    %c0_39 = arith.constant 0 : index
    %c160 = arith.constant 160 : index
    %85 = vector.load %arg21[%c0_39, %c160] : memref<8x256xbf16, #tpu.memory_space<vmem>>, vector<8x32xbf16>
    tpu.vector_store %arg21[%c0_39, %c160], %84 {strides = array<i32>} : memref<8x256xbf16, #tpu.memory_space<vmem>>, vector<8x32xbf16>,
    %86 = vector.extract_strided_slice %73 {offsets = [6, 0], sizes = [8, 32], strides = [1, 1]} : vector<15x32xbf16> to vector<8x32xbf16>
    %c0_40 = arith.constant 0 : index
    %c192 = arith.constant 192 : index
    %87 = vector.load %arg21[%c0_40, %c192] : memref<8x256xbf16, #tpu.memory_space<vmem>>, vector<8x32xbf16>
    tpu.vector_store %arg21[%c0_40, %c192], %86 {strides = array<i32>} : memref<8x256xbf16, #tpu.memory_space<vmem>>, vector<8x32xbf16>,
    %88 = vector.extract_strided_slice %73 {offsets = [7, 0], sizes = [8, 32], strides = [1, 1]} : vector<15x32xbf16> to vector<8x32xbf16>
    %c0_41 = arith.constant 0 : index
    %c224 = arith.constant 224 : index
    %89 = vector.load %arg21[%c0_41, %c224] : memref<8x256xbf16, #tpu.memory_space<vmem>>, vector<8x32xbf16>
    tpu.vector_store %arg21[%c0_41, %c224], %88 {strides = array<i32>} : memref<8x256xbf16, #tpu.memory_space<vmem>>, vector<8x32xbf16>,
    %c0_42 = arith.constant 0 : index
    %c0_43 = arith.constant 0 : index
    %90 = vector.load %arg21[%c0_42, %c0_43] : memref<8x256xbf16, #tpu.memory_space<vmem>>, vector<8x256xbf16>
    %c0_44 = arith.constant 0 : index
    %c0_45 = arith.constant 0 : index
    %91 = vector.load %arg11[%c0_44, %c0_45] : memref<256x32xbf16, #tpu.memory_space<vmem>>, vector<256x32xbf16>
    %cst_46 = arith.constant dense<0.000000e+00> : vector<8x32xf32>
    %92 = tpu.matmul %90, %91, %cst_46 {dimension_numbers = #tpu.dot_dimension_numbers<[1], [0], [0], [1], [0, 0, 1, 1], [], []>} : vector<8x256xbf16>, vector<256x32xbf16>, vector<8x32xf32> -> vector<8x32xf32>
    %c0_47 = arith.constant 0 : index
    %c0_48 = arith.constant 0 : index
    %93 = vector.load %arg12[%c0_47, %c0_48] : memref<1x32xf32, #tpu.memory_space<vmem>>, vector<1x32xf32>
    %94 = vector.shape_cast %93 : vector<1x32xf32> to vector<32xf32>
    %95 = vector.shape_cast %94 : vector<32xf32> to vector<1x32xf32>
    %96 = vector.broadcast %95 : vector<1x32xf32> to vector<8x32xf32>
    %97 = arith.addf %92, %96 : vector<8x32xf32>
    %c0_49 = arith.constant 0 : index
    %c0_50 = arith.constant 0 : index
    %98 = vector.load %arg15[%c0_49, %c0_50] : memref<1x32xf32, #tpu.memory_space<vmem>>, vector<1x32xf32>
    %99 = vector.shape_cast %98 : vector<1x32xf32> to vector<32xf32>
    %100 = vector.shape_cast %99 : vector<32xf32> to vector<1x32xf32>
    %101 = vector.broadcast %100 : vector<1x32xf32> to vector<8x32xf32>
    %102 = arith.subf %97, %101 : vector<8x32xf32>
    %c0_51 = arith.constant 0 : index
    %c0_52 = arith.constant 0 : index
    %103 = vector.load %arg16[%c0_51, %c0_52] : memref<1x32xf32, #tpu.memory_space<vmem>>, vector<1x32xf32>
    %104 = vector.shape_cast %103 : vector<1x32xf32> to vector<32xf32>
    %cst_53 = arith.constant 9.99999974E-6 : f32
    %105 = vector.broadcast %cst_53 : f32 to vector<32xf32>
    %106 = arith.addf %104, %105 : vector<32xf32>
    %107 = math.rsqrt %106 : vector<32xf32>
    %108 = vector.shape_cast %107 : vector<32xf32> to vector<1x32xf32>
    %109 = vector.broadcast %108 : vector<1x32xf32> to vector<8x32xf32>
    %110 = arith.mulf %102, %109 : vector<8x32xf32>
    %c0_54 = arith.constant 0 : index
    %c0_55 = arith.constant 0 : index
    %111 = vector.load %arg13[%c0_54, %c0_55] : memref<1x32xf32, #tpu.memory_space<vmem>>, vector<1x32xf32>
    %112 = vector.shape_cast %111 : vector<1x32xf32> to vector<32xf32>
    %113 = vector.shape_cast %112 : vector<32xf32> to vector<1x32xf32>
    %114 = vector.broadcast %113 : vector<1x32xf32> to vector<8x32xf32>
    %115 = arith.mulf %110, %114 : vector<8x32xf32>
    %c0_56 = arith.constant 0 : index
    %c0_57 = arith.constant 0 : index
    %116 = vector.load %arg14[%c0_56, %c0_57] : memref<1x32xf32, #tpu.memory_space<vmem>>, vector<1x32xf32>
    %117 = vector.shape_cast %116 : vector<1x32xf32> to vector<32xf32>
    %118 = vector.shape_cast %117 : vector<32xf32> to vector<1x32xf32>
    %119 = vector.broadcast %118 : vector<1x32xf32> to vector<8x32xf32>
    %120 = arith.addf %115, %119 : vector<8x32xf32>
    %121 = arith.negf %120 : vector<8x32xf32>
    %122 = math.exp %121 : vector<8x32xf32>
    %cst_58 = arith.constant 1.000000e+00 : f32
    %123 = vector.broadcast %cst_58 : f32 to vector<8x32xf32>
    %124 = arith.addf %123, %122 : vector<8x32xf32>
    %125 = arith.divf %123, %124 : vector<8x32xf32>
    %126 = arith.mulf %120, %125 : vector<8x32xf32>
    %127 = arith.truncf %126 : vector<8x32xf32> to vector<8x32xbf16>
    %c0_59 = arith.constant 0 : index
    %c0_60 = arith.constant 0 : index
    %128 = vector.load %arg17[%c0_59, %c0_60] : memref<32x32xbf16, #tpu.memory_space<vmem>>, vector<32x32xbf16>
    %cst_61 = arith.constant dense<0.000000e+00> : vector<8x32xf32>
    %129 = tpu.matmul %127, %128, %cst_61 {dimension_numbers = #tpu.dot_dimension_numbers<[1], [0], [0], [1], [0, 0, 1, 1], [], []>} : vector<8x32xbf16>, vector<32x32xbf16>, vector<8x32xf32> -> vector<8x32xf32>
    %c0_62 = arith.constant 0 : index
    %c0_63 = arith.constant 0 : index
    %130 = vector.load %arg18[%c0_62, %c0_63] : memref<1x32xf32, #tpu.memory_space<vmem>>, vector<1x32xf32>
    %131 = vector.shape_cast %130 : vector<1x32xf32> to vector<32xf32>
    %132 = vector.shape_cast %131 : vector<32xf32> to vector<1x32xf32>
    %133 = vector.broadcast %132 : vector<1x32xf32> to vector<8x32xf32>
    %134 = arith.addf %129, %133 : vector<8x32xf32>
    %c0_64 = arith.constant 0 : index
    %c0_65 = arith.constant 0 : index
    %c0_66 = arith.constant 0 : index
    %135 = vector.load %arg3[%c0_64, %c0_65, %c0_66] : memref<1x8x32xf32, #tpu.memory_space<vmem>>, vector<1x8x32xf32>
    %136 = vector.shape_cast %135 : vector<1x8x32xf32> to vector<8x32xf32>
    %137 = arith.addf %136, %134 : vector<8x32xf32>
    %c0_67 = arith.constant 0 : index
    %c0_68 = arith.constant 0 : index
    %c0_69 = arith.constant 0 : index
    %138 = vector.load %arg19[%c0_67, %c0_68, %c0_69] : memref<1x8x32xf32, #tpu.memory_space<vmem>>, vector<1x8x32xf32>
    %139 = vector.shape_cast %138 : vector<1x8x32xf32> to vector<8x32xf32>
    %140 = vector.shape_cast %137 : vector<8x32xf32> to vector<1x8x32xf32>
    tpu.vector_store %arg19[%c0_67, %c0_68, %c0_69], %140 {strides = array<i32>} : memref<1x8x32xf32, #tpu.memory_space<vmem>>, vector<1x8x32xf32>,
    return
  }
  func.func @transform_0(%arg0: i32, %arg1: i32) -> (i32, i32, i32) {
    %c1_i32 = arith.constant 1 : i32
    %0 = arith.subi %arg1, %c1_i32 : i32
    %c0_i32 = arith.constant 0 : i32
    %1 = arith.maxsi %0, %c0_i32 : i32
    %c0_i32_0 = arith.constant 0 : i32
    %c0_i32_1 = arith.constant 0 : i32
    return %arg0, %1, %c0_i32_0 : i32, i32, i32
  }
  func.func @transform_1(%arg0: i32, %arg1: i32) -> (i32, i32, i32) {
    %c0_i32 = arith.constant 0 : i32
    %c0_i32_0 = arith.constant 0 : i32
    return %arg0, %arg1, %c0_i32 : i32, i32, i32
  }
  func.func @transform_2(%arg0: i32, %arg1: i32) -> (i32, i32, i32) {
    %c1_i32 = arith.constant 1 : i32
    %0 = arith.addi %arg1, %c1_i32 : i32
    %c3_i32 = arith.constant 3 : i32
    %1 = arith.minsi %0, %c3_i32 : i32
    %c0_i32 = arith.constant 0 : i32
    %c0_i32_0 = arith.constant 0 : i32
    return %arg0, %1, %c0_i32 : i32, i32, i32
  }
  func.func @transform_3(%arg0: i32, %arg1: i32) -> (i32, i32) {
    %c0_i32 = arith.constant 0 : i32
    %c0_i32_0 = arith.constant 0 : i32
    %c0_i32_1 = arith.constant 0 : i32
    return %c0_i32, %c0_i32_0 : i32, i32
  }
  func.func @transform_4(%arg0: i32, %arg1: i32) -> (i32, i32) {
    %c0_i32 = arith.constant 0 : i32
    %c0_i32_0 = arith.constant 0 : i32
    %c0_i32_1 = arith.constant 0 : i32
    return %c0_i32, %c0_i32_0 : i32, i32
  }
  func.func @transform_5(%arg0: i32, %arg1: i32) -> (i32, i32) {
    %c0_i32 = arith.constant 0 : i32
    %c0_i32_0 = arith.constant 0 : i32
    %c0_i32_1 = arith.constant 0 : i32
    return %c0_i32, %c0_i32_0 : i32, i32
  }
  func.func @transform_6(%arg0: i32, %arg1: i32) -> (i32, i32) {
    %c0_i32 = arith.constant 0 : i32
    %c0_i32_0 = arith.constant 0 : i32
    %c0_i32_1 = arith.constant 0 : i32
    return %c0_i32, %c0_i32_0 : i32, i32
  }
  func.func @transform_7(%arg0: i32, %arg1: i32) -> (i32, i32) {
    %c0_i32 = arith.constant 0 : i32
    %c0_i32_0 = arith.constant 0 : i32
    %c0_i32_1 = arith.constant 0 : i32
    return %c0_i32, %c0_i32_0 : i32, i32
  }
  func.func @transform_8(%arg0: i32, %arg1: i32) -> (i32, i32) {
    %c0_i32 = arith.constant 0 : i32
    %c0_i32_0 = arith.constant 0 : i32
    %c0_i32_1 = arith.constant 0 : i32
    return %c0_i32, %c0_i32_0 : i32, i32
  }
  func.func @transform_9(%arg0: i32, %arg1: i32) -> (i32, i32) {
    %c0_i32 = arith.constant 0 : i32
    %c0_i32_0 = arith.constant 0 : i32
    %c0_i32_1 = arith.constant 0 : i32
    return %c0_i32, %c0_i32_0 : i32, i32
  }
  func.func @transform_10(%arg0: i32, %arg1: i32) -> (i32, i32) {
    %c0_i32 = arith.constant 0 : i32
    %c0_i32_0 = arith.constant 0 : i32
    %c0_i32_1 = arith.constant 0 : i32
    return %c0_i32, %c0_i32_0 : i32, i32
  }
  func.func @transform_11(%arg0: i32, %arg1: i32) -> (i32, i32) {
    %c0_i32 = arith.constant 0 : i32
    %c0_i32_0 = arith.constant 0 : i32
    %c0_i32_1 = arith.constant 0 : i32
    return %c0_i32, %c0_i32_0 : i32, i32
  }
  func.func @transform_12(%arg0: i32, %arg1: i32) -> (i32, i32) {
    %c0_i32 = arith.constant 0 : i32
    %c0_i32_0 = arith.constant 0 : i32
    %c0_i32_1 = arith.constant 0 : i32
    return %c0_i32, %c0_i32_0 : i32, i32
  }
  func.func @transform_13(%arg0: i32, %arg1: i32) -> (i32, i32) {
    %c0_i32 = arith.constant 0 : i32
    %c0_i32_0 = arith.constant 0 : i32
    %c0_i32_1 = arith.constant 0 : i32
    return %c0_i32, %c0_i32_0 : i32, i32
  }
  func.func @transform_14(%arg0: i32, %arg1: i32) -> (i32, i32) {
    %c0_i32 = arith.constant 0 : i32
    %c0_i32_0 = arith.constant 0 : i32
    %c0_i32_1 = arith.constant 0 : i32
    return %c0_i32, %c0_i32_0 : i32, i32
  }
  func.func @transform_15(%arg0: i32, %arg1: i32) -> (i32, i32) {
    %c0_i32 = arith.constant 0 : i32
    %c0_i32_0 = arith.constant 0 : i32
    %c0_i32_1 = arith.constant 0 : i32
    return %c0_i32, %c0_i32_0 : i32, i32
  }
  func.func @transform_16(%arg0: i32, %arg1: i32) -> (i32, i32) {
    %c0_i32 = arith.constant 0 : i32
    %c0_i32_0 = arith.constant 0 : i32
    %c0_i32_1 = arith.constant 0 : i32
    return %c0_i32, %c0_i32_0 : i32, i32
  }
  func.func @transform_17(%arg0: i32, %arg1: i32) -> (i32, i32, i32) {
    %c0_i32 = arith.constant 0 : i32
    %c0_i32_0 = arith.constant 0 : i32
    return %arg0, %arg1, %c0_i32 : i32, i32, i32
  }
}

</mosaic_0001>

<llo_original>
// kernel: tpu_custom_call.1
$region0: #{tpu_custom_call.1}
  #allocation0 [shape = 'u32[]', space=smem, size = 0x4, offset = 0x4, fixed_abs, tag = 'smem constant byte address 0x4 - core index']
  #allocation1 [shape = 'u32[72,128]{1,0:T(1,128)}', space=vmem, size = 0x9000, scoped, tag = 'internal scratch']
  #allocation2 [shape = 'f32[15,32]{1,0:T(8,128)}', space=vmem, size = 0x2000, scoped, tag = 'scratch operand']
  #allocation3 [shape = 'bf16[8,256]{1,0:T(8,128)(2,1)}', space=vmem, size = 0x1000, scoped, tag = 'scratch operand']
  %s0 = inlined_call_operand.vmem [shape: f32[2,32,32], index: 0, kind: input, shape index: {}]
  %s1 = inlined_call_operand.vmem [shape: f32[2,32,32], index: 1, kind: input, shape index: {}]
  %s2 = inlined_call_operand.hbm [shape: f32[2,32,32], index: 2, kind: input, shape index: {}]
  %s3 = inlined_call_operand.vmem [shape: f32[1,32], index: 3, kind: input, shape index: {}]
  %s4 = inlined_call_operand.vmem [shape: f32[1,32], index: 4, kind: input, shape index: {}]
  %s5 = inlined_call_operand.vmem [shape: bf16[32,32], index: 5, kind: input, shape index: {}]
  %s6 = inlined_call_operand.vmem [shape: bf16[32,32], index: 6, kind: input, shape index: {}]
  %s7 = inlined_call_operand.vmem [shape: f32[1,32], index: 7, kind: input, shape index: {}]
  %s8 = inlined_call_operand.vmem [shape: f32[1,32], index: 8, kind: input, shape index: {}]
  %s9 = inlined_call_operand.vmem [shape: bf16[256,32], index: 9, kind: input, shape index: {}]
  %s10 = inlined_call_operand.vmem [shape: f32[1,32], index: 10, kind: input, shape index: {}]
  %s11 = inlined_call_operand.vmem [shape: f32[1,32], index: 11, kind: input, shape index: {}]
  %s12 = inlined_call_operand.vmem [shape: f32[1,32], index: 12, kind: input, shape index: {}]
  %s13 = inlined_call_operand.vmem [shape: f32[1,32], index: 13, kind: input, shape index: {}]
  %s14 = inlined_call_operand.vmem [shape: f32[1,32], index: 14, kind: input, shape index: {}]
  %s15 = inlined_call_operand.hbm [shape: bf16[32,32], index: 15, kind: input, shape index: {}]
  %s16 = inlined_call_operand.vmem [shape: f32[1,32], index: 16, kind: input, shape index: {}]
  %s17 = inlined_call_operand.hbm [shape: f32[2,32,32], index: 17, kind: output, shape index: {}]
  %s18 = sld [smem:[#allocation0]]
  $region109: #{tpu_custom_call.1} parent=0
    _
  %s20 = ssub.s32 1, %s18
  %s21 = scalar_select 0, %s20, %s18
  $region1: #{tpu_custom_call.1} parent=0
    #allocation4 [shape = 'u8[8192]{0}', space=vmem, size = 0x2000, scoped, tag = 'input window, operand 2']
    #allocation5 [shape = 's32[2]{0}', space=sflag, size = 0x8, scoped, tag = 'scoped memory for tpu_custom_call.1']
    #allocation6 [shape = 's32[2]{0}', space=sflag, size = 0x8, scoped, tag = 'scoped memory for tpu_custom_call.1']
    #allocation7 [shape = 'u8[8192]{0}', space=vmem, size = 0x2000, scoped, tag = 'input window, operand 15, single buffered']
    #allocation8 [shape = 's32[1]{0}', space=sflag, size = 0x4, scoped, tag = 'scoped memory for tpu_custom_call.1']
    #allocation9 [shape = 'u8[8192]{0}', space=vmem, size = 0x2000, scoped, tag = 'output window, operand 0']
    %22 = vsyncpa [#allocation5], 0
    %s23 = scalar_lea.sflag [#allocation5], 1
    %24 = vsyncpa %s23, 0
    %25 = vsyncpa [#allocation8], 0
    %26 = vsyncpa [#allocation6], 0
    %s27 = scalar_lea.sflag [#allocation6], 1
    %28 = vsyncpa %s27, 0
    loop: start=0, step=1, limit=10
    $region2: #{tpu_custom_call.1} parent=1 // loop_pre_header
      _
    $region3: #{tpu_custom_call.1} parent=1 // loop_header
      %s30 = sphi 0, %s34
      %p31 = scmp.ge.s32.totalorder %s30, 10
      %s37 = sphi 0, %s49
      %s38 = sphi 0, %s45
      %s39 = sphi 0, %s37
      %s40 = sphi 0, %s38
      %s41 = sphi 0, %s39
      %s42 = sphi 0, %s40
      %s60 = sphi 0, %s62
      %s63 = sphi 0, %s60
      %s64 = sphi 0, %s63
      %s80 = sphi 0, %s64
      %s88 = sphi 0, %s90
      %s91 = sphi 0, %s88
      %s92 = sphi 0, %s91
      %s108 = sphi 0, %s92
      %s122 = sphi 0, %s124
      %s125 = sphi 0, %s122
      %s126 = sphi 0, %s125
      %s142 = sphi 0, %s126
      %s146 = sphi 0, %s146
      %s148 = sphi 0, %s146
      %s149 = sphi 0, %s148
      %s163 = sphi 0, %s149
      %s167 = sphi 0, %s167
      %s169 = sphi 0, %s167
      %s170 = sphi 0, %s169
      %s184 = sphi 0, %s170
      %s188 = sphi 0, %s188
      %s190 = sphi 0, %s188
      %s191 = sphi 0, %s190
      %s205 = sphi 0, %s191
      %s209 = sphi 0, %s209
      %s211 = sphi 0, %s209
      %s212 = sphi 0, %s211
      %s226 = sphi 0, %s212
      %s230 = sphi 0, %s230
      %s232 = sphi 0, %s230
      %s233 = sphi 0, %s232
      %s247 = sphi 0, %s233
      %s251 = sphi 0, %s251
      %s253 = sphi 0, %s251
      %s254 = sphi 0, %s253
      %s268 = sphi 0, %s254
      %s272 = sphi 0, %s272
      %s274 = sphi 0, %s272
      %s275 = sphi 0, %s274
      %s289 = sphi 0, %s275
      %s293 = sphi 0, %s293
      %s295 = sphi 0, %s293
      %s296 = sphi 0, %s295
      %s310 = sphi 0, %s296
      %s314 = sphi 0, %s314
      %s316 = sphi 0, %s314
      %s317 = sphi 0, %s316
      %s331 = sphi 0, %s317
      %s335 = sphi 0, %s335
      %s337 = sphi 0, %s335
      %s338 = sphi 0, %s337
      %s352 = sphi 0, %s338
      %s356 = sphi 0, %s356
      %s358 = sphi 0, %s356
      %s359 = sphi 0, %s358
      %s373 = sphi 0, %s359
      %s377 = sphi 0, %s377
      %s379 = sphi 0, %s377
      %s380 = sphi 0, %s379
      %s394 = sphi 0, %s380
      %s398 = sphi 0, %s398
      %s400 = sphi 0, %s398
      %s401 = sphi 0, %s400
      %s415 = sphi 0, %s401
      %s419 = sphi 0, %s419
      %s421 = sphi 0, %s419
      %s422 = sphi 0, %s421
      %s436 = sphi 0, %s422
      %s444 = sphi 0, %s446
      %s447 = sphi 0, %s444
      %s448 = sphi 0, %s447
      %s464 = sphi 0, %s448
    $region4: #{tpu_custom_call.1} parent=1 // loop_header_branch
      %33 = sbr.rel (%p31) target = $region8
    $region5: #{tpu_custom_call.1} parent=1 // loop_body
      %s35 = ssub.s32 %s30, 1
      %s36 = ssub.s32 %s30, 2
      %s43 = sadd.s32 1, %s38
      %p44 = scmp.ge.s32.totalorder %s43, 4
      %s45 = scalar_select %p44, 0, %s43
      %s46 = sadd.s32 1, %s37
      %s47 = scalar_select %p44, %s46, %s37
      %p48 = scmp.ge.s32.totalorder %s47, 2
      %s49 = scalar_select %p48, 0, %s47
      %s50 = ssub.s32 %s38, 1
      %p51 = scmp.gt.s32.totalorder %s50, 0
      %s52 = scalar_select %p51, %s50, 0
      %s53 = ssub.s32 %s45, 1
      %p54 = scmp.gt.s32.totalorder %s53, 0
      %s55 = scalar_select %p54, %s53, 0
      %s56 = ssub.s32 %s37, %s49
      %s57 = ssub.s32 %s52, %s55
      %s58 = sor.u32 %s56, %s57
      %p59 = scmp.eq.s32.totalorder %s58, 0
      %s61 = sadd.s32 %s60, 1
      %s62 = scalar_select %p59, %s60, %s61
      %p65 = pneg %p59
      %p66 = scmp.eq.s32.totalorder %s30, 7
      %p67 = por %p65, %p66
      %p68 = scmp.ne.s32.totalorder %s60, %s63
      %p69 = scmp.eq.s32.totalorder %s30, 0
      %p70 = por %p68, %p69
      %p71 = scmp.ne.s32.totalorder %s60, %s63
      %p72 = scmp.eq.s32.totalorder %s35, 7
      %p73 = por %p71, %p72
      %p74 = scmp.ne.s32.totalorder %s63, %s64
      %p75 = scmp.eq.s32.totalorder %s35, 0
      %p76 = por %p74, %p75
      %p77 = scmp.ne.s32.totalorder %s63, %s64
      %p78 = scmp.eq.s32.totalorder %s36, 7
      %p79 = por %p77, %p78
      %p81 = scmp.ne.s32.totalorder %s64, %s80
      %p82 = scmp.eq.s32.totalorder %s36, 0
      %p83 = por %p81, %p82
      %s84 = ssub.s32 %s37, %s49
      %s85 = ssub.s32 %s38, %s45
      %s86 = sor.u32 %s84, %s85
      %p87 = scmp.eq.s32.totalorder %s86, 0
      %s89 = sadd.s32 %s88, 1
      %s90 = scalar_select %p87, %s88, %s89
      %p93 = pneg %p87
      %p94 = scmp.eq.s32.totalorder %s30, 7
      %p95 = por %p93, %p94
      %p96 = scmp.ne.s32.totalorder %s88, %s91
      %p97 = scmp.eq.s32.totalorder %s30, 0
      %p98 = por %p96, %p97
      %p99 = scmp.ne.s32.totalorder %s88, %s91
      %p100 = scmp.eq.s32.totalorder %s35, 7
      %p101 = por %p99, %p100
      %p102 = scmp.ne.s32.totalorder %s91, %s92
      %p103 = scmp.eq.s32.totalorder %s35, 0
      %p104 = por %p102, %p103
      %p105 = scmp.ne.s32.totalorder %s91, %s92
      %p106 = scmp.eq.s32.totalorder %s36, 7
      %p107 = por %p105, %p106
      %p109 = scmp.ne.s32.totalorder %s92, %s108
      %p110 = scmp.eq.s32.totalorder %s36, 0
      %p111 = por %p109, %p110
      %s112 = sadd.s32 %s38, 1
      %p113 = scmp.lt.s32.totalorder %s112, 3
      %s114 = scalar_select %p113, %s112, 3
      %s115 = sadd.s32 %s45, 1
      %p116 = scmp.lt.s32.totalorder %s115, 3
      %s117 = scalar_select %p116, %s115, 3
      %s118 = ssub.s32 %s37, %s49
      %s119 = ssub.s32 %s114, %s117
      %s120 = sor.u32 %s118, %s119
      %p121 = scmp.eq.s32.totalorder %s120, 0
      %s123 = sadd.s32 %s122, 1
      %s124 = scalar_select %p121, %s122, %s123
      %p127 = pneg %p121
      %p128 = scmp.eq.s32.totalorder %s30, 7
      %p129 = por %p127, %p128
      %p130 = scmp.ne.s32.totalorder %s122, %s125
      %p131 = scmp.eq.s32.totalorder %s30, 0
      %p132 = por %p130, %p131
      %p133 = scmp.ne.s32.totalorder %s122, %s125
      %p134 = scmp.eq.s32.totalorder %s35, 7
      %p135 = por %p133, %p134
      %p136 = scmp.ne.s32.totalorder %s125, %s126
      %p137 = scmp.eq.s32.totalorder %s35, 0
      %p138 = por %p136, %p137
      %p139 = scmp.ne.s32.totalorder %s125, %s126
      %p140 = scmp.eq.s32.totalorder %s36, 7
      %p141 = por %p139, %p140
      %p143 = scmp.ne.s32.totalorder %s126, %s142
      %p144 = scmp.eq.s32.totalorder %s36, 0
      %p145 = por %p143, %p144
      %s147 = sadd.s32 %s146, 1
      %p150 = scmp.eq.s32.totalorder %s30, 7
      %p151 = scmp.ne.s32.totalorder %s146, %s148
      %p152 = scmp.eq.s32.totalorder %s30, 0
      %p153 = por %p151, %p152
      %p154 = scmp.ne.s32.totalorder %s146, %s148
      %p155 = scmp.eq.s32.totalorder %s35, 7
      %p156 = por %p154, %p155
      %p157 = scmp.ne.s32.totalorder %s148, %s149
      %p158 = scmp.eq.s32.totalorder %s35, 0
      %p159 = por %p157, %p158
      %p160 = scmp.ne.s32.totalorder %s148, %s149
      %p161 = scmp.eq.s32.totalorder %s36, 7
      %p162 = por %p160, %p161
      %p164 = scmp.ne.s32.totalorder %s149, %s163
      %p165 = scmp.eq.s32.totalorder %s36, 0
      %p166 = por %p164, %p165
      %s168 = sadd.s32 %s167, 1
      %p171 = scmp.eq.s32.totalorder %s30, 7
      %p172 = scmp.ne.s32.totalorder %s167, %s169
      %p173 = scmp.eq.s32.totalorder %s30, 0
      %p174 = por %p172, %p173
      %p175 = scmp.ne.s32.totalorder %s167, %s169
      %p176 = scmp.eq.s32.totalorder %s35, 7
      %p177 = por %p175, %p176
      %p178 = scmp.ne.s32.totalorder %s169, %s170
      %p179 = scmp.eq.s32.totalorder %s35, 0
      %p180 = por %p178, %p179
      %p181 = scmp.ne.s32.totalorder %s169, %s170
      %p182 = scmp.eq.s32.totalorder %s36, 7
      %p183 = por %p181, %p182
      %p185 = scmp.ne.s32.totalorder %s170, %s184
      %p186 = scmp.eq.s32.totalorder %s36, 0
      %p187 = por %p185, %p186
      %s189 = sadd.s32 %s188, 1
      %p192 = scmp.eq.s32.totalorder %s30, 7
      %p193 = scmp.ne.s32.totalorder %s188, %s190
      %p194 = scmp.eq.s32.totalorder %s30, 0
      %p195 = por %p193, %p194
      %p196 = scmp.ne.s32.totalorder %s188, %s190
      %p197 = scmp.eq.s32.totalorder %s35, 7
      %p198 = por %p196, %p197
      %p199 = scmp.ne.s32.totalorder %s190, %s191
      %p200 = scmp.eq.s32.totalorder %s35, 0
      %p201 = por %p199, %p200
      %p202 = scmp.ne.s32.totalorder %s190, %s191
      %p203 = scmp.eq.s32.totalorder %s36, 7
      %p204 = por %p202, %p203
      %p206 = scmp.ne.s32.totalorder %s191, %s205
      %p207 = scmp.eq.s32.totalorder %s36, 0
      %p208 = por %p206, %p207
      %s210 = sadd.s32 %s209, 1
      %p213 = scmp.eq.s32.totalorder %s30, 7
      %p214 = scmp.ne.s32.totalorder %s209, %s211
      %p215 = scmp.eq.s32.totalorder %s30, 0
      %p216 = por %p214, %p215
      %p217 = scmp.ne.s32.totalorder %s209, %s211
      %p218 = scmp.eq.s32.totalorder %s35, 7
      %p219 = por %p217, %p218
      %p220 = scmp.ne.s32.totalorder %s211, %s212
      %p221 = scmp.eq.s32.totalorder %s35, 0
      %p222 = por %p220, %p221
      %p223 = scmp.ne.s32.totalorder %s211, %s212
      %p224 = scmp.eq.s32.totalorder %s36, 7
      %p225 = por %p223, %p224
      %p227 = scmp.ne.s32.totalorder %s212, %s226
      %p228 = scmp.eq.s32.totalorder %s36, 0
      %p229 = por %p227, %p228
      %s231 = sadd.s32 %s230, 1
      %p234 = scmp.eq.s32.totalorder %s30, 7
      %p235 = scmp.ne.s32.totalorder %s230, %s232
      %p236 = scmp.eq.s32.totalorder %s30, 0
      %p237 = por %p235, %p236
      %p238 = scmp.ne.s32.totalorder %s230, %s232
      %p239 = scmp.eq.s32.totalorder %s35, 7
      %p240 = por %p238, %p239
      %p241 = scmp.ne.s32.totalorder %s232, %s233
      %p242 = scmp.eq.s32.totalorder %s35, 0
      %p243 = por %p241, %p242
      %p244 = scmp.ne.s32.totalorder %s232, %s233
      %p245 = scmp.eq.s32.totalorder %s36, 7
      %p246 = por %p244, %p245
      %p248 = scmp.ne.s32.totalorder %s233, %s247
      %p249 = scmp.eq.s32.totalorder %s36, 0
      %p250 = por %p248, %p249
      %s252 = sadd.s32 %s251, 1
      %p255 = scmp.eq.s32.totalorder %s30, 7
      %p256 = scmp.ne.s32.totalorder %s251, %s253
      %p257 = scmp.eq.s32.totalorder %s30, 0
      %p258 = por %p256, %p257
      %p259 = scmp.ne.s32.totalorder %s251, %s253
      %p260 = scmp.eq.s32.totalorder %s35, 7
      %p261 = por %p259, %p260
      %p262 = scmp.ne.s32.totalorder %s253, %s254
      %p263 = scmp.eq.s32.totalorder %s35, 0
      %p264 = por %p262, %p263
      %p265 = scmp.ne.s32.totalorder %s253, %s254
      %p266 = scmp.eq.s32.totalorder %s36, 7
      %p267 = por %p265, %p266
      %p269 = scmp.ne.s32.totalorder %s254, %s268
      %p270 = scmp.eq.s32.totalorder %s36, 0
      %p271 = por %p269, %p270
      %s273 = sadd.s32 %s272, 1
      %p276 = scmp.eq.s32.totalorder %s30, 7
      %p277 = scmp.ne.s32.totalorder %s272, %s274
      %p278 = scmp.eq.s32.totalorder %s30, 0
      %p279 = por %p277, %p278
      %p280 = scmp.ne.s32.totalorder %s272, %s274
      %p281 = scmp.eq.s32.totalorder %s35, 7
      %p282 = por %p280, %p281
      %p283 = scmp.ne.s32.totalorder %s274, %s275
      %p284 = scmp.eq.s32.totalorder %s35, 0
      %p285 = por %p283, %p284
      %p286 = scmp.ne.s32.totalorder %s274, %s275
      %p287 = scmp.eq.s32.totalorder %s36, 7
      %p288 = por %p286, %p287
      %p290 = scmp.ne.s32.totalorder %s275, %s289
      %p291 = scmp.eq.s32.totalorder %s36, 0
      %p292 = por %p290, %p291
      %s294 = sadd.s32 %s293, 1
      %p297 = scmp.eq.s32.totalorder %s30, 7
      %p298 = scmp.ne.s32.totalorder %s293, %s295
      %p299 = scmp.eq.s32.totalorder %s30, 0
      %p300 = por %p298, %p299
      %p301 = scmp.ne.s32.totalorder %s293, %s295
      %p302 = scmp.eq.s32.totalorder %s35, 7
      %p303 = por %p301, %p302
      %p304 = scmp.ne.s32.totalorder %s295, %s296
      %p305 = scmp.eq.s32.totalorder %s35, 0
      %p306 = por %p304, %p305
      %p307 = scmp.ne.s32.totalorder %s295, %s296
      %p308 = scmp.eq.s32.totalorder %s36, 7
      %p309 = por %p307, %p308
      %p311 = scmp.ne.s32.totalorder %s296, %s310
      %p312 = scmp.eq.s32.totalorder %s36, 0
      %p313 = por %p311, %p312
      %s315 = sadd.s32 %s314, 1
      %p318 = scmp.eq.s32.totalorder %s30, 7
      %p319 = scmp.ne.s32.totalorder %s314, %s316
      %p320 = scmp.eq.s32.totalorder %s30, 0
      %p321 = por %p319, %p320
      %p322 = scmp.ne.s32.totalorder %s314, %s316
      %p323 = scmp.eq.s32.totalorder %s35, 7
      %p324 = por %p322, %p323
      %p325 = scmp.ne.s32.totalorder %s316, %s317
      %p326 = scmp.eq.s32.totalorder %s35, 0
      %p327 = por %p325, %p326
      %p328 = scmp.ne.s32.totalorder %s316, %s317
      %p329 = scmp.eq.s32.totalorder %s36, 7
      %p330 = por %p328, %p329
      %p332 = scmp.ne.s32.totalorder %s317, %s331
      %p333 = scmp.eq.s32.totalorder %s36, 0
      %p334 = por %p332, %p333
      %s336 = sadd.s32 %s335, 1
      %p339 = scmp.eq.s32.totalorder %s30, 7
      %p340 = scmp.ne.s32.totalorder %s335, %s337
      %p341 = scmp.eq.s32.totalorder %s30, 0
      %p342 = por %p340, %p341
      %p343 = scmp.ne.s32.totalorder %s335, %s337
      %p344 = scmp.eq.s32.totalorder %s35, 7
      %p345 = por %p343, %p344
      %p346 = scmp.ne.s32.totalorder %s337, %s338
      %p347 = scmp.eq.s32.totalorder %s35, 0
      %p348 = por %p346, %p347
      %p349 = scmp.ne.s32.totalorder %s337, %s338
      %p350 = scmp.eq.s32.totalorder %s36, 7
      %p351 = por %p349, %p350
      %p353 = scmp.ne.s32.totalorder %s338, %s352
      %p354 = scmp.eq.s32.totalorder %s36, 0
      %p355 = por %p353, %p354
      %s357 = sadd.s32 %s356, 1
      %p360 = scmp.eq.s32.totalorder %s30, 7
      %p361 = scmp.ne.s32.totalorder %s356, %s358
      %p362 = scmp.eq.s32.totalorder %s30, 0
      %p363 = por %p361, %p362
      %p364 = scmp.ne.s32.totalorder %s356, %s358
      %p365 = scmp.eq.s32.totalorder %s35, 7
      %p366 = por %p364, %p365
      %p367 = scmp.ne.s32.totalorder %s358, %s359
      %p368 = scmp.eq.s32.totalorder %s35, 0
      %p369 = por %p367, %p368
      %p370 = scmp.ne.s32.totalorder %s358, %s359
      %p371 = scmp.eq.s32.totalorder %s36, 7
      %p372 = por %p370, %p371
      %p374 = scmp.ne.s32.totalorder %s359, %s373
      %p375 = scmp.eq.s32.totalorder %s36, 0
      %p376 = por %p374, %p375
      %s378 = sadd.s32 %s377, 1
      %p381 = scmp.eq.s32.totalorder %s30, 7
      %p382 = scmp.ne.s32.totalorder %s377, %s379
      %p383 = scmp.eq.s32.totalorder %s30, 0
      %p384 = por %p382, %p383
      %p385 = scmp.ne.s32.totalorder %s377, %s379
      %p386 = scmp.eq.s32.totalorder %s35, 7
      %p387 = por %p385, %p386
      %p388 = scmp.ne.s32.totalorder %s379, %s380
      %p389 = scmp.eq.s32.totalorder %s35, 0
      %p390 = por %p388, %p389
      %p391 = scmp.ne.s32.totalorder %s379, %s380
      %p392 = scmp.eq.s32.totalorder %s36, 7
      %p393 = por %p391, %p392
      %p395 = scmp.ne.s32.totalorder %s380, %s394
      %p396 = scmp.eq.s32.totalorder %s36, 0
      %p397 = por %p395, %p396
      %s399 = sadd.s32 %s398, 1
      %p402 = scmp.eq.s32.totalorder %s30, 7
      %p403 = scmp.ne.s32.totalorder %s398, %s400
      %p404 = scmp.eq.s32.totalorder %s30, 0
      %p405 = por %p403, %p404
      %p406 = scmp.ne.s32.totalorder %s398, %s400
      %p407 = scmp.eq.s32.totalorder %s35, 7
      %p408 = por %p406, %p407
      %p409 = scmp.ne.s32.totalorder %s400, %s401
      %p410 = scmp.eq.s32.totalorder %s35, 0
      %p411 = por %p409, %p410
      %p412 = scmp.ne.s32.totalorder %s400, %s401
      %p413 = scmp.eq.s32.totalorder %s36, 7
      %p414 = por %p412, %p413
      %p416 = scmp.ne.s32.totalorder %s401, %s415
      %p417 = scmp.eq.s32.totalorder %s36, 0
      %p418 = por %p416, %p417
      %s420 = sadd.s32 %s419, 1
      %p423 = scmp.eq.s32.totalorder %s30, 7
      %p424 = scmp.ne.s32.totalorder %s419, %s421
      %p425 = scmp.eq.s32.totalorder %s30, 0
      %p426 = por %p424, %p425
      %p427 = scmp.ne.s32.totalorder %s419, %s421
      %p428 = scmp.eq.s32.totalorder %s35, 7
      %p429 = por %p427, %p428
      %p430 = scmp.ne.s32.totalorder %s421, %s422
      %p431 = scmp.eq.s32.totalorder %s35, 0
      %p432 = por %p430, %p431
      %p433 = scmp.ne.s32.totalorder %s421, %s422
      %p434 = scmp.eq.s32.totalorder %s36, 7
      %p435 = por %p433, %p434
      %p437 = scmp.ne.s32.totalorder %s422, %s436
      %p438 = scmp.eq.s32.totalorder %s36, 0
      %p439 = por %p437, %p438
      %s440 = ssub.s32 %s37, %s49
      %s441 = ssub.s32 %s38, %s45
      %s442 = sor.u32 %s440, %s441
      %p443 = scmp.eq.s32.totalorder %s442, 0
      %s445 = sadd.s32 %s444, 1
      %s446 = scalar_select %p443, %s444, %s445
      %p449 = pneg %p443
      %p450 = scmp.eq.s32.totalorder %s30, 7
      %p451 = por %p449, %p450
      %p452 = scmp.ne.s32.totalorder %s444, %s447
      %p453 = scmp.eq.s32.totalorder %s30, 0
      %p454 = por %p452, %p453
      %p455 = scmp.ne.s32.totalorder %s444, %s447
      %p456 = scmp.eq.s32.totalorder %s35, 7
      %p457 = por %p455, %p456
      %p458 = scmp.ne.s32.totalorder %s447, %s448
      %p459 = scmp.eq.s32.totalorder %s35, 0
      %p460 = por %p458, %p459
      %p461 = scmp.ne.s32.totalorder %s447, %s448
      %p462 = scmp.eq.s32.totalorder %s36, 7
      %p463 = por %p461, %p462
      %p465 = scmp.ne.s32.totalorder %s448, %s464
      %p466 = scmp.eq.s32.totalorder %s36, 0
      %p467 = por %p465, %p466
      %p468 = scmp.le.s32.totalorder 1, %s30
      %p469 = scmp.lt.s32.totalorder %s30, 9
      %p470 = pnand %p468, %p469
      %p471 = pneg %p470
      // Predicated region
      $region9: #{tpu_custom_call.1} parent=5 // pred_check
        _
      $region10: #{tpu_custom_call.1} parent=5 // pred_check_branch
        %473 = sbr.rel (%p470) target = $region12
      $region11: #{tpu_custom_call.1} parent=5 // pred_region
        %s474 = ssub.s32 %s30, 1
        // Predicated region
        $region13: #{tpu_custom_call.1} parent=11 // pred_check
          %p475 = pneg %p159
        $region14: #{tpu_custom_call.1} parent=11 // pred_check_branch
          %477 = sbr.rel (%p475) target = $region16
        $region15: #{tpu_custom_call.1} parent=11 // pred_region
          _
        $region16: #{tpu_custom_call.1} parent=11 // pred_fallthru
          _
        // Predicated region
        $region17: #{tpu_custom_call.1} parent=11 // pred_check
          %p478 = pneg %p180
        $region18: #{tpu_custom_call.1} parent=11 // pred_check_branch
          %480 = sbr.rel (%p478) target = $region20
        $region19: #{tpu_custom_call.1} parent=11 // pred_region
          _
        $region20: #{tpu_custom_call.1} parent=11 // pred_fallthru
          _
        // Predicated region
        $region21: #{tpu_custom_call.1} parent=11 // pred_check
          %p481 = pneg %p201
        $region22: #{tpu_custom_call.1} parent=11 // pred_check_branch
          %483 = sbr.rel (%p481) target = $region24
        $region23: #{tpu_custom_call.1} parent=11 // pred_region
          _
        $region24: #{tpu_custom_call.1} parent=11 // pred_fallthru
          _
        // Predicated region
        $region25: #{tpu_custom_call.1} parent=11 // pred_check
          %p484 = pneg %p222
        $region26: #{tpu_custom_call.1} parent=11 // pred_check_branch
          %486 = sbr.rel (%p484) target = $region28
        $region27: #{tpu_custom_call.1} parent=11 // pred_region
          _
        $region28: #{tpu_custom_call.1} parent=11 // pred_fallthru
          _
        // Predicated region
        $region29: #{tpu_custom_call.1} parent=11 // pred_check
          %p487 = pneg %p243
        $region30: #{tpu_custom_call.1} parent=11 // pred_check_branch
          %489 = sbr.rel (%p487) target = $region32
        $region31: #{tpu_custom_call.1} parent=11 // pred_region
          _
        $region32: #{tpu_custom_call.1} parent=11 // pred_fallthru
          _
        // Predicated region
        $region33: #{tpu_custom_call.1} parent=11 // pred_check
          %p490 = pneg %p264
        $region34: #{tpu_custom_call.1} parent=11 // pred_check_branch
          %492 = sbr.rel (%p490) target = $region36
        $region35: #{tpu_custom_call.1} parent=11 // pred_region
          _
        $region36: #{tpu_custom_call.1} parent=11 // pred_fallthru
          _
        // Predicated region
        $region37: #{tpu_custom_call.1} parent=11 // pred_check
          %p493 = pneg %p285
        $region38: #{tpu_custom_call.1} parent=11 // pred_check_branch
          %495 = sbr.rel (%p493) target = $region40
        $region39: #{tpu_custom_call.1} parent=11 // pred_region
          _
        $region40: #{tpu_custom_call.1} parent=11 // pred_fallthru
          _
        // Predicated region
        $region41: #{tpu_custom_call.1} parent=11 // pred_check
          %p496 = pneg %p306
        $region42: #{tpu_custom_call.1} parent=11 // pred_check_branch
          %498 = sbr.rel (%p496) target = $region44
        $region43: #{tpu_custom_call.1} parent=11 // pred_region
          _
        $region44: #{tpu_custom_call.1} parent=11 // pred_fallthru
          _
        // Predicated region
        $region45: #{tpu_custom_call.1} parent=11 // pred_check
          %p499 = pneg %p327
        $region46: #{tpu_custom_call.1} parent=11 // pred_check_branch
          %501 = sbr.rel (%p499) target = $region48
        $region47: #{tpu_custom_call.1} parent=11 // pred_region
          _
        $region48: #{tpu_custom_call.1} parent=11 // pred_fallthru
          _
        // Predicated region
        $region49: #{tpu_custom_call.1} parent=11 // pred_check
          %p502 = pneg %p348
        $region50: #{tpu_custom_call.1} parent=11 // pred_check_branch
          %504 = sbr.rel (%p502) target = $region52
        $region51: #{tpu_custom_call.1} parent=11 // pred_region
          _
        $region52: #{tpu_custom_call.1} parent=11 // pred_fallthru
          _
        // Predicated region
        $region53: #{tpu_custom_call.1} parent=11 // pred_check
          %p505 = pneg %p369
        $region54: #{tpu_custom_call.1} parent=11 // pred_check_branch
          %507 = sbr.rel (%p505) target = $region56
        $region55: #{tpu_custom_call.1} parent=11 // pred_region
          _
        $region56: #{tpu_custom_call.1} parent=11 // pred_fallthru
          _
        // Predicated region
        $region57: #{tpu_custom_call.1} parent=11 // pred_check
          %p508 = pneg %p390
        $region58: #{tpu_custom_call.1} parent=11 // pred_check_branch
          %510 = sbr.rel (%p508) target = $region60
        $region59: #{tpu_custom_call.1} parent=11 // pred_region
          _
        $region60: #{tpu_custom_call.1} parent=11 // pred_fallthru
          _
        // Predicated region
        $region61: #{tpu_custom_call.1} parent=11 // pred_check
          %p511 = pneg %p411
        $region62: #{tpu_custom_call.1} parent=11 // pred_check_branch
          %513 = sbr.rel (%p511) target = $region64
        $region63: #{tpu_custom_call.1} parent=11 // pred_region
          %515 = vsyncadd [#allocation8], 0
          %s516 = sshll.u32 %s15, 4
          %s517 = int_to_ptr.hbm [resolvable:$true] %s516
          %s518 = sshll.u32 [#allocation7], 4
          %s519 = int_to_ptr.vmem [resolvable:$true] %s518
          %524 = dma.hbm_to_vmem [thread:$0]  %s517, 256, %s519, [#allocation8], 64, 64, 4
        $region64: #{tpu_custom_call.1} parent=11 // pred_fallthru
          _
        // Predicated region
        $region65: #{tpu_custom_call.1} parent=11 // pred_check
          %p525 = pneg %p432
        $region66: #{tpu_custom_call.1} parent=11 // pred_check_branch
          %527 = sbr.rel (%p525) target = $region68
        $region67: #{tpu_custom_call.1} parent=11 // pred_region
          _
        $region68: #{tpu_custom_call.1} parent=11 // pred_fallthru
          _
      $region12: #{tpu_custom_call.1} parent=5 // pred_fallthru
        _
      %p528 = scmp.lt.s32.totalorder %s30, 8
      // Predicated region
      $region69: #{tpu_custom_call.1} parent=5 // pred_check
        %p529 = pneg %p528
      $region70: #{tpu_custom_call.1} parent=5 // pred_check_branch
        %531 = sbr.rel (%p529) target = $region72
      $region71: #{tpu_custom_call.1} parent=5 // pred_region
        // Predicated region
        $region73: #{tpu_custom_call.1} parent=71 // pred_check
          %p532 = pneg %p70
        $region74: #{tpu_custom_call.1} parent=71 // pred_check_branch
          %534 = sbr.rel (%p532) target = $region76
        $region75: #{tpu_custom_call.1} parent=71 // pred_region
          %s535 = ssub.s32 %s38, 1
          %p536 = scmp.gt.s32.totalorder %s535, 0
          %s537 = scalar_select %p536, %s535, 0
          %p538 = scmp.lt.s32.totalorder %s37, 1
          %s539 = scalar_select %p538, %s37, 1
          %p540 = scmp.lt.s32.totalorder %s537, 3
          %s541 = scalar_select %p540, %s537, 3
          %s542 = smul.addr %s539, 4
          %s543 = sadd.s32 %s541, %s542
          %s544 = smul.addr %s543, 8
          %s545 = scalar_lea.vmem %s0, %s544
          %s546 = ssub.s32 %s38, 1
          %p547 = scmp.gt.s32.totalorder %s546, 0
          %s548 = scalar_select %p547, %s546, 0
        $region76: #{tpu_custom_call.1} parent=71 // pred_fallthru
          _
        // Predicated region
        $region77: #{tpu_custom_call.1} parent=71 // pred_check
          %p549 = pneg %p98
        $region78: #{tpu_custom_call.1} parent=71 // pred_check_branch
          %551 = sbr.rel (%p549) target = $region80
        $region79: #{tpu_custom_call.1} parent=71 // pred_region
          %p552 = scmp.lt.s32.totalorder %s37, 1
          %s553 = scalar_select %p552, %s37, 1
          %p554 = scmp.lt.s32.totalorder %s38, 3
          %s555 = scalar_select %p554, %s38, 3
          %s556 = smul.addr %s553, 4
          %s557 = sadd.s32 %s555, %s556
          %s558 = smul.addr %s557, 8
          %s559 = scalar_lea.vmem %s1, %s558
        $region80: #{tpu_custom_call.1} parent=71 // pred_fallthru
          _
        // Predicated region
        $region81: #{tpu_custom_call.1} parent=71 // pred_check
          %p560 = pneg %p132
        $region82: #{tpu_custom_call.1} parent=71 // pred_check_branch
          %562 = sbr.rel (%p560) target = $region84
        $region83: #{tpu_custom_call.1} parent=71 // pred_region
          %s563 = sand.u32 %s122, 1
          %s564 = scalar_lea.sflag [#allocation5], %s563
          %s565 = sand.u32 %s122, 1
          %s566 = smul.addr %s565, 8
          %s567 = scalar_lea.vmem [#allocation4], %s566
          %s568 = sadd.s32 %s38, 1
          %p569 = scmp.lt.s32.totalorder %s568, 3
          %s570 = scalar_select %p569, %s568, 3
          %572 = vsyncadd %s564, 0
          %s573 = smul.addr %s37, 4
          %s574 = sadd.s32 %s570, %s573
          %s575 = smul.addr %s574, 8
          %s576 = scalar_lea.hbm %s2, %s575
          %s578 = sshll.u32 %s576, 4
          %s579 = int_to_ptr.hbm [resolvable:$true] %s578
          %s580 = sshll.u32 %s567, 4
          %s581 = int_to_ptr.vmem [resolvable:$true] %s580
          %583 = dma.hbm_to_vmem [thread:$0]  %s579, 128, %s581, %s564
        $region84: #{tpu_custom_call.1} parent=71 // pred_fallthru
          _
      $region72: #{tpu_custom_call.1} parent=5 // pred_fallthru
        _
      %p584 = scmp.le.s32.totalorder 1, %s30
      %p585 = scmp.lt.s32.totalorder %s30, 9
      %p586 = pnand %p584, %p585
      %p587 = pneg %p586
      // Predicated region
      $region85: #{tpu_custom_call.1} parent=5 // pred_check
        _
      $region86: #{tpu_custom_call.1} parent=5 // pred_check_branch
        %589 = sbr.rel (%p586) target = $region88
      $region87: #{tpu_custom_call.1} parent=5 // pred_region
        %s590 = ssub.s32 %s30, 1
        %s591 = sand.u32 %s125, 1
        %s592 = scalar_lea.sflag [#allocation5], %s591
        %s593 = sand.u32 %s125, 1
        %s594 = smul.addr %s593, 8
        %s595 = scalar_lea.vmem [#allocation4], %s594
        // Predicated region
        $region89: #{tpu_custom_call.1} parent=87 // pred_check
          %p596 = pneg %p138
        $region90: #{tpu_custom_call.1} parent=87 // pred_check_branch
          %598 = sbr.rel (%p596) target = $region92
        $region91: #{tpu_custom_call.1} parent=87 // pred_region
          %600 = dma.done %s592, 128
        $region92: #{tpu_custom_call.1} parent=87 // pred_fallthru
          _
        // Predicated region
        $region93: #{tpu_custom_call.1} parent=87 // pred_check
          %p601 = pneg %p411
        $region94: #{tpu_custom_call.1} parent=87 // pred_check_branch
          %603 = sbr.rel (%p601) target = $region96
        $region95: #{tpu_custom_call.1} parent=87 // pred_region
          %605 = dma.done [#allocation8], 256
        $region96: #{tpu_custom_call.1} parent=87 // pred_fallthru
          _
        %s606 = ssub.s32 %s40, 1
        %p607 = scmp.gt.s32.totalorder %s606, 0
        %s608 = scalar_select %p607, %s606, 0
        %p609 = scmp.lt.s32.totalorder %s39, 1
        %s610 = scalar_select %p609, %s39, 1
        %p611 = scmp.lt.s32.totalorder %s608, 3
        %s612 = scalar_select %p611, %s608, 3
        %s613 = smul.addr %s610, 4
        %s614 = sadd.s32 %s612, %s613
        %s615 = smul.addr %s614, 8
        %s616 = scalar_lea.vmem %s0, %s615
        %p617 = pneg %p76
        %p618 = pneg %p73
        %p619 = scmp.lt.s32.totalorder %s39, 1
        %s620 = scalar_select %p619, %s39, 1
        %p621 = scmp.lt.s32.totalorder %s40, 3
        %s622 = scalar_select %p621, %s40, 3
        %s623 = smul.addr %s620, 4
        %s624 = sadd.s32 %s622, %s623
        %s625 = smul.addr %s624, 8
        %s626 = scalar_lea.vmem %s1, %s625
        %p627 = pneg %p104
        %p628 = pneg %p101
        %s629 = sand.u32 %s125, 1
        %s630 = scalar_lea.sflag [#allocation5], %s629
        %s631 = sand.u32 %s125, 1
        %s632 = smul.addr %s631, 8
        %s633 = scalar_lea.vmem [#allocation4], %s632
        %p634 = pneg %p138
        %p635 = pneg %p135
        %p636 = pneg %p159
        %p637 = pneg %p156
        %p638 = pneg %p180
        %p639 = pneg %p177
        %p640 = pneg %p201
        %p641 = pneg %p198
        %p642 = pneg %p222
        %p643 = pneg %p219
        %p644 = pneg %p243
        %p645 = pneg %p240
        %p646 = pneg %p264
        %p647 = pneg %p261
        %p648 = pneg %p285
        %p649 = pneg %p282
        %p650 = pneg %p306
        %p651 = pneg %p303
        %p652 = pneg %p327
        %p653 = pneg %p324
        %p654 = pneg %p348
        %p655 = pneg %p345
        %p656 = pneg %p369
        %p657 = pneg %p366
        %p658 = pneg %p390
        %p659 = pneg %p387
        %p660 = pneg %p411
        %p661 = pneg %p408
        %p662 = pneg %p432
        %p663 = pneg %p429
        %p664 = pneg %p460
        %p665 = pneg %p457
        %s666 = sand.u32 %s447, 1
        %s667 = scalar_lea.sflag [#allocation6], %s666
        %s668 = sand.u32 %s447, 1
        %s669 = smul.addr %s668, 8
        %s670 = scalar_lea.vmem [#allocation9], %s669
        %s671 = ssub.s32 %s40, 1
        %p672 = scmp.gt.s32.totalorder %s671, 0
        %s673 = scalar_select %p672, %s671, 0
        %p674 = scmp.lt.s32.totalorder %s39, 1
        %s675 = scalar_select %p674, %s39, 1
        %p676 = scmp.lt.s32.totalorder %s673, 3
        %s677 = scalar_select %p676, %s673, 3
        %s678 = smul.addr %s675, 4
        %s679 = sadd.s32 %s677, %s678
        %s680 = smul.addr %s679, 8
        %s681 = scalar_lea.vmem %s0, %s680
        %s682 = ssub.s32 %s40, 1
        %p683 = scmp.gt.s32.totalorder %s682, 0
        %s684 = scalar_select %p683, %s682, 0
        %p685 = scmp.lt.s32.totalorder %s39, 1
        %s686 = scalar_select %p685, %s39, 1
        %p687 = scmp.lt.s32.totalorder %s40, 3
        %s688 = scalar_select %p687, %s40, 3
        %s689 = smul.addr %s686, 4
        %s690 = sadd.s32 %s688, %s689
        %s691 = smul.addr %s690, 8
        %s692 = scalar_lea.vmem %s1, %s691
        %s693 = sadd.s32 %s40, 1
        %p694 = scmp.lt.s32.totalorder %s693, 3
        %s695 = scalar_select %p694, %s693, 3
        %v697 = vld [vmem:[%s681 + $0x5] sm:$0x7]
        %vm698 = vcmask 256000
        %699 = vst.msk [vmem:[#allocation2] sm:$0x7] %vm698, %v697
        %v700 = vld [vmem:[%s692] sm:$0xff]
        %vm701 = vcmask 261120
        %702 = vst.msk [vmem:[#allocation2 + $0x3] sm:$0xff] %vm701, %v700
        %v703 = vld [vmem:[%s595] sm:$0xf]
        %vm704 = vcmask 257024
        %705 = vst.msk [vmem:[#allocation2 + $0xb] sm:$0xf] %vm704, %v703
        %v706 = vld [vmem:[#allocation2] sm:$0xff]
        %v707 = vld [vmem:[#allocation2 + $0x8] sm:$0x7f]
        %v708 = vsel %vm701, %v706, 0.0
        %709 = vadd.xlane.f32.xlu0 %v708
        %v710 = vpop.xlane.xlu0 %709
        %vm711 = vcmask 260096
        %v712 = vsel %vm711, %v707, 0.0
        %713 = vadd.xlane.f32.xlu0 %v712
        %v714 = vpop.xlane.xlu0 %713
        %v715 = vrcp.pop 32.0
        %v716 = vmul.f32 32.0, %v715
        %v717 = vsub.f32 1.0, %v716
        %v718 = vmul.f32 %v715, %v717
        %v719 = vadd.f32 %v715, %v718
        %vm720 = vweird.f32 %v715
        %v721 = vsel %vm720, %v715, %v719
        %v722 = vmul.f32 %v710, %v721
        %v723 = vmul.f32 %v714, %v721
        %v724 = vsub.f32 %v706, %v722
        %v725 = vsub.f32 %v707, %v723
        %v726 = vmul.f32 %v724, %v724
        %v727 = vmul.f32 %v725, %v725
        %v728 = vsel %vm701, %v726, 0.0
        %729 = vadd.xlane.f32.xlu0 %v728
        %v730 = vpop.xlane.xlu0 %729
        %v731 = vsel %vm711, %v727, 0.0
        %732 = vadd.xlane.f32.xlu0 %v731
        %v733 = vpop.xlane.xlu0 %732
        %v734 = vmul.f32 %v730, %v721
        %v735 = vmul.f32 %v733, %v721
        %v736 = vadd.f32 %v734, 1e-05
        %v737 = vadd.f32 %v735, 1e-05
        %v738 = vrsqrt.pop %v736
        %v739 = vmul.f32 %v738, %v736
        %v740 = vmul.f32 %v739, %v738
        %v741 = vmul.f32 0.5, %v740
        %v742 = vsub.f32 1.5, %v741
        %v743 = vmul.f32 %v738, %v742
        %vm744 = vweird.f32 %v736
        %vm745 = vweird.f32 %v738
        %vm746 = vmor %vm744, %vm745
        %v747 = vsel %vm746, %v738, %v743
        %v748 = vrsqrt.pop %v737
        %v749 = vmul.f32 %v748, %v737
        %v750 = vmul.f32 %v749, %v748
        %v751 = vmul.f32 0.5, %v750
        %v752 = vsub.f32 1.5, %v751
        %v753 = vmul.f32 %v748, %v752
        %vm754 = vweird.f32 %v737
        %vm755 = vweird.f32 %v748
        %vm756 = vmor %vm754, %vm755
        %v757 = vsel %vm756, %v748, %v753
        %v758 = vmul.f32 %v724, %v747
        %v759 = vmul.f32 %v725, %v757
        %v760 = vld [vmem:[%s3] sm:$0x1]
        %v762 = vperm.slane %v760, 0
        %v764 = vmul.f32 %v758, %v762
        %v765 = vmul.f32 %v759, %v762
        %v766 = vld [vmem:[%s4] sm:$0x1]
        %v768 = vperm.slane %v766, 0
        %v770 = vadd.f32 %v764, %v768
        %v771 = vadd.f32 %v765, %v768
        %v772 = vpack.c.bf16 %v771, %v770
        %v773 = vld [vmem:[%s5] sm:$0xf]
        %v774 = vld [vmem:[%s5 + $0x4] sm:$0xf]
        %v775 = vld [vmem:[%s5 + $0x8] sm:$0xf]
        %v776 = vld [vmem:[%s5 + $0xc] sm:$0xf]
        %v777 = vld [vmem:[%s7] sm:$0x1]
        %v779 = vperm.slane %v777, 0
        %v785 = vunpack.c.l.b16 %v773
        %v786 = vunpack.c.l.b16 %v774
        %v787 = vunpack.c.l.b16 %v775
        %v788 = vunpack.c.l.b16 %v776
        %v789 = vpack.c.b16 %v786, %v785
        %v790 = vpack.c.b16 %v788, %v787
        %v794 = vsel %vm701, %v772, 0
        %796 = vmatpush.bf16.msra.mxu0 0
        %797 = vmatpush.bf16.msra.mxu0 0
        %798 = vmatpush.bf16.msra.mxu0 0
        %799 = vmatpush.bf16.msra.mxu0 0
        %800 = vmatpush.bf16.msra.mxu0 0
        %801 = vmatpush.bf16.msra.mxu0 0
        %802 = vmatpush.bf16.msra.mxu0 %v790
        %803 = vmatpush.bf16.msra.mxu0 %v789
        %804 = vmatmul.bf16.gmra.mxu0 %v794
        %v805 = vpop.f32.mrf.mxu0
        %v806 = vadd.f32 %v779, %v805
        %v807 = vpop.f32.mrf.mxu0
        %v808 = vadd.f32 %v779, %v807
        %809 = vdwg.mxu0
        %v810 = vld [vmem:[%s6] sm:$0xf]
        %v811 = vld [vmem:[%s6 + $0x4] sm:$0xf]
        %v812 = vld [vmem:[%s6 + $0x8] sm:$0xf]
        %v813 = vld [vmem:[%s6 + $0xc] sm:$0xf]
        %v814 = vld [vmem:[%s8] sm:$0x1]
        %v816 = vperm.slane %v814, 0
        %v822 = vunpack.c.l.b16 %v810
        %v823 = vunpack.c.l.b16 %v811
        %v824 = vunpack.c.l.b16 %v812
        %v825 = vunpack.c.l.b16 %v813
        %v826 = vpack.c.b16 %v823, %v822
        %v827 = vpack.c.b16 %v825, %v824
        %830 = vmatpush.bf16.msra.mxu0 0
        %831 = vmatpush.bf16.msra.mxu0 0
        %832 = vmatpush.bf16.msra.mxu0 0
        %833 = vmatpush.bf16.msra.mxu0 0
        %834 = vmatpush.bf16.msra.mxu0 0
        %835 = vmatpush.bf16.msra.mxu0 0
        %836 = vmatpush.bf16.msra.mxu0 %v827
        %837 = vmatpush.bf16.msra.mxu0 %v826
        %838 = vmatmul.bf16.gmra.mxu0 %v794
        %v839 = vpop.f32.mrf.mxu0
        %v840 = vadd.f32 %v816, %v839
        %v841 = vpop.f32.mrf.mxu0
        %v842 = vadd.f32 %v816, %v841
        %843 = vdwg.mxu0
        %v844 = vxor.u32 %v840, 2147483648
        %v845 = vxor.u32 %v842, 2147483648
        %v846 = vmul.f32 %v844, 1.442695
        %v847 = vpow.pop %v846
        %v848 = vmul.f32 %v845, 1.442695
        %v849 = vpow.pop %v848
        %v850 = vadd.f32 %v847, 1.0
        %v851 = vadd.f32 %v849, 1.0
        %v852 = vrcp.pop %v850
        %v853 = vmul.f32 %v850, %v852
        %v854 = vsub.f32 1.0, %v853
        %v855 = vmul.f32 %v852, %v854
        %v856 = vadd.f32 %v852, %v855
        %vm857 = vweird.f32 %v850
        %vm858 = vweird.f32 %v852
        %vm859 = vmor %vm857, %vm858
        %v860 = vsel %vm859, %v852, %v856
        %v861 = vand.u32 2147483647, %v850
        %vm862 = vcmp.eq.f32.partialorder %v861, 8.507059e+37
        %v863 = vand.u32 %v850, 2147483648
        %v864 = vor.u32 1.1754944e-38, %v863
        %v865 = vsel %vm862, %v864, %v860
        %v866 = vmul.f32 1.0, %v865
        %v867 = vrcp.pop %v851
        %v868 = vmul.f32 %v851, %v867
        %v869 = vsub.f32 1.0, %v868
        %v870 = vmul.f32 %v867, %v869
        %v871 = vadd.f32 %v867, %v870
        %vm872 = vweird.f32 %v851
        %vm873 = vweird.f32 %v867
        %vm874 = vmor %vm872, %vm873
        %v875 = vsel %vm874, %v867, %v871
        %v876 = vand.u32 2147483647, %v851
        %vm877 = vcmp.eq.f32.partialorder %v876, 8.507059e+37
        %v878 = vand.u32 %v851, 2147483648
        %v879 = vor.u32 1.1754944e-38, %v878
        %v880 = vsel %vm877, %v879, %v875
        %v881 = vmul.f32 1.0, %v880
        %v882 = vmul.f32 %v806, %v866
        %v883 = vmul.f32 %v808, %v881
        %s884 = smul.u32 %s40, 8
        %s885 = ssub.s32 %s884, 3
        %v886 = vlaneseq
        %v887 = vshrl.u32 %v886, 7
        %v888 = vadd.s32 %v887, 8
        %v889 = vstv %s885
        %v890 = vadd.s32 %v889, %v887
        %v891 = vadd.s32 %v889, %v888
        %vm892 = vcmp.ge.s32.totalorder %v890, 0
        %vm893 = vcmp.ge.s32.totalorder %v891, 0
        %vm894 = vcmp.lt.s32.totalorder %v890, 32
        %vm895 = vcmp.lt.s32.totalorder %v891, 32
        %vm896 = vmand %vm892, %vm894
        %vm897 = vmand %vm893, %vm895
        %v898 = vsel %vm896, 1, 0
        %v899 = vsel %vm897, 1, 0
        %vm900 = vcmp.eq.s32.totalorder %v898, 1
        %vm901 = vcmp.eq.s32.totalorder %v899, 1
        %v902 = vsel %vm900, %v882, 0.0
        %v903 = vsel %vm901, %v883, 0.0
        %v904 = vpack.c.bf16 %v902, %v902
        %v905 = vpack.c.bf16 %v903, %v903
        %906 = vst.msk [vmem:[#allocation3] sm:$0xf] %vm704, %v904
        %vm907 = vsmask.f32 3328
        %vm908 = vsmask.f32 7440
        %vm909 = vmor %vm907, %vm908
        %v911 = vshrl.u32 %v904, 16
        %v913 = vrot.slane %v911, 4
        %v914 = vshll.u32 %v904, 16
        %v916 = vrot.slane %v914, 5
        %v917 = vor.u32 %v913, %v916
        %v918 = vrot.slane %v917, 4
        %v920 = vshll.u32 %v905, 16
        %v922 = vrot.slane %v920, 5
        %v923 = vsel %vm909, %v918, %v922
        %924 = vrot.lane.b32.xlu0 %v923, 32
        %v925 = vpop.permute.xlu0 %924
        %vm927 = vcmask 519424
        %928 = vst.msk [vmem:[#allocation3] sm:$0xf] %vm927, %v925
        %vm931 = vcmask 1042432
        %vm932 = vcmask 1046532
        %vm933 = vmor %vm931, %vm932
        %v934 = vrot.slane %v904, 5
        %v935 = vrot.slane %v934, 4
        %v936 = vrot.slane %v905, 5
        %v937 = vsel %vm933, %v935, %v936
        %938 = vrot.lane.b32.xlu0 %v937, 64
        %v939 = vpop.permute.xlu0 %938
        %vm941 = vcmask 781824
        %942 = vst.msk [vmem:[#allocation3] sm:$0xf] %vm941, %v939
        %vm943 = vsmask.f32 2304
        %vm944 = vsmask.f32 6416
        %vm945 = vmor %vm943, %vm944
        %v946 = vrot.slane %v911, 5
        %v947 = vrot.slane %v914, 6
        %v948 = vor.u32 %v946, %v947
        %v949 = vrot.slane %v948, 4
        %v950 = vshrl.u32 %v905, 16
        %v952 = vrot.slane %v950, 5
        %v953 = vrot.slane %v920, 6
        %v954 = vor.u32 %v952, %v953
        %v955 = vsel %vm945, %v949, %v954
        %956 = vrot.lane.b32.xlu0 %v955, 96
        %v957 = vpop.permute.xlu0 %956
        %vm959 = vcmask 1044224
        %960 = vst.msk [vmem:[#allocation3] sm:$0xf] %vm959, %v957
        %vm961 = vcmask 1041408
        %vm962 = vcmask 1045508
        %vm963 = vmor %vm961, %vm962
        %v964 = vrot.slane %v904, 6
        %v965 = vrot.slane %v964, 4
        %v966 = vrot.slane %v905, 6
        %v967 = vsel %vm963, %v965, %v966
        %969 = vst.msk [vmem:[#allocation3 + $0x4] sm:$0xf] %vm704, %v967
        %vm970 = vsmask.f32 1280
        %vm971 = vsmask.f32 5392
        %vm972 = vmor %vm970, %vm971
        %v973 = vrot.slane %v911, 6
        %v974 = vrot.slane %v914, 7
        %v975 = vor.u32 %v973, %v974
        %v976 = vrot.slane %v975, 4
        %v977 = vrot.slane %v950, 6
        %v978 = vrot.slane %v920, 7
        %v979 = vor.u32 %v977, %v978
        %v980 = vsel %vm972, %v976, %v979
        %981 = vrot.lane.b32.xlu0 %v980, 32
        %v982 = vpop.permute.xlu0 %981
        %984 = vst.msk [vmem:[#allocation3 + $0x4] sm:$0xf] %vm927, %v982
        %vm985 = vcmask 1040384
        %vm986 = vcmask 1044484
        %vm987 = vmor %vm985, %vm986
        %v988 = vrot.slane %v904, 7
        %v989 = vrot.slane %v988, 4
        %v990 = vrot.slane %v905, 7
        %v991 = vsel %vm987, %v989, %v990
        %992 = vrot.lane.b32.xlu0 %v991, 64
        %v993 = vpop.permute.xlu0 %992
        %995 = vst.msk [vmem:[#allocation3 + $0x4] sm:$0xf] %vm941, %v993
        %vm996 = vsmask.f32 256
        %vm997 = vsmask.f32 4368
        %vm998 = vmor %vm996, %vm997
        %v999 = vrot.slane %v911, 7
        %v1000 = vrot.slane %v999, 4
        %v1001 = vrot.slane %v950, 7
        %v1002 = vor.u32 %v1001, %v920
        %v1003 = vsel %vm998, %v1000, %v1002
        %1004 = vrot.lane.b32.xlu0 %v1003, 96
        %v1005 = vpop.permute.xlu0 %1004
        %1007 = vst.msk [vmem:[#allocation3 + $0x4] sm:$0xf] %vm959, %v1005
        %v1008 = vld [vmem:[#allocation3] sm:$0xff]
        %v1009 = vld [vmem:[%s9] sm:$0xf]
        %v1010 = vld [vmem:[%s9 + $0x4] sm:$0xf]
        %v1011 = vld [vmem:[%s9 + $0x8] sm:$0xf]
        %v1012 = vld [vmem:[%s9 + $0xc] sm:$0xf]
        %v1013 = vld [vmem:[%s9 + $0x10] sm:$0xf]
        %v1014 = vld [vmem:[%s9 + $0x14] sm:$0xf]
        %v1015 = vld [vmem:[%s9 + $0x18] sm:$0xf]
        %v1016 = vld [vmem:[%s9 + $0x1c] sm:$0xf]
        %v1017 = vld [vmem:[%s9 + $0x20] sm:$0xf]
        %v1018 = vld [vmem:[%s9 + $0x24] sm:$0xf]
        %v1019 = vld [vmem:[%s9 + $0x28] sm:$0xf]
        %v1020 = vld [vmem:[%s9 + $0x2c] sm:$0xf]
        %v1021 = vld [vmem:[%s9 + $0x30] sm:$0xf]
        %v1022 = vld [vmem:[%s9 + $0x34] sm:$0xf]
        %v1023 = vld [vmem:[%s9 + $0x38] sm:$0xf]
        %v1024 = vld [vmem:[%s9 + $0x3c] sm:$0xf]
        %v1025 = vld [vmem:[%s9 + $0x40] sm:$0xf]
        %v1026 = vld [vmem:[%s9 + $0x44] sm:$0xf]
        %v1027 = vld [vmem:[%s9 + $0x48] sm:$0xf]
        %v1028 = vld [vmem:[%s9 + $0x4c] sm:$0xf]
        %v1029 = vld [vmem:[%s9 + $0x50] sm:$0xf]
        %v1030 = vld [vmem:[%s9 + $0x54] sm:$0xf]
        %v1031 = vld [vmem:[%s9 + $0x58] sm:$0xf]
        %v1032 = vld [vmem:[%s9 + $0x5c] sm:$0xf]
        %v1033 = vld [vmem:[%s9 + $0x60] sm:$0xf]
        %v1034 = vld [vmem:[%s9 + $0x64] sm:$0xf]
        %v1035 = vld [vmem:[%s9 + $0x68] sm:$0xf]
        %v1036 = vld [vmem:[%s9 + $0x6c] sm:$0xf]
        %v1037 = vld [vmem:[%s9 + $0x70] sm:$0xf]
        %v1038 = vld [vmem:[%s9 + $0x74] sm:$0xf]
        %v1039 = vld [vmem:[%s9 + $0x78] sm:$0xf]
        %v1040 = vld [vmem:[%s9 + $0x7c] sm:$0xf]
        %v1041 = vld [vmem:[%s10] sm:$0x1]
        %v1043 = vperm.slane %v1041, 0
        %v1046 = vunpack.c.l.b16 %v1008
        %v1047 = vunpack.c.h.b16 %v1008
        %v1048 = vpack.c.b16 %v1046, %v1046
        %v1049 = vpack.c.b16 %v1047, %v1047
        %v1084 = vunpack.c.l.b16 %v1009
        %v1085 = vunpack.c.l.b16 %v1010
        %v1086 = vunpack.c.l.b16 %v1011
        %v1087 = vunpack.c.l.b16 %v1012
        %v1088 = vunpack.c.l.b16 %v1013
        %v1089 = vunpack.c.l.b16 %v1014
        %v1090 = vunpack.c.l.b16 %v1015
        %v1091 = vunpack.c.l.b16 %v1016
        %v1092 = vunpack.c.l.b16 %v1017
        %v1093 = vunpack.c.l.b16 %v1018
        %v1094 = vunpack.c.l.b16 %v1019
        %v1095 = vunpack.c.l.b16 %v1020
        %v1096 = vunpack.c.l.b16 %v1021
        %v1097 = vunpack.c.l.b16 %v1022
        %v1098 = vunpack.c.l.b16 %v1023
        %v1099 = vunpack.c.l.b16 %v1024
        %v1100 = vunpack.c.l.b16 %v1025
        %v1101 = vunpack.c.l.b16 %v1026
        %v1102 = vunpack.c.l.b16 %v1027
        %v1103 = vunpack.c.l.b16 %v1028
        %v1104 = vunpack.c.l.b16 %v1029
        %v1105 = vunpack.c.l.b16 %v1030
        %v1106 = vunpack.c.l.b16 %v1031
        %v1107 = vunpack.c.l.b16 %v1032
        %v1108 = vunpack.c.l.b16 %v1033
        %v1109 = vunpack.c.l.b16 %v1034
        %v1110 = vunpack.c.l.b16 %v1035
        %v1111 = vunpack.c.l.b16 %v1036
        %v1112 = vunpack.c.l.b16 %v1037
        %v1113 = vunpack.c.l.b16 %v1038
        %v1114 = vunpack.c.l.b16 %v1039
        %v1115 = vunpack.c.l.b16 %v1040
        %v1116 = vpack.c.b16 %v1085, %v1084
        %v1117 = vpack.c.b16 %v1087, %v1086
        %v1118 = vpack.c.b16 %v1089, %v1088
        %v1119 = vpack.c.b16 %v1091, %v1090
        %v1120 = vpack.c.b16 %v1093, %v1092
        %v1121 = vpack.c.b16 %v1095, %v1094
        %v1122 = vpack.c.b16 %v1097, %v1096
        %v1123 = vpack.c.b16 %v1099, %v1098
        %v1124 = vpack.c.b16 %v1101, %v1100
        %v1125 = vpack.c.b16 %v1103, %v1102
        %v1126 = vpack.c.b16 %v1105, %v1104
        %v1127 = vpack.c.b16 %v1107, %v1106
        %v1128 = vpack.c.b16 %v1109, %v1108
        %v1129 = vpack.c.b16 %v1111, %v1110
        %v1130 = vpack.c.b16 %v1113, %v1112
        %v1131 = vpack.c.b16 %v1115, %v1114
        %1148 = vmatpush.bf16.msra.mxu0 %v1123
        %1149 = vmatpush.bf16.msra.mxu0 %v1122
        %1150 = vmatpush.bf16.msra.mxu0 %v1121
        %1151 = vmatpush.bf16.msra.mxu0 %v1120
        %1152 = vmatpush.bf16.msra.mxu0 %v1119
        %1153 = vmatpush.bf16.msra.mxu0 %v1118
        %1154 = vmatpush.bf16.msra.mxu0 %v1117
        %1155 = vmatpush.bf16.msra.mxu0 %v1116
        %1156 = vmatmul.bf16.gmra.mxu0 %v1048
        %v1157 = vpop.f32.mrf.mxu0
        %v1158 = vadd.f32 %v1043, %v1157
        %v1159 = vpop.f32.mrf.mxu0
        %1160 = vdwg.mxu0
        %1161 = vmatpush.bf16.msra.mxu0 %v1131
        %1162 = vmatpush.bf16.msra.mxu0 %v1130
        %1163 = vmatpush.bf16.msra.mxu0 %v1129
        %1164 = vmatpush.bf16.msra.mxu0 %v1128
        %1165 = vmatpush.bf16.msra.mxu0 %v1127
        %1166 = vmatpush.bf16.msra.mxu0 %v1126
        %1167 = vmatpush.bf16.msra.mxu0 %v1125
        %1168 = vmatpush.bf16.msra.mxu0 %v1124
        %1169 = vmatmul.bf16.gmra.mxu0 %v1049
        %v1170 = vpop.f32.mrf.mxu0
        %v1171 = vadd.f32 %v1158, %v1170
        %v1172 = vpop.f32.mrf.mxu0
        %1173 = vdwg.mxu0
        %v1174 = vld [vmem:[%s13] sm:$0x1]
        %v1176 = vperm.slane %v1174, 0
        %v1178 = vsub.f32 %v1171, %v1176
        %v1179 = vld [vmem:[%s14] sm:$0x1]
        %v1180 = vadd.f32 %v1179, 1e-05
        %v1181 = vrsqrt.pop %v1180
        %v1182 = vmul.f32 %v1181, %v1180
        %v1183 = vmul.f32 %v1182, %v1181
        %v1184 = vmul.f32 0.5, %v1183
        %v1185 = vsub.f32 1.5, %v1184
        %v1186 = vmul.f32 %v1181, %v1185
        %vm1187 = vweird.f32 %v1180
        %vm1188 = vweird.f32 %v1181
        %vm1189 = vmor %vm1187, %vm1188
        %v1190 = vsel %vm1189, %v1181, %v1186
        %v1192 = vperm.slane %v1190, 0
        %v1194 = vmul.f32 %v1178, %v1192
        %v1195 = vld [vmem:[%s11] sm:$0x1]
        %v1197 = vperm.slane %v1195, 0
        %v1199 = vmul.f32 %v1194, %v1197
        %v1200 = vld [vmem:[%s12] sm:$0x1]
        %v1202 = vperm.slane %v1200, 0
        %v1204 = vadd.f32 %v1199, %v1202
        %v1205 = vxor.u32 %v1204, 2147483648
        %v1206 = vmul.f32 %v1205, 1.442695
        %v1207 = vpow.pop %v1206
        %v1208 = vadd.f32 %v1207, 1.0
        %v1209 = vrcp.pop %v1208
        %v1210 = vmul.f32 %v1208, %v1209
        %v1211 = vsub.f32 1.0, %v1210
        %v1212 = vmul.f32 %v1209, %v1211
        %v1213 = vadd.f32 %v1209, %v1212
        %vm1214 = vweird.f32 %v1208
        %vm1215 = vweird.f32 %v1209
        %vm1216 = vmor %vm1214, %vm1215
        %v1217 = vsel %vm1216, %v1209, %v1213
        %v1218 = vand.u32 2147483647, %v1208
        %vm1219 = vcmp.eq.f32.partialorder %v1218, 8.507059e+37
        %v1220 = vand.u32 %v1208, 2147483648
        %v1221 = vor.u32 1.1754944e-38, %v1220
        %v1222 = vsel %vm1219, %v1221, %v1217
        %v1223 = vmul.f32 1.0, %v1222
        %v1224 = vmul.f32 %v1204, %v1223
        %v1225 = vpack.c.bf16 %v1224, %v1224
        %v1226 = vld [vmem:[#allocation7] sm:$0xf]
        %v1227 = vld [vmem:[#allocation7 + $0x4] sm:$0xf]
        %v1228 = vld [vmem:[#allocation7 + $0x8] sm:$0xf]
        %v1229 = vld [vmem:[#allocation7 + $0xc] sm:$0xf]
        %v1230 = vld [vmem:[%s16] sm:$0x1]
        %v1232 = vperm.slane %v1230, 0
        %v1238 = vunpack.c.l.b16 %v1226
        %v1239 = vunpack.c.l.b16 %v1227
        %v1240 = vunpack.c.l.b16 %v1228
        %v1241 = vunpack.c.l.b16 %v1229
        %v1242 = vpack.c.b16 %v1239, %v1238
        %v1243 = vpack.c.b16 %v1241, %v1240
        %v1247 = vsel %vm701, %v1225, 0
        %1249 = vmatpush.bf16.msra.mxu0 0
        %1250 = vmatpush.bf16.msra.mxu0 0
        %1251 = vmatpush.bf16.msra.mxu0 0
        %1252 = vmatpush.bf16.msra.mxu0 0
        %1253 = vmatpush.bf16.msra.mxu0 0
        %1254 = vmatpush.bf16.msra.mxu0 0
        %1255 = vmatpush.bf16.msra.mxu0 %v1243
        %1256 = vmatpush.bf16.msra.mxu0 %v1242
        %1257 = vmatmul.bf16.gmra.mxu0 %v1247
        %v1258 = vpop.f32.mrf.mxu0
        %v1259 = vadd.f32 %v1232, %v1258
        %v1260 = vpop.f32.mrf.mxu0
        %1261 = vdwg.mxu0
        %v1262 = vld [vmem:[%s692] sm:$0xff]
        %v1263 = vadd.f32 %v1262, %v1259
        %1264 = vst.msk [vmem:[%s670] sm:$0xff] %vm701, %v1263
        %s1265 = sand.u32 %s447, 1
        %s1266 = scalar_lea.sflag [#allocation6], %s1265
        %s1267 = sand.u32 %s447, 1
        %s1268 = smul.addr %s1267, 8
        %s1269 = scalar_lea.vmem [#allocation9], %s1268
        // Predicated region
        $region97: #{tpu_custom_call.1} parent=87 // pred_check
          %p1270 = pneg %p457
        $region98: #{tpu_custom_call.1} parent=87 // pred_check_branch
          %1272 = sbr.rel (%p1270) target = $region100
        $region99: #{tpu_custom_call.1} parent=87 // pred_region
          %1274 = vsyncadd %s1266, 0
          %s1275 = smul.addr %s39, 4
          %s1276 = sadd.s32 %s40, %s1275
          %s1277 = smul.addr %s1276, 8
          %s1278 = scalar_lea.hbm %s17, %s1277
          %s1280 = sshll.u32 %s1269, 4
          %s1281 = int_to_ptr.vmem [resolvable:$true] %s1280
          %s1282 = sshll.u32 %s1278, 4
          %s1283 = int_to_ptr.hbm [resolvable:$true] %s1282
          %1285 = dma.vmem_to_hbm [thread:$0]  %s1281, 128, %s1283, %s1266
        $region100: #{tpu_custom_call.1} parent=87 // pred_fallthru
          _
      $region88: #{tpu_custom_call.1} parent=5 // pred_fallthru
        _
      %p1286 = scmp.le.s32.totalorder 2, %s30
      // Predicated region
      $region101: #{tpu_custom_call.1} parent=5 // pred_check
        %p1287 = pneg %p1286
      $region102: #{tpu_custom_call.1} parent=5 // pred_check_branch
        %1289 = sbr.rel (%p1287) target = $region104
      $region103: #{tpu_custom_call.1} parent=5 // pred_region
        %s1290 = ssub.s32 %s30, 2
        // Predicated region
        $region105: #{tpu_custom_call.1} parent=103 // pred_check
          %p1291 = pneg %p463
        $region106: #{tpu_custom_call.1} parent=103 // pred_check_branch
          %1293 = sbr.rel (%p1291) target = $region108
        $region107: #{tpu_custom_call.1} parent=103 // pred_region
          %s1294 = sand.u32 %s448, 1
          %s1295 = scalar_lea.sflag [#allocation6], %s1294
          %s1296 = sand.u32 %s448, 1
          %s1297 = smul.addr %s1296, 8
          %s1298 = scalar_lea.vmem [#allocation9], %s1297
          %1300 = dma.done %s1295, 128
        $region108: #{tpu_custom_call.1} parent=103 // pred_fallthru
          _
      $region104: #{tpu_custom_call.1} parent=5 // pred_fallthru
        _
    $region6: #{tpu_custom_call.1} parent=1 // loop_footer
      %s34 = sadd.s32 1, %s30
    $region7: #{tpu_custom_call.1} parent=1 // loop_footer_branch
      %29 = sbr.rel target = $region3
    $region8: #{tpu_custom_call.1} parent=1 // loop_exit
      _
    %1301 = vsyncpa [#allocation5], 1
    %s1302 = scalar_lea.sflag [#allocation5], 1
    %1303 = vsyncpa %s1302, 1
    %1304 = vsyncpa [#allocation8], 1
    %1305 = vsyncpa [#allocation6], 1
    %s1306 = scalar_lea.sflag [#allocation6], 1
    %1307 = vsyncpa %s1306, 1

// kernel: tpu_custom_call.1
$region0: #{tpu_custom_call.1}
  #allocation0 [shape = 'u32[]', space=smem, size = 0x4, offset = 0x4, fixed_abs, tag = 'smem constant byte address 0x4 - core index']
  #allocation1 [shape = 'u32[72,128]{1,0:T(1,128)}', space=vmem, size = 0x9000, scoped, tag = 'internal scratch']
  #allocation2 [shape = 'f32[15,32]{1,0:T(8,128)}', space=vmem, size = 0x2000, scoped, tag = 'scratch operand']
  #allocation3 [shape = 'bf16[8,256]{1,0:T(8,128)(2,1)}', space=vmem, size = 0x1000, scoped, tag = 'scratch operand']
  %s0 = inlined_call_operand.vmem [shape: f32[2,32,32], index: 0, kind: input, shape index: {}]
  %s1 = inlined_call_operand.vmem [shape: f32[2,32,32], index: 1, kind: input, shape index: {}]
  %s2 = inlined_call_operand.hbm [shape: f32[2,32,32], index: 2, kind: input, shape index: {}]
  %s3 = inlined_call_operand.vmem [shape: f32[1,32], index: 3, kind: input, shape index: {}]
  %s4 = inlined_call_operand.vmem [shape: f32[1,32], index: 4, kind: input, shape index: {}]
  %s5 = inlined_call_operand.vmem [shape: bf16[32,32], index: 5, kind: input, shape index: {}]
  %s6 = inlined_call_operand.vmem [shape: bf16[32,32], index: 6, kind: input, shape index: {}]
  %s7 = inlined_call_operand.vmem [shape: f32[1,32], index: 7, kind: input, shape index: {}]
  %s8 = inlined_call_operand.vmem [shape: f32[1,32], index: 8, kind: input, shape index: {}]
  %s9 = inlined_call_operand.vmem [shape: bf16[256,32], index: 9, kind: input, shape index: {}]
  %s10 = inlined_call_operand.vmem [shape: f32[1,32], index: 10, kind: input, shape index: {}]
  %s11 = inlined_call_operand.vmem [shape: f32[1,32], index: 11, kind: input, shape index: {}]
  %s12 = inlined_call_operand.vmem [shape: f32[1,32], index: 12, kind: input, shape index: {}]
  %s13 = inlined_call_operand.vmem [shape: f32[1,32], index: 13, kind: input, shape index: {}]
  %s14 = inlined_call_operand.vmem [shape: f32[1,32], index: 14, kind: input, shape index: {}]
  %s15 = inlined_call_operand.hbm [shape: bf16[32,32], index: 15, kind: input, shape index: {}]
  %s16 = inlined_call_operand.vmem [shape: f32[1,32], index: 16, kind: input, shape index: {}]
  %s17 = inlined_call_operand.hbm [shape: f32[2,32,32], index: 17, kind: output, shape index: {}]
  %s18 = sld [smem:[#allocation0]]
  $region109: #{tpu_custom_call.1} parent=0
    _
  %s20 = ssub.s32 1, %s18
  %s21 = scalar_select 0, %s20, %s18
  $region1: #{tpu_custom_call.1} parent=0
    #allocation4 [shape = 'u8[8192]{0}', space=vmem, size = 0x2000, scoped, tag = 'input window, operand 2']
    #allocation5 [shape = 's32[2]{0}', space=sflag, size = 0x8, scoped, tag = 'scoped memory for tpu_custom_call.1']
    #allocation6 [shape = 's32[2]{0}', space=sflag, size = 0x8, scoped, tag = 'scoped memory for tpu_custom_call.1']
    #allocation7 [shape = 'u8[8192]{0}', space=vmem, size = 0x2000, scoped, tag = 'input window, operand 15, single buffered']
    #allocation8 [shape = 's32[1]{0}', space=sflag, size = 0x4, scoped, tag = 'scoped memory for tpu_custom_call.1']
    #allocation9 [shape = 'u8[8192]{0}', space=vmem, size = 0x2000, scoped, tag = 'output window, operand 0']
    %22 = vsyncpa [#allocation5], 0
    %s23 = scalar_lea.sflag [#allocation5], 1
    %24 = vsyncpa %s23, 0
    %25 = vsyncpa [#allocation8], 0
    %26 = vsyncpa [#allocation6], 0
    %s27 = scalar_lea.sflag [#allocation6], 1
    %28 = vsyncpa %s27, 0
    loop: start=0, step=1, limit=10
    $region2: #{tpu_custom_call.1} parent=1 // loop_pre_header
      _
    $region3: #{tpu_custom_call.1} parent=1 // loop_header
      %s30 = sphi 0, %s34
      %p31 = scmp.ge.s32.totalorder %s30, 10
      %s37 = sphi 0, %s49
      %s38 = sphi 0, %s45
      %s39 = sphi 0, %s37
      %s40 = sphi 0, %s38
      %s41 = sphi 0, %s39
      %s42 = sphi 0, %s40
      %s60 = sphi 0, %s62
      %s63 = sphi 0, %s60
      %s64 = sphi 0, %s63
      %s80 = sphi 0, %s64
      %s88 = sphi 0, %s90
      %s91 = sphi 0, %s88
      %s92 = sphi 0, %s91
      %s108 = sphi 0, %s92
      %s122 = sphi 0, %s124
      %s125 = sphi 0, %s122
      %s126 = sphi 0, %s125
      %s142 = sphi 0, %s126
      %s146 = sphi 0, %s146
      %s148 = sphi 0, %s146
      %s149 = sphi 0, %s148
      %s163 = sphi 0, %s149
      %s167 = sphi 0, %s167
      %s169 = sphi 0, %s167
      %s170 = sphi 0, %s169
      %s184 = sphi 0, %s170
      %s188 = sphi 0, %s188
      %s190 = sphi 0, %s188
      %s191 = sphi 0, %s190
      %s205 = sphi 0, %s191
      %s209 = sphi 0, %s209
      %s211 = sphi 0, %s209
      %s212 = sphi 0, %s211
      %s226 = sphi 0, %s212
      %s230 = sphi 0, %s230
      %s232 = sphi 0, %s230
      %s233 = sphi 0, %s232
      %s247 = sphi 0, %s233
      %s251 = sphi 0, %s251
      %s253 = sphi 0, %s251
      %s254 = sphi 0, %s253
      %s268 = sphi 0, %s254
      %s272 = sphi 0, %s272
      %s274 = sphi 0, %s272
      %s275 = sphi 0, %s274
      %s289 = sphi 0, %s275
      %s293 = sphi 0, %s293
      %s295 = sphi 0, %s293
      %s296 = sphi 0, %s295
      %s310 = sphi 0, %s296
      %s314 = sphi 0, %s314
      %s316 = sphi 0, %s314
      %s317 = sphi 0, %s316
      %s331 = sphi 0, %s317
      %s335 = sphi 0, %s335
      %s337 = sphi 0, %s335
      %s338 = sphi 0, %s337
      %s352 = sphi 0, %s338
      %s356 = sphi 0, %s356
      %s358 = sphi 0, %s356
      %s359 = sphi 0, %s358
      %s373 = sphi 0, %s359
      %s377 = sphi 0, %s377
      %s379 = sphi 0, %s377
      %s380 = sphi 0, %s379
      %s394 = sphi 0, %s380
      %s398 = sphi 0, %s398
      %s400 = sphi 0, %s398
      %s401 = sphi 0, %s400
      %s415 = sphi 0, %s401
      %s419 = sphi 0, %s419
      %s421 = sphi 0, %s419
      %s422 = sphi 0, %s421
      %s436 = sphi 0, %s422
      %s444 = sphi 0, %s446
      %s447 = sphi 0, %s444
      %s448 = sphi 0, %s447
      %s464 = sphi 0, %s448
    $region4: #{tpu_custom_call.1} parent=1 // loop_header_branch
      %33 = sbr.rel (%p31) target = $region8
    $region5: #{tpu_custom_call.1} parent=1 // loop_body
      %s35 = ssub.s32 %s30, 1
      %s36 = ssub.s32 %s30, 2
      %s43 = sadd.s32 1, %s38
      %p44 = scmp.ge.s32.totalorder %s43, 4
      %s45 = scalar_select %p44, 0, %s43
      %s46 = sadd.s32 1, %s37
      %s47 = scalar_select %p44, %s46, %s37
      %p48 = scmp.ge.s32.totalorder %s47, 2
      %s49 = scalar_select %p48, 0, %s47
      %s50 = ssub.s32 %s38, 1
      %p51 = scmp.gt.s32.totalorder %s50, 0
      %s52 = scalar_select %p51, %s50, 0
      %s53 = ssub.s32 %s45, 1
      %p54 = scmp.gt.s32.totalorder %s53, 0
      %s55 = scalar_select %p54, %s53, 0
      %s56 = ssub.s32 %s37, %s49
      %s57 = ssub.s32 %s52, %s55
      %s58 = sor.u32 %s56, %s57
      %p59 = scmp.eq.s32.totalorder %s58, 0
      %s61 = sadd.s32 %s60, 1
      %s62 = scalar_select %p59, %s60, %s61
      %p65 = pneg %p59
      %p66 = scmp.eq.s32.totalorder %s30, 7
      %p67 = por %p65, %p66
      %p68 = scmp.ne.s32.totalorder %s60, %s63
      %p69 = scmp.eq.s32.totalorder %s30, 0
      %p70 = por %p68, %p69
      %p71 = scmp.ne.s32.totalorder %s60, %s63
      %p72 = scmp.eq.s32.totalorder %s35, 7
      %p73 = por %p71, %p72
      %p74 = scmp.ne.s32.totalorder %s63, %s64
      %p75 = scmp.eq.s32.totalorder %s35, 0
      %p76 = por %p74, %p75
      %p77 = scmp.ne.s32.totalorder %s63, %s64
      %p78 = scmp.eq.s32.totalorder %s36, 7
      %p79 = por %p77, %p78
      %p81 = scmp.ne.s32.totalorder %s64, %s80
      %p82 = scmp.eq.s32.totalorder %s36, 0
      %p83 = por %p81, %p82
      %s84 = ssub.s32 %s37, %s49
      %s85 = ssub.s32 %s38, %s45
      %s86 = sor.u32 %s84, %s85
      %p87 = scmp.eq.s32.totalorder %s86, 0
      %s89 = sadd.s32 %s88, 1
      %s90 = scalar_select %p87, %s88, %s89
      %p93 = pneg %p87
      %p94 = scmp.eq.s32.totalorder %s30, 7
      %p95 = por %p93, %p94
      %p96 = scmp.ne.s32.totalorder %s88, %s91
      %p97 = scmp.eq.s32.totalorder %s30, 0
      %p98 = por %p96, %p97
      %p99 = scmp.ne.s32.totalorder %s88, %s91
      %p100 = scmp.eq.s32.totalorder %s35, 7
      %p101 = por %p99, %p100
      %p102 = scmp.ne.s32.totalorder %s91, %s92
      %p103 = scmp.eq.s32.totalorder %s35, 0
      %p104 = por %p102, %p103
      %p105 = scmp.ne.s32.totalorder %s91, %s92
      %p106 = scmp.eq.s32.totalorder %s36, 7
      %p107 = por %p105, %p106
      %p109 = scmp.ne.s32.totalorder %s92, %s108
      %p110 = scmp.eq.s32.totalorder %s36, 0
      %p111 = por %p109, %p110
      %s112 = sadd.s32 %s38, 1
      %p113 = scmp.lt.s32.totalorder %s112, 3
      %s114 = scalar_select %p113, %s112, 3
      %s115 = sadd.s32 %s45, 1
      %p116 = scmp.lt.s32.totalorder %s115, 3
      %s117 = scalar_select %p116, %s115, 3
      %s118 = ssub.s32 %s37, %s49
      %s119 = ssub.s32 %s114, %s117
      %s120 = sor.u32 %s118, %s119
      %p121 = scmp.eq.s32.totalorder %s120, 0
      %s123 = sadd.s32 %s122, 1
      %s124 = scalar_select %p121, %s122, %s123
      %p127 = pneg %p121
      %p128 = scmp.eq.s32.totalorder %s30, 7
      %p129 = por %p127, %p128
      %p130 = scmp.ne.s32.totalorder %s122, %s125
      %p131 = scmp.eq.s32.totalorder %s30, 0
      %p132 = por %p130, %p131
      %p133 = scmp.ne.s32.totalorder %s122, %s125
      %p134 = scmp.eq.s32.totalorder %s35, 7
      %p135 = por %p133, %p134
      %p136 = scmp.ne.s32.totalorder %s125, %s126
      %p137 = scmp.eq.s32.totalorder %s35, 0
      %p138 = por %p136, %p137
      %p139 = scmp.ne.s32.totalorder %s125, %s126
      %p140 = scmp.eq.s32.totalorder %s36, 7
      %p141 = por %p139, %p140
      %p143 = scmp.ne.s32.totalorder %s126, %s142
      %p144 = scmp.eq.s32.totalorder %s36, 0
      %p145 = por %p143, %p144
      %s147 = sadd.s32 %s146, 1
      %p150 = scmp.eq.s32.totalorder %s30, 7
      %p151 = scmp.ne.s32.totalorder %s146, %s148
      %p152 = scmp.eq.s32.totalorder %s30, 0
      %p153 = por %p151, %p152
      %p154 = scmp.ne.s32.totalorder %s146, %s148
      %p155 = scmp.eq.s32.totalorder %s35, 7
      %p156 = por %p154, %p155
      %p157 = scmp.ne.s32.totalorder %s148, %s149
      %p158 = scmp.eq.s32.totalorder %s35, 0
      %p159 = por %p157, %p158
      %p160 = scmp.ne.s32.totalorder %s148, %s149
      %p161 = scmp.eq.s32.totalorder %s36, 7
      %p162 = por %p160, %p161
      %p164 = scmp.ne.s32.totalorder %s149, %s163
      %p165 = scmp.eq.s32.totalorder %s36, 0
      %p166 = por %p164, %p165
      %s168 = sadd.s32 %s167, 1
      %p171 = scmp.eq.s32.totalorder %s30, 7
      %p172 = scmp.ne.s32.totalorder %s167, %s169
      %p173 = scmp.eq.s32.totalorder %s30, 0
      %p174 = por %p172, %p173
      %p175 = scmp.ne.s32.totalorder %s167, %s169
      %p176 = scmp.eq.s32.totalorder %s35, 7
      %p177 = por %p175, %p176
      %p178 = scmp.ne.s32.totalorder %s169, %s170
      %p179 = scmp.eq.s32.totalorder %s35, 0
      %p180 = por %p178, %p179
      %p181 = scmp.ne.s32.totalorder %s169, %s170
      %p182 = scmp.eq.s32.totalorder %s36, 7
      %p183 = por %p181, %p182
      %p185 = scmp.ne.s32.totalorder %s170, %s184
      %p186 = scmp.eq.s32.totalorder %s36, 0
      %p187 = por %p185, %p186
      %s189 = sadd.s32 %s188, 1
      %p192 = scmp.eq.s32.totalorder %s30, 7
      %p193 = scmp.ne.s32.totalorder %s188, %s190
      %p194 = scmp.eq.s32.totalorder %s30, 0
      %p195 = por %p193, %p194
      %p196 = scmp.ne.s32.totalorder %s188, %s190
      %p197 = scmp.eq.s32.totalorder %s35, 7
      %p198 = por %p196, %p197
      %p199 = scmp.ne.s32.totalorder %s190, %s191
      %p200 = scmp.eq.s32.totalorder %s35, 0
      %p201 = por %p199, %p200
      %p202 = scmp.ne.s32.totalorder %s190, %s191
      %p203 = scmp.eq.s32.totalorder %s36, 7
      %p204 = por %p202, %p203
      %p206 = scmp.ne.s32.totalorder %s191, %s205
      %p207 = scmp.eq.s32.totalorder %s36, 0
      %p208 = por %p206, %p207
      %s210 = sadd.s32 %s209, 1
      %p213 = scmp.eq.s32.totalorder %s30, 7
      %p214 = scmp.ne.s32.totalorder %s209, %s211
      %p215 = scmp.eq.s32.totalorder %s30, 0
      %p216 = por %p214, %p215
      %p217 = scmp.ne.s32.totalorder %s209, %s211
      %p218 = scmp.eq.s32.totalorder %s35, 7
      %p219 = por %p217, %p218
      %p220 = scmp.ne.s32.totalorder %s211, %s212
      %p221 = scmp.eq.s32.totalorder %s35, 0
      %p222 = por %p220, %p221
      %p223 = scmp.ne.s32.totalorder %s211, %s212
      %p224 = scmp.eq.s32.totalorder %s36, 7
      %p225 = por %p223, %p224
      %p227 = scmp.ne.s32.totalorder %s212, %s226
      %p228 = scmp.eq.s32.totalorder %s36, 0
      %p229 = por %p227, %p228
      %s231 = sadd.s32 %s230, 1
      %p234 = scmp.eq.s32.totalorder %s30, 7
      %p235 = scmp.ne.s32.totalorder %s230, %s232
      %p236 = scmp.eq.s32.totalorder %s30, 0
      %p237 = por %p235, %p236
      %p238 = scmp.ne.s32.totalorder %s230, %s232
      %p239 = scmp.eq.s32.totalorder %s35, 7
      %p240 = por %p238, %p239
      %p241 = scmp.ne.s32.totalorder %s232, %s233
      %p242 = scmp.eq.s32.totalorder %s35, 0
      %p243 = por %p241, %p242
      %p244 = scmp.ne.s32.totalorder %s232, %s233
      %p245 = scmp.eq.s32.totalorder %s36, 7
      %p246 = por %p244, %p245
      %p248 = scmp.ne.s32.totalorder %s233, %s247
      %p249 = scmp.eq.s32.totalorder %s36, 0
      %p250 = por %p248, %p249
      %s252 = sadd.s32 %s251, 1
      %p255 = scmp.eq.s32.totalorder %s30, 7
      %p256 = scmp.ne.s32.totalorder %s251, %s253
      %p257 = scmp.eq.s32.totalorder %s30, 0
      %p258 = por %p256, %p257
      %p259 = scmp.ne.s32.totalorder %s251, %s253
      %p260 = scmp.eq.s32.totalorder %s35, 7
      %p261 = por %p259, %p260
      %p262 = scmp.ne.s32.totalorder %s253, %s254
      %p263 = scmp.eq.s32.totalorder %s35, 0
      %p264 = por %p262, %p263
      %p265 = scmp.ne.s32.totalorder %s253, %s254
      %p266 = scmp.eq.s32.totalorder %s36, 7
      %p267 = por %p265, %p266
      %p269 = scmp.ne.s32.totalorder %s254, %s268
      %p270 = scmp.eq.s32.totalorder %s36, 0
      %p271 = por %p269, %p270
      %s273 = sadd.s32 %s272, 1
      %p276 = scmp.eq.s32.totalorder %s30, 7
      %p277 = scmp.ne.s32.totalorder %s272, %s274
      %p278 = scmp.eq.s32.totalorder %s30, 0
      %p279 = por %p277, %p278
      %p280 = scmp.ne.s32.totalorder %s272, %s274
      %p281 = scmp.eq.s32.totalorder %s35, 7
      %p282 = por %p280, %p281
      %p283 = scmp.ne.s32.totalorder %s274, %s275
      %p284 = scmp.eq.s32.totalorder %s35, 0
      %p285 = por %p283, %p284
      %p286 = scmp.ne.s32.totalorder %s274, %s275
      %p287 = scmp.eq.s32.totalorder %s36, 7
      %p288 = por %p286, %p287
      %p290 = scmp.ne.s32.totalorder %s275, %s289
      %p291 = scmp.eq.s32.totalorder %s36, 0
      %p292 = por %p290, %p291
      %s294 = sadd.s32 %s293, 1
      %p297 = scmp.eq.s32.totalorder %s30, 7
      %p298 = scmp.ne.s32.totalorder %s293, %s295
      %p299 = scmp.eq.s32.totalorder %s30, 0
      %p300 = por %p298, %p299
      %p301 = scmp.ne.s32.totalorder %s293, %s295
      %p302 = scmp.eq.s32.totalorder %s35, 7
      %p303 = por %p301, %p302
      %p304 = scmp.ne.s32.totalorder %s295, %s296
      %p305 = scmp.eq.s32.totalorder %s35, 0
      %p306 = por %p304, %p305
      %p307 = scmp.ne.s32.totalorder %s295, %s296
      %p308 = scmp.eq.s32.totalorder %s36, 7
      %p309 = por %p307, %p308
      %p311 = scmp.ne.s32.totalorder %s296, %s310
      %p312 = scmp.eq.s32.totalorder %s36, 0
      %p313 = por %p311, %p312
      %s315 = sadd.s32 %s314, 1
      %p318 = scmp.eq.s32.totalorder %s30, 7
      %p319 = scmp.ne.s32.totalorder %s314, %s316
      %p320 = scmp.eq.s32.totalorder %s30, 0
      %p321 = por %p319, %p320
      %p322 = scmp.ne.s32.totalorder %s314, %s316
      %p323 = scmp.eq.s32.totalorder %s35, 7
      %p324 = por %p322, %p323
      %p325 = scmp.ne.s32.totalorder %s316, %s317
      %p326 = scmp.eq.s32.totalorder %s35, 0
      %p327 = por %p325, %p326
      %p328 = scmp.ne.s32.totalorder %s316, %s317
      %p329 = scmp.eq.s32.totalorder %s36, 7
      %p330 = por %p328, %p329
      %p332 = scmp.ne.s32.totalorder %s317, %s331
      %p333 = scmp.eq.s32.totalorder %s36, 0
      %p334 = por %p332, %p333
      %s336 = sadd.s32 %s335, 1
      %p339 = scmp.eq.s32.totalorder %s30, 7
      %p340 = scmp.ne.s32.totalorder %s335, %s337
      %p341 = scmp.eq.s32.totalorder %s30, 0
      %p342 = por %p340, %p341
      %p343 = scmp.ne.s32.totalorder %s335, %s337
      %p344 = scmp.eq.s32.totalorder %s35, 7
      %p345 = por %p343, %p344
      %p346 = scmp.ne.s32.totalorder %s337, %s338
      %p347 = scmp.eq.s32.totalorder %s35, 0
      %p348 = por %p346, %p347
      %p349 = scmp.ne.s32.totalorder %s337, %s338
      %p350 = scmp.eq.s32.totalorder %s36, 7
      %p351 = por %p349, %p350
      %p353 = scmp.ne.s32.totalorder %s338, %s352
      %p354 = scmp.eq.s32.totalorder %s36, 0
      %p355 = por %p353, %p354
      %s357 = sadd.s32 %s356, 1
      %p360 = scmp.eq.s32.totalorder %s30, 7
      %p361 = scmp.ne.s32.totalorder %s356, %s358
      %p362 = scmp.eq.s32.totalorder %s30, 0
      %p363 = por %p361, %p362
      %p364 = scmp.ne.s32.totalorder %s356, %s358
      %p365 = scmp.eq.s32.totalorder %s35, 7
      %p366 = por %p364, %p365
      %p367 = scmp.ne.s32.totalorder %s358, %s359
      %p368 = scmp.eq.s32.totalorder %s35, 0
      %p369 = por %p367, %p368
      %p370 = scmp.ne.s32.totalorder %s358, %s359
      %p371 = scmp.eq.s32.totalorder %s36, 7
      %p372 = por %p370, %p371
      %p374 = scmp.ne.s32.totalorder %s359, %s373
      %p375 = scmp.eq.s32.totalorder %s36, 0
      %p376 = por %p374, %p375
      %s378 = sadd.s32 %s377, 1
      %p381 = scmp.eq.s32.totalorder %s30, 7
      %p382 = scmp.ne.s32.totalorder %s377, %s379
      %p383 = scmp.eq.s32.totalorder %s30, 0
      %p384 = por %p382, %p383
      %p385 = scmp.ne.s32.totalorder %s377, %s379
      %p386 = scmp.eq.s32.totalorder %s35, 7
      %p387 = por %p385, %p386
      %p388 = scmp.ne.s32.totalorder %s379, %s380
      %p389 = scmp.eq.s32.totalorder %s35, 0
      %p390 = por %p388, %p389
      %p391 = scmp.ne.s32.totalorder %s379, %s380
      %p392 = scmp.eq.s32.totalorder %s36, 7
      %p393 = por %p391, %p392
      %p395 = scmp.ne.s32.totalorder %s380, %s394
      %p396 = scmp.eq.s32.totalorder %s36, 0
      %p397 = por %p395, %p396
      %s399 = sadd.s32 %s398, 1
      %p402 = scmp.eq.s32.totalorder %s30, 7
      %p403 = scmp.ne.s32.totalorder %s398, %s400
      %p404 = scmp.eq.s32.totalorder %s30, 0
      %p405 = por %p403, %p404
      %p406 = scmp.ne.s32.totalorder %s398, %s400
      %p407 = scmp.eq.s32.totalorder %s35, 7
      %p408 = por %p406, %p407
      %p409 = scmp.ne.s32.totalorder %s400, %s401
      %p410 = scmp.eq.s32.totalorder %s35, 0
      %p411 = por %p409, %p410
      %p412 = scmp.ne.s32.totalorder %s400, %s401
      %p413 = scmp.eq.s32.totalorder %s36, 7
      %p414 = por %p412, %p413
      %p416 = scmp.ne.s32.totalorder %s401, %s415
      %p417 = scmp.eq.s32.totalorder %s36, 0
      %p418 = por %p416, %p417
      %s420 = sadd.s32 %s419, 1
      %p423 = scmp.eq.s32.totalorder %s30, 7
      %p424 = scmp.ne.s32.totalorder %s419, %s421
      %p425 = scmp.eq.s32.totalorder %s30, 0
      %p426 = por %p424, %p425
      %p427 = scmp.ne.s32.totalorder %s419, %s421
      %p428 = scmp.eq.s32.totalorder %s35, 7
      %p429 = por %p427, %p428
      %p430 = scmp.ne.s32.totalorder %s421, %s422
      %p431 = scmp.eq.s32.totalorder %s35, 0
      %p432 = por %p430, %p431
      %p433 = scmp.ne.s32.totalorder %s421, %s422
      %p434 = scmp.eq.s32.totalorder %s36, 7
      %p435 = por %p433, %p434
      %p437 = scmp.ne.s32.totalorder %s422, %s436
      %p438 = scmp.eq.s32.totalorder %s36, 0
      %p439 = por %p437, %p438
      %s440 = ssub.s32 %s37, %s49
      %s441 = ssub.s32 %s38, %s45
      %s442 = sor.u32 %s440, %s441
      %p443 = scmp.eq.s32.totalorder %s442, 0
      %s445 = sadd.s32 %s444, 1
      %s446 = scalar_select %p443, %s444, %s445
      %p449 = pneg %p443
      %p450 = scmp.eq.s32.totalorder %s30, 7
      %p451 = por %p449, %p450
      %p452 = scmp.ne.s32.totalorder %s444, %s447
      %p453 = scmp.eq.s32.totalorder %s30, 0
      %p454 = por %p452, %p453
      %p455 = scmp.ne.s32.totalorder %s444, %s447
      %p456 = scmp.eq.s32.totalorder %s35, 7
      %p457 = por %p455, %p456
      %p458 = scmp.ne.s32.totalorder %s447, %s448
      %p459 = scmp.eq.s32.totalorder %s35, 0
      %p460 = por %p458, %p459
      %p461 = scmp.ne.s32.totalorder %s447, %s448
      %p462 = scmp.eq.s32.totalorder %s36, 7
      %p463 = por %p461, %p462
      %p465 = scmp.ne.s32.totalorder %s448, %s464
      %p466 = scmp.eq.s32.totalorder %s36, 0
      %p467 = por %p465, %p466
      %p468 = scmp.le.s32.totalorder 1, %s30
      %p469 = scmp.lt.s32.totalorder %s30, 9
      %p470 = pnand %p468, %p469
      %p471 = pneg %p470
      // Predicated region
      $region9: #{tpu_custom_call.1} parent=5 // pred_check
        _
      $region10: #{tpu_custom_call.1} parent=5 // pred_check_branch
        %473 = sbr.rel (%p470) target = $region12
      $region11: #{tpu_custom_call.1} parent=5 // pred_region
        %s474 = ssub.s32 %s30, 1
        // Predicated region
        $region13: #{tpu_custom_call.1} parent=11 // pred_check
          %p475 = pneg %p159
        $region14: #{tpu_custom_call.1} parent=11 // pred_check_branch
          %477 = sbr.rel (%p475) target = $region16
        $region15: #{tpu_custom_call.1} parent=11 // pred_region
          _
        $region16: #{tpu_custom_call.1} parent=11 // pred_fallthru
          _
        // Predicated region
        $region17: #{tpu_custom_call.1} parent=11 // pred_check
          %p478 = pneg %p180
        $region18: #{tpu_custom_call.1} parent=11 // pred_check_branch
          %480 = sbr.rel (%p478) target = $region20
        $region19: #{tpu_custom_call.1} parent=11 // pred_region
          _
        $region20: #{tpu_custom_call.1} parent=11 // pred_fallthru
          _
        // Predicated region
        $region21: #{tpu_custom_call.1} parent=11 // pred_check
          %p481 = pneg %p201
        $region22: #{tpu_custom_call.1} parent=11 // pred_check_branch
          %483 = sbr.rel (%p481) target = $region24
        $region23: #{tpu_custom_call.1} parent=11 // pred_region
          _
        $region24: #{tpu_custom_call.1} parent=11 // pred_fallthru
          _
        // Predicated region
        $region25: #{tpu_custom_call.1} parent=11 // pred_check
          %p484 = pneg %p222
        $region26: #{tpu_custom_call.1} parent=11 // pred_check_branch
          %486 = sbr.rel (%p484) target = $region28
        $region27: #{tpu_custom_call.1} parent=11 // pred_region
          _
        $region28: #{tpu_custom_call.1} parent=11 // pred_fallthru
          _
        // Predicated region
        $region29: #{tpu_custom_call.1} parent=11 // pred_check
          %p487 = pneg %p243
        $region30: #{tpu_custom_call.1} parent=11 // pred_check_branch
          %489 = sbr.rel (%p487) target = $region32
        $region31: #{tpu_custom_call.1} parent=11 // pred_region
          _
        $region32: #{tpu_custom_call.1} parent=11 // pred_fallthru
          _
        // Predicated region
        $region33: #{tpu_custom_call.1} parent=11 // pred_check
          %p490 = pneg %p264
        $region34: #{tpu_custom_call.1} parent=11 // pred_check_branch
          %492 = sbr.rel (%p490) target = $region36
        $region35: #{tpu_custom_call.1} parent=11 // pred_region
          _
        $region36: #{tpu_custom_call.1} parent=11 // pred_fallthru
          _
        // Predicated region
        $region37: #{tpu_custom_call.1} parent=11 // pred_check
          %p493 = pneg %p285
        $region38: #{tpu_custom_call.1} parent=11 // pred_check_branch
          %495 = sbr.rel (%p493) target = $region40
        $region39: #{tpu_custom_call.1} parent=11 // pred_region
          _
        $region40: #{tpu_custom_call.1} parent=11 // pred_fallthru
          _
        // Predicated region
        $region41: #{tpu_custom_call.1} parent=11 // pred_check
          %p496 = pneg %p306
        $region42: #{tpu_custom_call.1} parent=11 // pred_check_branch
          %498 = sbr.rel (%p496) target = $region44
        $region43: #{tpu_custom_call.1} parent=11 // pred_region
          _
        $region44: #{tpu_custom_call.1} parent=11 // pred_fallthru
          _
        // Predicated region
        $region45: #{tpu_custom_call.1} parent=11 // pred_check
          %p499 = pneg %p327
        $region46: #{tpu_custom_call.1} parent=11 // pred_check_branch
          %501 = sbr.rel (%p499) target = $region48
        $region47: #{tpu_custom_call.1} parent=11 // pred_region
          _
        $region48: #{tpu_custom_call.1} parent=11 // pred_fallthru
          _
        // Predicated region
        $region49: #{tpu_custom_call.1} parent=11 // pred_check
          %p502 = pneg %p348
        $region50: #{tpu_custom_call.1} parent=11 // pred_check_branch
          %504 = sbr.rel (%p502) target = $region52
        $region51: #{tpu_custom_call.1} parent=11 // pred_region
          _
        $region52: #{tpu_custom_call.1} parent=11 // pred_fallthru
          _
        // Predicated region
        $region53: #{tpu_custom_call.1} parent=11 // pred_check
          %p505 = pneg %p369
        $region54: #{tpu_custom_call.1} parent=11 // pred_check_branch
          %507 = sbr.rel (%p505) target = $region56
        $region55: #{tpu_custom_call.1} parent=11 // pred_region
          _
        $region56: #{tpu_custom_call.1} parent=11 // pred_fallthru
          _
        // Predicated region
        $region57: #{tpu_custom_call.1} parent=11 // pred_check
          %p508 = pneg %p390
        $region58: #{tpu_custom_call.1} parent=11 // pred_check_branch
          %510 = sbr.rel (%p508) target = $region60
        $region59: #{tpu_custom_call.1} parent=11 // pred_region
          _
        $region60: #{tpu_custom_call.1} parent=11 // pred_fallthru
          _
        // Predicated region
        $region61: #{tpu_custom_call.1} parent=11 // pred_check
          %p511 = pneg %p411
        $region62: #{tpu_custom_call.1} parent=11 // pred_check_branch
          %513 = sbr.rel (%p511) target = $region64
        $region63: #{tpu_custom_call.1} parent=11 // pred_region
          %515 = vsyncadd [#allocation8], 0
          %s516 = sshll.u32 %s15, 4
          %s517 = int_to_ptr.hbm [resolvable:$true] %s516
          %s518 = sshll.u32 [#allocation7], 4
          %s519 = int_to_ptr.vmem [resolvable:$true] %s518
          %524 = dma.hbm_to_vmem [thread:$0]  %s517, 256, %s519, [#allocation8], 64, 64, 4
        $region64: #{tpu_custom_call.1} parent=11 // pred_fallthru
          _
        // Predicated region
        $region65: #{tpu_custom_call.1} parent=11 // pred_check
          %p525 = pneg %p432
        $region66: #{tpu_custom_call.1} parent=11 // pred_check_branch
          %527 = sbr.rel (%p525) target = $region68
        $region67: #{tpu_custom_call.1} parent=11 // pred_region
          _
        $region68: #{tpu_custom_call.1} parent=11 // pred_fallthru
          _
      $region12: #{tpu_custom_call.1} parent=5 // pred_fallthru
        _
      %p528 = scmp.lt.s32.totalorder %s30, 8
      // Predicated region
      $region69: #{tpu_custom_call.1} parent=5 // pred_check
        %p529 = pneg %p528
      $region70: #{tpu_custom_call.1} parent=5 // pred_check_branch
        %531 = sbr.rel (%p529) target = $region72
      $region71: #{tpu_custom_call.1} parent=5 // pred_region
        // Predicated region
        $region73: #{tpu_custom_call.1} parent=71 // pred_check
          %p532 = pneg %p70
        $region74: #{tpu_custom_call.1} parent=71 // pred_check_branch
          %534 = sbr.rel (%p532) target = $region76
        $region75: #{tpu_custom_call.1} parent=71 // pred_region
          %s535 = ssub.s32 %s38, 1
          %p536 = scmp.gt.s32.totalorder %s535, 0
          %s537 = scalar_select %p536, %s535, 0
          %p538 = scmp.lt.s32.totalorder %s37, 1
          %s539 = scalar_select %p538, %s37, 1
          %p540 = scmp.lt.s32.totalorder %s537, 3
          %s541 = scalar_select %p540, %s537, 3
          %s542 = smul.addr %s539, 4
          %s543 = sadd.s32 %s541, %s542
          %s544 = smul.addr %s543, 8
          %s545 = scalar_lea.vmem %s0, %s544
          %s546 = ssub.s32 %s38, 1
          %p547 = scmp.gt.s32.totalorder %s546, 0
          %s548 = scalar_select %p547, %s546, 0
        $region76: #{tpu_custom_call.1} parent=71 // pred_fallthru
          _
        // Predicated region
        $region77: #{tpu_custom_call.1} parent=71 // pred_check
          %p549 = pneg %p98
        $region78: #{tpu_custom_call.1} parent=71 // pred_check_branch
          %551 = sbr.rel (%p549) target = $region80
        $region79: #{tpu_custom_call.1} parent=71 // pred_region
          %p552 = scmp.lt.s32.totalorder %s37, 1
          %s553 = scalar_select %p552, %s37, 1
          %p554 = scmp.lt.s32.totalorder %s38, 3
          %s555 = scalar_select %p554, %s38, 3
          %s556 = smul.addr %s553, 4
          %s557 = sadd.s32 %s555, %s556
          %s558 = smul.addr %s557, 8
          %s559 = scalar_lea.vmem %s1, %s558
        $region80: #{tpu_custom_call.1} parent=71 // pred_fallthru
          _
        // Predicated region
        $region81: #{tpu_custom_call.1} parent=71 // pred_check
          %p560 = pneg %p132
        $region82: #{tpu_custom_call.1} parent=71 // pred_check_branch
          %562 = sbr.rel (%p560) target = $region84
        $region83: #{tpu_custom_call.1} parent=71 // pred_region
          %s563 = sand.u32 %s122, 1
          %s564 = scalar_lea.sflag [#allocation5], %s563
          %s565 = sand.u32 %s122, 1
          %s566 = smul.addr %s565, 8
          %s567 = scalar_lea.vmem [#allocation4], %s566
          %s568 = sadd.s32 %s38, 1
          %p569 = scmp.lt.s32.totalorder %s568, 3
          %s570 = scalar_select %p569, %s568, 3
          %572 = vsyncadd %s564, 0
          %s573 = smul.addr %s37, 4
          %s574 = sadd.s32 %s570, %s573
          %s575 = smul.addr %s574, 8
          %s576 = scalar_lea.hbm %s2, %s575
          %s578 = sshll.u32 %s576, 4
          %s579 = int_to_ptr.hbm [resolvable:$true] %s578
          %s580 = sshll.u32 %s567, 4
          %s581 = int_to_ptr.vmem [resolvable:$true] %s580
          %583 = dma.hbm_to_vmem [thread:$0]  %s579, 128, %s581, %s564
        $region84: #{tpu_custom_call.1} parent=71 // pred_fallthru
          _
      $region72: #{tpu_custom_call.1} parent=5 // pred_fallthru
        _
      %p584 = scmp.le.s32.totalorder 1, %s30
      %p585 = scmp.lt.s32.totalorder %s30, 9
      %p586 = pnand %p584, %p585
      %p587 = pneg %p586
      // Predicated region
      $region85: #{tpu_custom_call.1} parent=5 // pred_check
        _
      $region86: #{tpu_custom_call.1} parent=5 // pred_check_branch
        %589 = sbr.rel (%p586) target = $region88
      $region87: #{tpu_custom_call.1} parent=5 // pred_region
        %s590 = ssub.s32 %s30, 1
        %s591 = sand.u32 %s125, 1
        %s592 = scalar_lea.sflag [#allocation5], %s591
        %s593 = sand.u32 %s125, 1
        %s594 = smul.addr %s593, 8
        %s595 = scalar_lea.vmem [#allocation4], %s594
        // Predicated region
        $region89: #{tpu_custom_call.1} parent=87 // pred_check
          %p596 = pneg %p138
        $region90: #{tpu_custom_call.1} parent=87 // pred_check_branch
          %598 = sbr.rel (%p596) target = $region92
        $region91: #{tpu_custom_call.1} parent=87 // pred_region
          %600 = dma.done %s592, 128
        $region92: #{tpu_custom_call.1} parent=87 // pred_fallthru
          _
        // Predicated region
        $region93: #{tpu_custom_call.1} parent=87 // pred_check
          %p601 = pneg %p411
        $region94: #{tpu_custom_call.1} parent=87 // pred_check_branch
          %603 = sbr.rel (%p601) target = $region96
        $region95: #{tpu_custom_call.1} parent=87 // pred_region
          %605 = dma.done [#allocation8], 256
        $region96: #{tpu_custom_call.1} parent=87 // pred_fallthru
          _
        %s606 = ssub.s32 %s40, 1
        %p607 = scmp.gt.s32.totalorder %s606, 0
        %s608 = scalar_select %p607, %s606, 0
        %p609 = scmp.lt.s32.totalorder %s39, 1
        %s610 = scalar_select %p609, %s39, 1
        %p611 = scmp.lt.s32.totalorder %s608, 3
        %s612 = scalar_select %p611, %s608, 3
        %s613 = smul.addr %s610, 4
        %s614 = sadd.s32 %s612, %s613
        %s615 = smul.addr %s614, 8
        %s616 = scalar_lea.vmem %s0, %s615
        %p617 = pneg %p76
        %p618 = pneg %p73
        %p619 = scmp.lt.s32.totalorder %s39, 1
        %s620 = scalar_select %p619, %s39, 1
        %p621 = scmp.lt.s32.totalorder %s40, 3
        %s622 = scalar_select %p621, %s40, 3
        %s623 = smul.addr %s620, 4
        %s624 = sadd.s32 %s622, %s623
        %s625 = smul.addr %s624, 8
        %s626 = scalar_lea.vmem %s1, %s625
        %p627 = pneg %p104
        %p628 = pneg %p101
        %s629 = sand.u32 %s125, 1
        %s630 = scalar_lea.sflag [#allocation5], %s629
        %s631 = sand.u32 %s125, 1
        %s632 = smul.addr %s631, 8
        %s633 = scalar_lea.vmem [#allocation4], %s632
        %p634 = pneg %p138
        %p635 = pneg %p135
        %p636 = pneg %p159
        %p637 = pneg %p156
        %p638 = pneg %p180
        %p639 = pneg %p177
        %p640 = pneg %p201
        %p641 = pneg %p198
        %p642 = pneg %p222
        %p643 = pneg %p219
        %p644 = pneg %p243
        %p645 = pneg %p240
        %p646 = pneg %p264
        %p647 = pneg %p261
        %p648 = pneg %p285
        %p649 = pneg %p282
        %p650 = pneg %p306
        %p651 = pneg %p303
        %p652 = pneg %p327
        %p653 = pneg %p324
        %p654 = pneg %p348
        %p655 = pneg %p345
        %p656 = pneg %p369
        %p657 = pneg %p366
        %p658 = pneg %p390
        %p659 = pneg %p387
        %p660 = pneg %p411
        %p661 = pneg %p408
        %p662 = pneg %p432
        %p663 = pneg %p429
        %p664 = pneg %p460
        %p665 = pneg %p457
        %s666 = sand.u32 %s447, 1
        %s667 = scalar_lea.sflag [#allocation6], %s666
        %s668 = sand.u32 %s447, 1
        %s669 = smul.addr %s668, 8
        %s670 = scalar_lea.vmem [#allocation9], %s669
        %s671 = ssub.s32 %s40, 1
        %p672 = scmp.gt.s32.totalorder %s671, 0
        %s673 = scalar_select %p672, %s671, 0
        %p674 = scmp.lt.s32.totalorder %s39, 1
        %s675 = scalar_select %p674, %s39, 1
        %p676 = scmp.lt.s32.totalorder %s673, 3
        %s677 = scalar_select %p676, %s673, 3
        %s678 = smul.addr %s675, 4
        %s679 = sadd.s32 %s677, %s678
        %s680 = smul.addr %s679, 8
        %s681 = scalar_lea.vmem %s0, %s680
        %s682 = ssub.s32 %s40, 1
        %p683 = scmp.gt.s32.totalorder %s682, 0
        %s684 = scalar_select %p683, %s682, 0
        %p685 = scmp.lt.s32.totalorder %s39, 1
        %s686 = scalar_select %p685, %s39, 1
        %p687 = scmp.lt.s32.totalorder %s40, 3
        %s688 = scalar_select %p687, %s40, 3
        %s689 = smul.addr %s686, 4
        %s690 = sadd.s32 %s688, %s689
        %s691 = smul.addr %s690, 8
        %s692 = scalar_lea.vmem %s1, %s691
        %s693 = sadd.s32 %s40, 1
        %p694 = scmp.lt.s32.totalorder %s693, 3
        %s695 = scalar_select %p694, %s693, 3
        %v697 = vld [vmem:[%s681 + $0x5] sm:$0x7]
        %vm698 = vcmask 256000
        %699 = vst.msk [vmem:[#allocation2] sm:$0x7] %vm698, %v697
        %v700 = vld [vmem:[%s692] sm:$0xff]
        %vm701 = vcmask 261120
        %702 = vst.msk [vmem:[#allocation2 + $0x3] sm:$0xff] %vm701, %v700
        %v703 = vld [vmem:[%s595] sm:$0xf]
        %vm704 = vcmask 257024
        %705 = vst.msk [vmem:[#allocation2 + $0xb] sm:$0xf] %vm704, %v703
        %v706 = vld [vmem:[#allocation2] sm:$0xff]
        %v707 = vld [vmem:[#allocation2 + $0x8] sm:$0x7f]
        %v708 = vsel %vm701, %v706, 0.0
        %709 = vadd.xlane.f32.xlu0 %v708
        %v710 = vpop.xlane.xlu0 %709
        %vm711 = vcmask 260096
        %v712 = vsel %vm711, %v707, 0.0
        %713 = vadd.xlane.f32.xlu0 %v712
        %v714 = vpop.xlane.xlu0 %713
        %v715 = vrcp.pop 32.0
        %v716 = vmul.f32 32.0, %v715
        %v717 = vsub.f32 1.0, %v716
        %v718 = vmul.f32 %v715, %v717
        %v719 = vadd.f32 %v715, %v718
        %vm720 = vweird.f32 %v715
        %v721 = vsel %vm720, %v715, %v719
        %v722 = vmul.f32 %v710, %v721
        %v723 = vmul.f32 %v714, %v721
        %v724 = vsub.f32 %v706, %v722
        %v725 = vsub.f32 %v707, %v723
        %v726 = vmul.f32 %v724, %v724
        %v727 = vmul.f32 %v725, %v725
        %v728 = vsel %vm701, %v726, 0.0
        %729 = vadd.xlane.f32.xlu0 %v728
        %v730 = vpop.xlane.xlu0 %729
        %v731 = vsel %vm711, %v727, 0.0
        %732 = vadd.xlane.f32.xlu0 %v731
        %v733 = vpop.xlane.xlu0 %732
        %v734 = vmul.f32 %v730, %v721
        %v735 = vmul.f32 %v733, %v721
        %v736 = vadd.f32 %v734, 1e-05
        %v737 = vadd.f32 %v735, 1e-05
        %v738 = vrsqrt.pop %v736
        %v739 = vmul.f32 %v738, %v736
        %v740 = vmul.f32 %v739, %v738
        %v741 = vmul.f32 0.5, %v740
        %v742 = vsub.f32 1.5, %v741
        %v743 = vmul.f32 %v738, %v742
        %vm744 = vweird.f32 %v736
        %vm745 = vweird.f32 %v738
        %vm746 = vmor %vm744, %vm745
        %v747 = vsel %vm746, %v738, %v743
        %v748 = vrsqrt.pop %v737
        %v749 = vmul.f32 %v748, %v737
        %v750 = vmul.f32 %v749, %v748
        %v751 = vmul.f32 0.5, %v750
        %v752 = vsub.f32 1.5, %v751
        %v753 = vmul.f32 %v748, %v752
        %vm754 = vweird.f32 %v737
        %vm755 = vweird.f32 %v748
        %vm756 = vmor %vm754, %vm755
        %v757 = vsel %vm756, %v748, %v753
        %v758 = vmul.f32 %v724, %v747
        %v759 = vmul.f32 %v725, %v757
        %v760 = vld [vmem:[%s3] sm:$0x1]
        %v762 = vperm.slane %v760, 0
        %v764 = vmul.f32 %v758, %v762
        %v765 = vmul.f32 %v759, %v762
        %v766 = vld [vmem:[%s4] sm:$0x1]
        %v768 = vperm.slane %v766, 0
        %v770 = vadd.f32 %v764, %v768
        %v771 = vadd.f32 %v765, %v768
        %v772 = vpack.c.bf16 %v771, %v770
        %v773 = vld [vmem:[%s5] sm:$0xf]
        %v774 = vld [vmem:[%s5 + $0x4] sm:$0xf]
        %v775 = vld [vmem:[%s5 + $0x8] sm:$0xf]
        %v776 = vld [vmem:[%s5 + $0xc] sm:$0xf]
        %v777 = vld [vmem:[%s7] sm:$0x1]
        %v779 = vperm.slane %v777, 0
        %v785 = vunpack.c.l.b16 %v773
        %v786 = vunpack.c.l.b16 %v774
        %v787 = vunpack.c.l.b16 %v775
        %v788 = vunpack.c.l.b16 %v776
        %v789 = vpack.c.b16 %v786, %v785
        %v790 = vpack.c.b16 %v788, %v787
        %v794 = vsel %vm701, %v772, 0
        %796 = vmatpush.bf16.msra.mxu0 0
        %797 = vmatpush.bf16.msra.mxu0 0
        %798 = vmatpush.bf16.msra.mxu0 0
        %799 = vmatpush.bf16.msra.mxu0 0
        %800 = vmatpush.bf16.msra.mxu0 0
        %801 = vmatpush.bf16.msra.mxu0 0
        %802 = vmatpush.bf16.msra.mxu0 %v790
        %803 = vmatpush.bf16.msra.mxu0 %v789
        %804 = vmatmul.bf16.gmra.mxu0 %v794
        %v805 = vpop.f32.mrf.mxu0
        %v806 = vadd.f32 %v779, %v805
        %v807 = vpop.f32.mrf.mxu0
        %v808 = vadd.f32 %v779, %v807
        %809 = vdwg.mxu0
        %v810 = vld [vmem:[%s6] sm:$0xf]
        %v811 = vld [vmem:[%s6 + $0x4] sm:$0xf]
        %v812 = vld [vmem:[%s6 + $0x8] sm:$0xf]
        %v813 = vld [vmem:[%s6 + $0xc] sm:$0xf]
        %v814 = vld [vmem:[%s8] sm:$0x1]
        %v816 = vperm.slane %v814, 0
        %v822 = vunpack.c.l.b16 %v810
        %v823 = vunpack.c.l.b16 %v811
        %v824 = vunpack.c.l.b16 %v812
        %v825 = vunpack.c.l.b16 %v813
        %v826 = vpack.c.b16 %v823, %v822
        %v827 = vpack.c.b16 %v825, %v824
        %830 = vmatpush.bf16.msra.mxu0 0
        %831 = vmatpush.bf16.msra.mxu0 0
        %832 = vmatpush.bf16.msra.mxu0 0
        %833 = vmatpush.bf16.msra.mxu0 0
        %834 = vmatpush.bf16.msra.mxu0 0
        %835 = vmatpush.bf16.msra.mxu0 0
        %836 = vmatpush.bf16.msra.mxu0 %v827
        %837 = vmatpush.bf16.msra.mxu0 %v826
        %838 = vmatmul.bf16.gmra.mxu0 %v794
        %v839 = vpop.f32.mrf.mxu0
        %v840 = vadd.f32 %v816, %v839
        %v841 = vpop.f32.mrf.mxu0
        %v842 = vadd.f32 %v816, %v841
        %843 = vdwg.mxu0
        %v844 = vxor.u32 %v840, 2147483648
        %v845 = vxor.u32 %v842, 2147483648
        %v846 = vmul.f32 %v844, 1.442695
        %v847 = vpow.pop %v846
        %v848 = vmul.f32 %v845, 1.442695
        %v849 = vpow.pop %v848
        %v850 = vadd.f32 %v847, 1.0
        %v851 = vadd.f32 %v849, 1.0
        %v852 = vrcp.pop %v850
        %v853 = vmul.f32 %v850, %v852
        %v854 = vsub.f32 1.0, %v853
        %v855 = vmul.f32 %v852, %v854
        %v856 = vadd.f32 %v852, %v855
        %vm857 = vweird.f32 %v850
        %vm858 = vweird.f32 %v852
        %vm859 = vmor %vm857, %vm858
        %v860 = vsel %vm859, %v852, %v856
        %v861 = vand.u32 2147483647, %v850
        %vm862 = vcmp.eq.f32.partialorder %v861, 8.507059e+37
        %v863 = vand.u32 %v850, 2147483648
        %v864 = vor.u32 1.1754944e-38, %v863
        %v865 = vsel %vm862, %v864, %v860
        %v866 = vmul.f32 1.0, %v865
        %v867 = vrcp.pop %v851
        %v868 = vmul.f32 %v851, %v867
        %v869 = vsub.f32 1.0, %v868
        %v870 = vmul.f32 %v867, %v869
        %v871 = vadd.f32 %v867, %v870
        %vm872 = vweird.f32 %v851
        %vm873 = vweird.f32 %v867
        %vm874 = vmor %vm872, %vm873
        %v875 = vsel %vm874, %v867, %v871
        %v876 = vand.u32 2147483647, %v851
        %vm877 = vcmp.eq.f32.partialorder %v876, 8.507059e+37
        %v878 = vand.u32 %v851, 2147483648
        %v879 = vor.u32 1.1754944e-38, %v878
        %v880 = vsel %vm877, %v879, %v875
        %v881 = vmul.f32 1.0, %v880
        %v882 = vmul.f32 %v806, %v866
        %v883 = vmul.f32 %v808, %v881
        %s884 = smul.u32 %s40, 8
        %s885 = ssub.s32 %s884, 3
        %v886 = vlaneseq
        %v887 = vshrl.u32 %v886, 7
        %v888 = vadd.s32 %v887, 8
        %v889 = vstv %s885
        %v890 = vadd.s32 %v889, %v887
        %v891 = vadd.s32 %v889, %v888
        %vm892 = vcmp.ge.s32.totalorder %v890, 0
        %vm893 = vcmp.ge.s32.totalorder %v891, 0
        %vm894 = vcmp.lt.s32.totalorder %v890, 32
        %vm895 = vcmp.lt.s32.totalorder %v891, 32
        %vm896 = vmand %vm892, %vm894
        %vm897 = vmand %vm893, %vm895
        %v898 = vsel %vm896, 1, 0
        %v899 = vsel %vm897, 1, 0
        %vm900 = vcmp.eq.s32.totalorder %v898, 1
        %vm901 = vcmp.eq.s32.totalorder %v899, 1
        %v902 = vsel %vm900, %v882, 0.0
        %v903 = vsel %vm901, %v883, 0.0
        %v904 = vpack.c.bf16 %v902, %v902
        %v905 = vpack.c.bf16 %v903, %v903
        %906 = vst.msk [vmem:[#allocation3] sm:$0xf] %vm704, %v904
        %vm907 = vsmask.f32 3328
        %vm908 = vsmask.f32 7440
        %vm909 = vmor %vm907, %vm908
        %v911 = vshrl.u32 %v904, 16
        %v913 = vrot.slane %v911, 4
        %v914 = vshll.u32 %v904, 16
        %v916 = vrot.slane %v914, 5
        %v917 = vor.u32 %v913, %v916
        %v918 = vrot.slane %v917, 4
        %v920 = vshll.u32 %v905, 16
        %v922 = vrot.slane %v920, 5
        %v923 = vsel %vm909, %v918, %v922
        %924 = vrot.lane.b32.xlu0 %v923, 32
        %v925 = vpop.permute.xlu0 %924
        %vm927 = vcmask 519424
        %928 = vst.msk [vmem:[#allocation3] sm:$0xf] %vm927, %v925
        %vm931 = vcmask 1042432
        %vm932 = vcmask 1046532
        %vm933 = vmor %vm931, %vm932
        %v934 = vrot.slane %v904, 5
        %v935 = vrot.slane %v934, 4
        %v936 = vrot.slane %v905, 5
        %v937 = vsel %vm933, %v935, %v936
        %938 = vrot.lane.b32.xlu0 %v937, 64
        %v939 = vpop.permute.xlu0 %938
        %vm941 = vcmask 781824
        %942 = vst.msk [vmem:[#allocation3] sm:$0xf] %vm941, %v939
        %vm943 = vsmask.f32 2304
        %vm944 = vsmask.f32 6416
        %vm945 = vmor %vm943, %vm944
        %v946 = vrot.slane %v911, 5
        %v947 = vrot.slane %v914, 6
        %v948 = vor.u32 %v946, %v947
        %v949 = vrot.slane %v948, 4
        %v950 = vshrl.u32 %v905, 16
        %v952 = vrot.slane %v950, 5
        %v953 = vrot.slane %v920, 6
        %v954 = vor.u32 %v952, %v953
        %v955 = vsel %vm945, %v949, %v954
        %956 = vrot.lane.b32.xlu0 %v955, 96
        %v957 = vpop.permute.xlu0 %956
        %vm959 = vcmask 1044224
        %960 = vst.msk [vmem:[#allocation3] sm:$0xf] %vm959, %v957
        %vm961 = vcmask 1041408
        %vm962 = vcmask 1045508
        %vm963 = vmor %vm961, %vm962
        %v964 = vrot.slane %v904, 6
        %v965 = vrot.slane %v964, 4
        %v966 = vrot.slane %v905, 6
        %v967 = vsel %vm963, %v965, %v966
        %969 = vst.msk [vmem:[#allocation3 + $0x4] sm:$0xf] %vm704, %v967
        %vm970 = vsmask.f32 1280
        %vm971 = vsmask.f32 5392
        %vm972 = vmor %vm970, %vm971
        %v973 = vrot.slane %v911, 6
        %v974 = vrot.slane %v914, 7
        %v975 = vor.u32 %v973, %v974
        %v976 = vrot.slane %v975, 4
        %v977 = vrot.slane %v950, 6
        %v978 = vrot.slane %v920, 7
        %v979 = vor.u32 %v977, %v978
        %v980 = vsel %vm972, %v976, %v979
        %981 = vrot.lane.b32.xlu0 %v980, 32
        %v982 = vpop.permute.xlu0 %981
        %984 = vst.msk [vmem:[#allocation3 + $0x4] sm:$0xf] %vm927, %v982
        %vm985 = vcmask 1040384
        %vm986 = vcmask 1044484
        %vm987 = vmor %vm985, %vm986
        %v988 = vrot.slane %v904, 7
        %v989 = vrot.slane %v988, 4
        %v990 = vrot.slane %v905, 7
        %v991 = vsel %vm987, %v989, %v990
        %992 = vrot.lane.b32.xlu0 %v991, 64
        %v993 = vpop.permute.xlu0 %992
        %995 = vst.msk [vmem:[#allocation3 + $0x4] sm:$0xf] %vm941, %v993
        %vm996 = vsmask.f32 256
        %vm997 = vsmask.f32 4368
        %vm998 = vmor %vm996, %vm997
        %v999 = vrot.slane %v911, 7
        %v1000 = vrot.slane %v999, 4
        %v1001 = vrot.slane %v950, 7
        %v1002 = vor.u32 %v1001, %v920
        %v1003 = vsel %vm998, %v1000, %v1002
        %1004 = vrot.lane.b32.xlu0 %v1003, 96
        %v1005 = vpop.permute.xlu0 %1004
        %1007 = vst.msk [vmem:[#allocation3 + $0x4] sm:$0xf] %vm959, %v1005
        %v1008 = vld [vmem:[#allocation3] sm:$0xff]
        %v1009 = vld [vmem:[%s9] sm:$0xf]
        %v1010 = vld [vmem:[%s9 + $0x4] sm:$0xf]
        %v1011 = vld [vmem:[%s9 + $0x8] sm:$0xf]
        %v1012 = vld [vmem:[%s9 + $0xc] sm:$0xf]
        %v1013 = vld [vmem:[%s9 + $0x10] sm:$0xf]
        %v1014 = vld [vmem:[%s9 + $0x14] sm:$0xf]
        %v1015 = vld [vmem:[%s9 + $0x18] sm:$0xf]
        %v1016 = vld [vmem:[%s9 + $0x1c] sm:$0xf]
        %v1017 = vld [vmem:[%s9 + $0x20] sm:$0xf]
        %v1018 = vld [vmem:[%s9 + $0x24] sm:$0xf]
        %v1019 = vld [vmem:[%s9 + $0x28] sm:$0xf]
        %v1020 = vld [vmem:[%s9 + $0x2c] sm:$0xf]
        %v1021 = vld [vmem:[%s9 + $0x30] sm:$0xf]
        %v1022 = vld [vmem:[%s9 + $0x34] sm:$0xf]
        %v1023 = vld [vmem:[%s9 + $0x38] sm:$0xf]
        %v1024 = vld [vmem:[%s9 + $0x3c] sm:$0xf]
        %v1025 = vld [vmem:[%s9 + $0x40] sm:$0xf]
        %v1026 = vld [vmem:[%s9 + $0x44] sm:$0xf]
        %v1027 = vld [vmem:[%s9 + $0x48] sm:$0xf]
        %v1028 = vld [vmem:[%s9 + $0x4c] sm:$0xf]
        %v1029 = vld [vmem:[%s9 + $0x50] sm:$0xf]
        %v1030 = vld [vmem:[%s9 + $0x54] sm:$0xf]
        %v1031 = vld [vmem:[%s9 + $0x58] sm:$0xf]
        %v1032 = vld [vmem:[%s9 + $0x5c] sm:$0xf]
        %v1033 = vld [vmem:[%s9 + $0x60] sm:$0xf]
        %v1034 = vld [vmem:[%s9 + $0x64] sm:$0xf]
        %v1035 = vld [vmem:[%s9 + $0x68] sm:$0xf]
        %v1036 = vld [vmem:[%s9 + $0x6c] sm:$0xf]
        %v1037 = vld [vmem:[%s9 + $0x70] sm:$0xf]
        %v1038 = vld [vmem:[%s9 + $0x74] sm:$0xf]
        %v1039 = vld [vmem:[%s9 + $0x78] sm:$0xf]
        %v1040 = vld [vmem:[%s9 + $0x7c] sm:$0xf]
        %v1041 = vld [vmem:[%s10] sm:$0x1]
        %v1043 = vperm.slane %v1041, 0
        %v1046 = vunpack.c.l.b16 %v1008
        %v1047 = vunpack.c.h.b16 %v1008
        %v1048 = vpack.c.b16 %v1046, %v1046
        %v1049 = vpack.c.b16 %v1047, %v1047
        %v1084 = vunpack.c.l.b16 %v1009
        %v1085 = vunpack.c.l.b16 %v1010
        %v1086 = vunpack.c.l.b16 %v1011
        %v1087 = vunpack.c.l.b16 %v1012
        %v1088 = vunpack.c.l.b16 %v1013
        %v1089 = vunpack.c.l.b16 %v1014
        %v1090 = vunpack.c.l.b16 %v1015
        %v1091 = vunpack.c.l.b16 %v1016
        %v1092 = vunpack.c.l.b16 %v1017
        %v1093 = vunpack.c.l.b16 %v1018
        %v1094 = vunpack.c.l.b16 %v1019
        %v1095 = vunpack.c.l.b16 %v1020
        %v1096 = vunpack.c.l.b16 %v1021
        %v1097 = vunpack.c.l.b16 %v1022
        %v1098 = vunpack.c.l.b16 %v1023
        %v1099 = vunpack.c.l.b16 %v1024
        %v1100 = vunpack.c.l.b16 %v1025
        %v1101 = vunpack.c.l.b16 %v1026
        %v1102 = vunpack.c.l.b16 %v1027
        %v1103 = vunpack.c.l.b16 %v1028
        %v1104 = vunpack.c.l.b16 %v1029
        %v1105 = vunpack.c.l.b16 %v1030
        %v1106 = vunpack.c.l.b16 %v1031
        %v1107 = vunpack.c.l.b16 %v1032
        %v1108 = vunpack.c.l.b16 %v1033
        %v1109 = vunpack.c.l.b16 %v1034
        %v1110 = vunpack.c.l.b16 %v1035
        %v1111 = vunpack.c.l.b16 %v1036
        %v1112 = vunpack.c.l.b16 %v1037
        %v1113 = vunpack.c.l.b16 %v1038
        %v1114 = vunpack.c.l.b16 %v1039
        %v1115 = vunpack.c.l.b16 %v1040
        %v1116 = vpack.c.b16 %v1085, %v1084
        %v1117 = vpack.c.b16 %v1087, %v1086
        %v1118 = vpack.c.b16 %v1089, %v1088
        %v1119 = vpack.c.b16 %v1091, %v1090
        %v1120 = vpack.c.b16 %v1093, %v1092
        %v1121 = vpack.c.b16 %v1095, %v1094
        %v1122 = vpack.c.b16 %v1097, %v1096
        %v1123 = vpack.c.b16 %v1099, %v1098
        %v1124 = vpack.c.b16 %v1101, %v1100
        %v1125 = vpack.c.b16 %v1103, %v1102
        %v1126 = vpack.c.b16 %v1105, %v1104
        %v1127 = vpack.c.b16 %v1107, %v1106
        %v1128 = vpack.c.b16 %v1109, %v1108
        %v1129 = vpack.c.b16 %v1111, %v1110
        %v1130 = vpack.c.b16 %v1113, %v1112
        %v1131 = vpack.c.b16 %v1115, %v1114
        %1148 = vmatpush.bf16.msra.mxu0 %v1123
        %1149 = vmatpush.bf16.msra.mxu0 %v1122
        %1150 = vmatpush.bf16.msra.mxu0 %v1121
        %1151 = vmatpush.bf16.msra.mxu0 %v1120
        %1152 = vmatpush.bf16.msra.mxu0 %v1119
        %1153 = vmatpush.bf16.msra.mxu0 %v1118
        %1154 = vmatpush.bf16.msra.mxu0 %v1117
        %1155 = vmatpush.bf16.msra.mxu0 %v1116
        %1156 = vmatmul.bf16.gmra.mxu0 %v1048
        %v1157 = vpop.f32.mrf.mxu0
        %v1158 = vadd.f32 %v1043, %v1157
        %v1159 = vpop.f32.mrf.mxu0
        %1160 = vdwg.mxu0
        %1161 = vmatpush.bf16.msra.mxu0 %v1131
        %1162 = vmatpush.bf16.msra.mxu0 %v1130
        %1163 = vmatpush.bf16.msra.mxu0 %v1129
        %1164 = vmatpush.bf16.msra.mxu0 %v1128
        %1165 = vmatpush.bf16.msra.mxu0 %v1127
        %1166 = vmatpush.bf16.msra.mxu0 %v1126
        %1167 = vmatpush.bf16.msra.mxu0 %v1125
        %1168 = vmatpush.bf16.msra.mxu0 %v1124
        %1169 = vmatmul.bf16.gmra.mxu0 %v1049
        %v1170 = vpop.f32.mrf.mxu0
        %v1171 = vadd.f32 %v1158, %v1170
        %v1172 = vpop.f32.mrf.mxu0
        %1173 = vdwg.mxu0
        %v1174 = vld [vmem:[%s13] sm:$0x1]
        %v1176 = vperm.slane %v1174, 0
        %v1178 = vsub.f32 %v1171, %v1176
        %v1179 = vld [vmem:[%s14] sm:$0x1]
        %v1180 = vadd.f32 %v1179, 1e-05
        %v1181 = vrsqrt.pop %v1180
        %v1182 = vmul.f32 %v1181, %v1180
        %v1183 = vmul.f32 %v1182, %v1181
        %v1184 = vmul.f32 0.5, %v1183
        %v1185 = vsub.f32 1.5, %v1184
        %v1186 = vmul.f32 %v1181, %v1185
        %vm1187 = vweird.f32 %v1180
        %vm1188 = vweird.f32 %v1181
        %vm1189 = vmor %vm1187, %vm1188
        %v1190 = vsel %vm1189, %v1181, %v1186
        %v1192 = vperm.slane %v1190, 0
        %v1194 = vmul.f32 %v1178, %v1192
        %v1195 = vld [vmem:[%s11] sm:$0x1]
        %v1197 = vperm.slane %v1195, 0
        %v1199 = vmul.f32 %v1194, %v1197
        %v1200 = vld [vmem:[%s12] sm:$0x1]
        %v1202 = vperm.slane %v1200, 0
        %v1204 = vadd.f32 %v1199, %v1202
        %v1205 = vxor.u32 %v1204, 2147483648
        %v1206 = vmul.f32 %v1205, 1.442695
        %v1207 = vpow.pop %v1206
        %v1208 = vadd.f32 %v1207, 1.0
        %v1209 = vrcp.pop %v1208
        %v1210 = vmul.f32 %v1208, %v1209
        %v1211 = vsub.f32 1.0, %v1210
        %v1212 = vmul.f32 %v1209, %v1211
        %v1213 = vadd.f32 %v1209, %v1212
        %vm1214 = vweird.f32 %v1208
        %vm1215 = vweird.f32 %v1209
        %vm1216 = vmor %vm1214, %vm1215
        %v1217 = vsel %vm1216, %v1209, %v1213
        %v1218 = vand.u32 2147483647, %v1208
        %vm1219 = vcmp.eq.f32.partialorder %v1218, 8.507059e+37
        %v1220 = vand.u32 %v1208, 2147483648
        %v1221 = vor.u32 1.1754944e-38, %v1220
        %v1222 = vsel %vm1219, %v1221, %v1217
        %v1223 = vmul.f32 1.0, %v1222
        %v1224 = vmul.f32 %v1204, %v1223
        %v1225 = vpack.c.bf16 %v1224, %v1224
        %v1226 = vld [vmem:[#allocation7] sm:$0xf]
        %v1227 = vld [vmem:[#allocation7 + $0x4] sm:$0xf]
        %v1228 = vld [vmem:[#allocation7 + $0x8] sm:$0xf]
        %v1229 = vld [vmem:[#allocation7 + $0xc] sm:$0xf]
        %v1230 = vld [vmem:[%s16] sm:$0x1]
        %v1232 = vperm.slane %v1230, 0
        %v1238 = vunpack.c.l.b16 %v1226
        %v1239 = vunpack.c.l.b16 %v1227
        %v1240 = vunpack.c.l.b16 %v1228
        %v1241 = vunpack.c.l.b16 %v1229
        %v1242 = vpack.c.b16 %v1239, %v1238
        %v1243 = vpack.c.b16 %v1241, %v1240
        %v1247 = vsel %vm701, %v1225, 0
        %1249 = vmatpush.bf16.msra.mxu0 0
        %1250 = vmatpush.bf16.msra.mxu0 0
        %1251 = vmatpush.bf16.msra.mxu0 0
        %1252 = vmatpush.bf16.msra.mxu0 0
        %1253 = vmatpush.bf16.msra.mxu0 0
        %1254 = vmatpush.bf16.msra.mxu0 0
        %1255 = vmatpush.bf16.msra.mxu0 %v1243
        %1256 = vmatpush.bf16.msra.mxu0 %v1242
        %1257 = vmatmul.bf16.gmra.mxu0 %v1247
        %v1258 = vpop.f32.mrf.mxu0
        %v1259 = vadd.f32 %v1232, %v1258
        %v1260 = vpop.f32.mrf.mxu0
        %1261 = vdwg.mxu0
        %v1262 = vld [vmem:[%s692] sm:$0xff]
        %v1263 = vadd.f32 %v1262, %v1259
        %1264 = vst.msk [vmem:[%s670] sm:$0xff] %vm701, %v1263
        %s1265 = sand.u32 %s447, 1
        %s1266 = scalar_lea.sflag [#allocation6], %s1265
        %s1267 = sand.u32 %s447, 1
        %s1268 = smul.addr %s1267, 8
        %s1269 = scalar_lea.vmem [#allocation9], %s1268
        // Predicated region
        $region97: #{tpu_custom_call.1} parent=87 // pred_check
          %p1270 = pneg %p457
        $region98: #{tpu_custom_call.1} parent=87 // pred_check_branch
          %1272 = sbr.rel (%p1270) target = $region100
        $region99: #{tpu_custom_call.1} parent=87 // pred_region
          %1274 = vsyncadd %s1266, 0
          %s1275 = smul.addr %s39, 4
          %s1276 = sadd.s32 %s40, %s1275
          %s1277 = smul.addr %s1276, 8
          %s1278 = scalar_lea.hbm %s17, %s1277
          %s1280 = sshll.u32 %s1269, 4
          %s1281 = int_to_ptr.vmem [resolvable:$true] %s1280
          %s1282 = sshll.u32 %s1278, 4
          %s1283 = int_to_ptr.hbm [resolvable:$true] %s1282
          %1285 = dma.vmem_to_hbm [thread:$0]  %s1281, 128, %s1283, %s1266
        $region100: #{tpu_custom_call.1} parent=87 // pred_fallthru
          _
      $region88: #{tpu_custom_call.1} parent=5 // pred_fallthru
        _
      %p1286 = scmp.le.s32.totalorder 2, %s30
      // Predicated region
      $region101: #{tpu_custom_call.1} parent=5 // pred_check
        %p1287 = pneg %p1286
      $region102: #{tpu_custom_call.1} parent=5 // pred_check_branch
        %1289 = sbr.rel (%p1287) target = $region104
      $region103: #{tpu_custom_call.1} parent=5 // pred_region
        %s1290 = ssub.s32 %s30, 2
        // Predicated region
        $region105: #{tpu_custom_call.1} parent=103 // pred_check
          %p1291 = pneg %p463
        $region106: #{tpu_custom_call.1} parent=103 // pred_check_branch
          %1293 = sbr.rel (%p1291) target = $region108
        $region107: #{tpu_custom_call.1} parent=103 // pred_region
          %s1294 = sand.u32 %s448, 1
          %s1295 = scalar_lea.sflag [#allocation6], %s1294
          %s1296 = sand.u32 %s448, 1
          %s1297 = smul.addr %s1296, 8
          %s1298 = scalar_lea.vmem [#allocation9], %s1297
          %1300 = dma.done %s1295, 128
        $region108: #{tpu_custom_call.1} parent=103 // pred_fallthru
          _
      $region104: #{tpu_custom_call.1} parent=5 // pred_fallthru
        _
    $region6: #{tpu_custom_call.1} parent=1 // loop_footer
      %s34 = sadd.s32 1, %s30
    $region7: #{tpu_custom_call.1} parent=1 // loop_footer_branch
      %29 = sbr.rel target = $region3
    $region8: #{tpu_custom_call.1} parent=1 // loop_exit
      _
    %1301 = vsyncpa [#allocation5], 1
    %s1302 = scalar_lea.sflag [#allocation5], 1
    %1303 = vsyncpa %s1302, 1
    %1304 = vsyncpa [#allocation8], 1
    %1305 = vsyncpa [#allocation6], 1
    %s1306 = scalar_lea.sflag [#allocation6], 1
    %1307 = vsyncpa %s1306, 1

</llo_original>
